<compile_context>
chip_gen: v5e
topology: v5e:2x2
jax: 0.10.0
libtpu: 0.0.40
codegen_flags: <defaults>
</compile_context>

<pallas_src>
import functools

import jax
import jax.numpy as jnp
from jax import lax
from jax.experimental import pallas as pl
from jax.experimental.pallas import tpu as pltpu

EPS = 1e-5


# --------------------------------------------------------------------------
# Kernels
# --------------------------------------------------------------------------
def _conv_pass_kernel(x_ref, t_ref, scale_ref, shift_ref, z_ref, stats_ref, *,
                      fuse_bn_relu, img_h):
    """B images per grid step: [bn+relu]? -> 3x3 conv -> z (bf16), BN partials.

    x_ref     : (B, H, W*Cin)       lane-dense input slab
    t_ref     : (3, W*Cin, W*Cp)    bf16 banded-Toeplitz weight, one per kh tap
    scale_ref : (1, W*Cin)  f32     per-lane BN scale (unused unless fused)
    shift_ref : (1, W*Cin)  f32     per-lane BN shift (unused unless fused)
    z_ref     : (B, H, W*Cp) bf16   conv output (pre-BN)
    stats_ref : (1, 2, W*Cp) f32    row 0: column sums over B*H rows, row 1: sum sq
    """
    b, h, wc_in = x_ref.shape
    wc_out = t_ref.shape[2]
    rows = b * h

    # BN + ReLU of the previous conv in f32 (v5e VPU has no bf16 arithmetic).
    x = x_ref[...].astype(jnp.float32).reshape(rows, wc_in)
    if fuse_bn_relu:
        x = jnp.maximum(x * scale_ref[...] + shift_ref[...], 0.0)

    # kh = 0 / kh = 2 taps: roll the flattened slab by +/-1 row (XLU) and zero
    # the first/last row of every image -- that masking IS the conv's zero
    # padding along H and also stops bleed between the B batched images.
    # No halo scratch store/reload.
    row = lax.broadcasted_iota(jnp.int32, (rows, 1), 0) % img_h
    zero = jnp.zeros_like(x)
    x_up = jnp.where(row != 0, pltpu.roll(x, shift=1, axis=0), zero)
    x_dn = jnp.where(row != img_h - 1,
                     pltpu.roll(x, shift=rows - 1, axis=0), zero)

    # Three big-M (M = B*H), big-K (K = W*Cin) bf16 MXU matmuls, f32 accumulate.
    acc = jnp.dot(x.astype(jnp.bfloat16), t_ref[1],
                  preferred_element_type=jnp.float32)
    acc += jnp.dot(x_up.astype(jnp.bfloat16), t_ref[0],
                   preferred_element_type=jnp.float32)
    acc += jnp.dot(x_dn.astype(jnp.bfloat16), t_ref[2],
                   preferred_element_type=jnp.float32)

    z_ref[...] = acc.reshape(b, h, wc_out).astype(z_ref.dtype)

    # BN partial statistics: one (2, W*Cp) pair per grid step via sublane
    # reductions of the f32 accumulator (no M=1 MXU matmuls).
    stats_ref[0, 0:1, :] = jnp.sum(acc, axis=0, keepdims=True)
    stats_ref[0, 1:2, :] = jnp.sum(acc * acc, axis=0, keepdims=True)


def _bn_add_relu_kernel(z_ref, res_ref, scale_ref, shift_ref, out_ref):
    """out = relu(z * scale + shift + residual); single fused lane-dense store."""
    y = z_ref[...].astype(jnp.float32) * scale_ref[...] + shift_ref[...]
    y = y + res_ref[...].astype(jnp.float32)
    out_ref[...] = jnp.maximum(y, 0.0).astype(out_ref.dtype)


# --------------------------------------------------------------------------
# Pallas-call wrappers
# --------------------------------------------------------------------------
def _conv_pass(x_slab, t_mats, scale, shift, *, images_per_step, fuse_bn_relu):
    """Gridded conv pass (B images / step).  Returns (z bf16, per-step stats)."""
    n, h, wc_in = x_slab.shape
    wc_out = t_mats.shape[2]
    bsz = images_per_step
    assert n % bsz == 0
    steps = n // bsz
    kernel = functools.partial(_conv_pass_kernel,
                               fuse_bn_relu=fuse_bn_relu, img_h=h)
    z, stats = pl.pallas_call(
        kernel,
        grid=(steps,),
        in_specs=[
            pl.BlockSpec((bsz, h, wc_in), lambda i: (i, 0, 0)),
            pl.BlockSpec((3, wc_in, wc_out), lambda i: (0, 0, 0)),
            pl.BlockSpec((1, wc_in), lambda i: (0, 0)),
            pl.BlockSpec((1, wc_in), lambda i: (0, 0)),
        ],
        out_specs=(
            pl.BlockSpec((bsz, h, wc_out), lambda i: (i, 0, 0)),
            pl.BlockSpec((1, 2, wc_out), lambda i: (i, 0, 0)),
        ),
        out_shape=(
            jax.ShapeDtypeStruct((n, h, wc_out), jnp.bfloat16),
            jax.ShapeDtypeStruct((steps, 2, wc_out), jnp.float32),
        ),
        compiler_params=pltpu.CompilerParams(
            dimension_semantics=("parallel",)),
    )(x_slab, t_mats, scale, shift)
    return z, stats


def _bn_add_relu(z_slab, res_slab, scale, shift, out_dtype, *, images_per_step):
    n, h, wc = z_slab.shape
    bsz = images_per_step
    steps = n // bsz
    return pl.pallas_call(
        _bn_add_relu_kernel,
        grid=(steps,),
        in_specs=[
            pl.BlockSpec((bsz, h, wc), lambda i: (i, 0, 0)),
            pl.BlockSpec((bsz, h, wc), lambda i: (i, 0, 0)),
            pl.BlockSpec((1, wc), lambda i: (0, 0)),
            pl.BlockSpec((1, wc), lambda i: (0, 0)),
        ],
        out_specs=pl.BlockSpec((bsz, h, wc), lambda i: (i, 0, 0)),
        out_shape=jax.ShapeDtypeStruct((n, h, wc), out_dtype),
        compiler_params=pltpu.CompilerParams(
            dimension_semantics=("parallel",)),
    )(z_slab, res_slab, scale, shift)


# --------------------------------------------------------------------------
# Host-side helpers
# --------------------------------------------------------------------------
def _conv_toeplitz(w_hwio, width):
    """(3,3,Cin,Cp) HWIO weight -> (3, W*Cin, W*Cp) bf16 banded Toeplitz.

    T[kh, wi*Cin+ci, wo*Cp+co] = w[kh, wi-wo+1, ci, co]  (zero outside band),
    so out_row(h) = sum_kh x_row(h+kh-1) @ T[kh] reproduces the zero-padded
    3x3 / stride-1 conv with a lane-dense (W*Cp) output row; the band cutoff
    supplies the W-boundary zero padding.
    """
    mats = []
    for kh in range(3):
        m = sum(jnp.kron(jnp.eye(width, width, k=1 - kw, dtype=jnp.float32),
                         w_hwio[kh, kw].astype(jnp.float32))
                for kw in range(3))
        mats.append(m)
    return jnp.stack(mats).astype(jnp.bfloat16)


def _bn_scale_shift(stats, gamma, beta, count, width):
    """Finalize per-step BN partial sums into per-lane (scale, shift) in f32."""
    cp = gamma.shape[0]
    s = stats[:, 0, :].sum(axis=0).reshape(width, cp).sum(axis=0)
    ss = stats[:, 1, :].sum(axis=0).reshape(width, cp).sum(axis=0)
    mean = s / count
    # Single-pass (E[x^2]-E[x]^2) biased variance; activations here are
    # near zero-mean so cancellation is benign.  A shifted/two-pass moment
    # computation would be needed if this fed training at large |mean|/std.
    var = jnp.maximum(ss / count - mean * mean, 0.0)
    scale = gamma * lax.rsqrt(var + EPS)
    shift = beta - mean * scale
    return (jnp.tile(scale, width)[None, :].astype(jnp.float32),
            jnp.tile(shift, width)[None, :].astype(jnp.float32))


def nchw_to_slab(x_nchw):
    n, c, h, w = x_nchw.shape
    return jnp.transpose(x_nchw, (0, 2, 3, 1)).reshape(n, h, w * c)


def slab_to_nchw(x_slab, channels):
    n, h, wc = x_slab.shape
    w = wc // channels
    return jnp.transpose(x_slab.reshape(n, h, w, channels), (0, 3, 1, 2))


def basic_block_slab(x_slab, w1, g1, b1, w2, g2, b2, *, width,
                     images_per_step=8, out_dtype=None):
    """BasicBlock forward on lane-dense (N, H, W*C) slabs (stride-1 identity).

    Chained blocks stay in slab layout; convert NCHW only at stem / head.
    """
    n, h, wc_in = x_slab.shape
    cin = wc_in // width
    cp = w1.shape[-1]
    assert cin == cp, "identity residual requires inplanes == planes"
    assert wc_in % 128 == 0 and h % 8 == 0 and n % images_per_step == 0
    out_dtype = out_dtype or x_slab.dtype
    # TODO(synk): stride-2 / 1x1-conv downsample blocks, the 7x7/s2 stem conv,
    #             maxpool and the global-mean tail of ResNet_s are not ported;
    #             only the stride-1 identity BasicBlock is.

    t1 = _conv_toeplitz(w1, width)      # (3, W*Cin, W*Cp) bf16
    t2 = _conv_toeplitz(w2, width)      # (3, W*Cp,  W*Cp) bf16
    count = n * h * width

    dummy = jnp.zeros((1, wc_in), jnp.float32)            # unused in pass 1
    z1, st1 = _conv_pass(x_slab, t1, dummy, dummy,
                         images_per_step=images_per_step, fuse_bn_relu=False)
    scale1, shift1 = _bn_scale_shift(st1, g1, b1, count, width)

    z2, st2 = _conv_pass(z1, t2, scale1, shift1,
                         images_per_step=images_per_step, fuse_bn_relu=True)
    scale2, shift2 = _bn_scale_shift(st2, g2, b2, count, width)

    # TODO(synk): when chaining many blocks, pass 3 could be fused into the
    #             next block's pass-1 kernel to save one activation read+write.
    return _bn_add_relu(z2, x_slab, scale2, shift2, out_dtype,
                        images_per_step=images_per_step)


def forward_layer(x_nchw, blocks_params, images_per_step=8):
    """A ResNet_s layer1-style stack of identity BasicBlocks, NCHW in/out."""
    n, c, h, w = x_nchw.shape
    s = nchw_to_slab(x_nchw)
    for (w1, g1, b1, w2, g2, b2) in blocks_params:
        s = basic_block_slab(s, w1, g1, b1, w2, g2, b2, width=w,
                             images_per_step=images_per_step)
    return slab_to_nchw(s, c)


# --------------------------------------------------------------------------
# Pure-JAX reference (PyTorch forward semantics, all f32)
# --------------------------------------------------------------------------
def _bn_ref(a, g, b):
    m = a.mean(axis=(0, 1, 2), keepdims=True)
    v = ((a - m) ** 2).mean(axis=(0, 1, 2), keepdims=True)
    return (a - m) * lax.rsqrt(v + EPS) * g + b


def _basic_block_reference_nhwc(x, w1, g1, b1, w2, g2, b2):
    def conv(a, wt):
        return lax.conv_general_dilated(
            a, wt, window_strides=(1, 1), padding="SAME",
            dimension_numbers=("NHWC", "HWIO", "NHWC"))
    y = jax.nn.relu(_bn_ref(conv(x, w1), g1, b1))
    y = _bn_ref(conv(y, w2), g2, b2)
    return jax.nn.relu(y + x)


def forward_layer_reference(x_nchw, blocks_params):
    y = jnp.transpose(x_nchw, (0, 2, 3, 1))
    for p in blocks_params:
        y = _basic_block_reference_nhwc(y, *p)
    return jnp.transpose(y, (0, 3, 1, 2))


# --------------------------------------------------------------------------
# Demo / correctness check
# --------------------------------------------------------------------------
if __name__ == "__main__":
    key = jax.random.PRNGKey(0)
    kx, k1, k2, k3, k4 = jax.random.split(key, 5)

    # layer1-style identity blocks of ResNet_s: inplanes == planes == 16.
    N, C, H, W = 32, 16, 16, 16          # W*C = 256 -> lane-dense slabs
    IMAGES_PER_STEP = 8                  # M = 8*16 = 128 rows per MXU matmul

    x = jax.random.normal(kx, (N, C, H, W), dtype=jnp.float32)

    def conv_w(k):                       # HWIO, ~kaiming scale like the module
        return 0.1 * jax.random.normal(k, (3, 3, C, C), dtype=jnp.float32)

    gamma = jnp.ones((C,), jnp.float32)  # BatchNorm2d init: weight=1, bias=0
    beta = jnp.zeros((C,), jnp.float32)

    # Two chained blocks (like layer1 with layers[0] = 2); activations stay in
    # slab layout between them, transposes only at entry/exit.
    blocks = (
        (conv_w(k1), gamma, beta, conv_w(k2), gamma, beta),
        (conv_w(k3), gamma, beta, conv_w(k4), gamma, beta),
    )

    fwd = jax.jit(functools.partial(forward_layer,
                                    images_per_step=IMAGES_PER_STEP))
    out = jax.block_until_ready(fwd(x, blocks))

    ref = forward_layer_reference(x, blocks)
    assert out.shape == (N, C, H, W)
    err = float(jnp.max(jnp.abs(out - ref)))
    rel = err / float(jnp.max(jnp.abs(ref)))
    # bf16 MXU operands + bf16 z1/z2 across four chained convs give ~1e-2-scale
    # absolute deviation vs the pure-f32 reference; a structural bug (wrong
    # tap / mask / Toeplitz band) would produce O(1) errors.
    assert err < 1e-1 and rel < 3e-2, f"max abs diff {err} (rel {rel})"

    print("KERNEL_OK")
</pallas_src>

<mosaic_0001>
module attributes {stable_mosaic.version = 11 : i64} {
  func.func @_conv_pass_kernel(%arg0: i32, %arg1: memref<8x16x256xf32, #tpu.memory_space<vmem>>, %arg2: memref<3x256x256xbf16, #tpu.memory_space<vmem>>, %arg3: memref<1x256xf32, #tpu.memory_space<vmem>>, %arg4: memref<1x256xf32, #tpu.memory_space<vmem>>, %arg5: memref<8x16x256xbf16, #tpu.memory_space<vmem>>, %arg6: memref<1x2x256xf32, #tpu.memory_space<vmem>>) attributes {dimension_semantics = [#tpu.dimension_semantics<parallel>], iteration_bounds = array<i64: 4>, scalar_prefetch = 0 : i64, scratch_operands = 0 : i64, tpu.core_type = #tpu.core_type<tc>, window_params = [{transform_indices = @transform_0, window_bounds = array<i64: 8, 16, 256>}, {pipeline_mode = #tpu.pipeline_mode<synchronous>, transform_indices = @transform_1, window_bounds = array<i64: 3, 256, 256>}, {pipeline_mode = #tpu.pipeline_mode<synchronous>, transform_indices = @transform_2, window_bounds = array<i64: 1, 256>}, {pipeline_mode = #tpu.pipeline_mode<synchronous>, transform_indices = @transform_3, window_bounds = array<i64: 1, 256>}, {transform_indices = @transform_4, window_bounds = array<i64: 8, 16, 256>}, {transform_indices = @transform_5, window_bounds = array<i64: 1, 2, 256>}]} {
    %c0 = arith.constant 0 : index
    %c0_0 = arith.constant 0 : index
    %c0_1 = arith.constant 0 : index
    %0 = vector.load %arg1[%c0, %c0_0, %c0_1] : memref<8x16x256xf32, #tpu.memory_space<vmem>>, vector<8x16x256xf32>
    %1 = vector.shape_cast %0 : vector<8x16x256xf32> to vector<128x256xf32>
    %2 = tpu.iota {dimensions = array<i32: 0>} : vector<128x1xi32>
    %c16_i32 = arith.constant 16 : i32
    %c0_i32 = arith.constant 0 : i32
    %3 = arith.cmpi eq, %c16_i32, %c0_i32 : i32
    %c1_i32 = arith.constant 1 : i32
    %4 = arith.select %3, %c1_i32, %c16_i32 : i32
    %5 = vector.broadcast %4 : i32 to vector<128x1xi32>
    %6 = arith.remsi %2, %5 : vector<128x1xi32>
    %c0_i32_2 = arith.constant 0 : i32
    %7 = vector.broadcast %c0_i32_2 : i32 to vector<128x1xi32>
    %8 = arith.cmpi ne, %6, %7 : vector<128x1xi32>
    %c0_i32_3 = arith.constant 0 : i32
    %9 = vector.broadcast %c0_i32_3 : i32 to vector<128x1xi32>
    %10 = arith.cmpi slt, %6, %9 : vector<128x1xi32>
    %c0_i32_4 = arith.constant 0 : i32
    %11 = arith.cmpi slt, %4, %c0_i32_4 : i32
    %12 = vector.broadcast %11 : i1 to vector<128x1xi1>
    %13 = vector.broadcast %12 : vector<128x1xi1> to vector<128x1xi1>
    %14 = arith.xori %10, %13 : vector<128x1xi1>
    %15 = arith.andi %14, %8 : vector<128x1xi1>
    %16 = vector.broadcast %4 : i32 to vector<128x1xi32>
    %17 = arith.addi %6, %16 : vector<128x1xi32>
    %18 = arith.select %15, %17, %6 : vector<128x1xi1>, vector<128x1xi32>
    %cst = arith.constant 0.000000e+00 : f32
    %19 = vector.broadcast %cst : f32 to vector<128x256xf32>
    %c0_i32_5 = arith.constant 0 : i32
    %20 = vector.broadcast %c0_i32_5 : i32 to vector<128x1xi32>
    %21 = arith.cmpi ne, %18, %20 : vector<128x1xi32>
    %c1_i32_6 = arith.constant 1 : i32
    %22 = tpu.dynamic_rotate %1 by %c1_i32_6 dim 0 : vector<128x256xf32>, i32 -> vector<128x256xf32>
    %23 = vector.shape_cast %21 : vector<128x1xi1> to vector<128x1xi1>
    %24 = vector.broadcast %23 : vector<128x1xi1> to vector<128x256xi1>
    %25 = arith.select %24, %22, %19 : vector<128x256xi1>, vector<128x256xf32>
    %c15_i32 = arith.constant 15 : i32
    %26 = vector.broadcast %c15_i32 : i32 to vector<128x1xi32>
    %27 = arith.cmpi ne, %18, %26 : vector<128x1xi32>
    %c127_i32 = arith.constant 127 : i32
    %28 = tpu.dynamic_rotate %1 by %c127_i32 dim 0 : vector<128x256xf32>, i32 -> vector<128x256xf32>
    %29 = vector.shape_cast %27 : vector<128x1xi1> to vector<128x1xi1>
    %30 = vector.broadcast %29 : vector<128x1xi1> to vector<128x256xi1>
    %31 = arith.select %30, %28, %19 : vector<128x256xi1>, vector<128x256xf32>
    %32 = arith.truncf %1 : vector<128x256xf32> to vector<128x256xbf16>
    %c1 = arith.constant 1 : index
    %c0_7 = arith.constant 0 : index
    %c0_8 = arith.constant 0 : index
    %33 = vector.load %arg2[%c1, %c0_7, %c0_8] : memref<3x256x256xbf16, #tpu.memory_space<vmem>>, vector<1x256x256xbf16>
    %34 = vector.shape_cast %33 : vector<1x256x256xbf16> to vector<256x256xbf16>
    %cst_9 = arith.constant dense<0.000000e+00> : vector<128x256xf32>
    %35 = tpu.matmul %32, %34, %cst_9 {dimension_numbers = #tpu.dot_dimension_numbers<[1], [0], [0], [1], [0, 0, 1, 1], [], []>} : vector<128x256xbf16>, vector<256x256xbf16>, vector<128x256xf32> -> vector<128x256xf32>
    %36 = arith.truncf %25 : vector<128x256xf32> to vector<128x256xbf16>
    %c0_10 = arith.constant 0 : index
    %c0_11 = arith.constant 0 : index
    %c0_12 = arith.constant 0 : index
    %37 = vector.load %arg2[%c0_10, %c0_11, %c0_12] : memref<3x256x256xbf16, #tpu.memory_space<vmem>>, vector<1x256x256xbf16>
    %38 = vector.shape_cast %37 : vector<1x256x256xbf16> to vector<256x256xbf16>
    %cst_13 = arith.constant dense<0.000000e+00> : vector<128x256xf32>
    %39 = tpu.matmul %36, %38, %cst_13 {dimension_numbers = #tpu.dot_dimension_numbers<[1], [0], [0], [1], [0, 0, 1, 1], [], []>} : vector<128x256xbf16>, vector<256x256xbf16>, vector<128x256xf32> -> vector<128x256xf32>
    %40 = arith.addf %35, %39 : vector<128x256xf32>
    %41 = arith.truncf %31 : vector<128x256xf32> to vector<128x256xbf16>
    %c2 = arith.constant 2 : index
    %c0_14 = arith.constant 0 : index
    %c0_15 = arith.constant 0 : index
    %42 = vector.load %arg2[%c2, %c0_14, %c0_15] : memref<3x256x256xbf16, #tpu.memory_space<vmem>>, vector<1x256x256xbf16>
    %43 = vector.shape_cast %42 : vector<1x256x256xbf16> to vector<256x256xbf16>
    %cst_16 = arith.constant dense<0.000000e+00> : vector<128x256xf32>
    %44 = tpu.matmul %41, %43, %cst_16 {dimension_numbers = #tpu.dot_dimension_numbers<[1], [0], [0], [1], [0, 0, 1, 1], [], []>} : vector<128x256xbf16>, vector<256x256xbf16>, vector<128x256xf32> -> vector<128x256xf32>
    %45 = arith.addf %40, %44 : vector<128x256xf32>
    %46 = vector.shape_cast %45 : vector<128x256xf32> to vector<8x16x256xf32>
    %47 = arith.truncf %46 : vector<8x16x256xf32> to vector<8x16x256xbf16>
    %c0_17 = arith.constant 0 : index
    %c0_18 = arith.constant 0 : index
    %c0_19 = arith.constant 0 : index
    %48 = vector.load %arg5[%c0_17, %c0_18, %c0_19] : memref<8x16x256xbf16, #tpu.memory_space<vmem>>, vector<8x16x256xbf16>
    tpu.vector_store %arg5[%c0_17, %c0_18, %c0_19], %47 {strides = array<i32>} : memref<8x16x256xbf16, #tpu.memory_space<vmem>>, vector<8x16x256xbf16>,
    %cst_20 = arith.constant dense<0.000000e+00> : vector<256xf32>
    %49 = vector.multi_reduction <add>, %45, %cst_20 [0] : vector<128x256xf32> to vector<256xf32>
    %50 = vector.shape_cast %49 : vector<256xf32> to vector<1x256xf32>
    %c0_21 = arith.constant 0 : index
    %c0_22 = arith.constant 0 : index
    %c0_23 = arith.constant 0 : index
    %51 = vector.load %arg6[%c0_21, %c0_22, %c0_23] : memref<1x2x256xf32, #tpu.memory_space<vmem>>, vector<1x1x256xf32>
    %52 = vector.shape_cast %51 : vector<1x1x256xf32> to vector<1x256xf32>
    %53 = vector.shape_cast %50 : vector<1x256xf32> to vector<1x1x256xf32>
    tpu.vector_store %arg6[%c0_21, %c0_22, %c0_23], %53 {strides = array<i32>} : memref<1x2x256xf32, #tpu.memory_space<vmem>>, vector<1x1x256xf32>,
    %54 = arith.mulf %45, %45 : vector<128x256xf32>
    %cst_24 = arith.constant dense<0.000000e+00> : vector<256xf32>
    %55 = vector.multi_reduction <add>, %54, %cst_24 [0] : vector<128x256xf32> to vector<256xf32>
    %56 = vector.shape_cast %55 : vector<256xf32> to vector<1x256xf32>
    %c0_25 = arith.constant 0 : index
    %c1_26 = arith.constant 1 : index
    %c0_27 = arith.constant 0 : index
    %57 = vector.load %arg6[%c0_25, %c1_26, %c0_27] : memref<1x2x256xf32, #tpu.memory_space<vmem>>, vector<1x1x256xf32>
    %58 = vector.shape_cast %57 : vector<1x1x256xf32> to vector<1x256xf32>
    %59 = vector.shape_cast %56 : vector<1x256xf32> to vector<1x1x256xf32>
    tpu.vector_store %arg6[%c0_25, %c1_26, %c0_27], %59 {strides = array<i32>} : memref<1x2x256xf32, #tpu.memory_space<vmem>>, vector<1x1x256xf32>,
    return
  }
  func.func @transform_0(%arg0: i32) -> (i32, i32, i32) {
    %c0_i32 = arith.constant 0 : i32
    %c0_i32_0 = arith.constant 0 : i32
    %c0_i32_1 = arith.constant 0 : i32
    return %arg0, %c0_i32, %c0_i32_0 : i32, i32, i32
  }
  func.func @transform_1(%arg0: i32) -> (i32, i32, i32) {
    %c0_i32 = arith.constant 0 : i32
    %c0_i32_0 = arith.constant 0 : i32
    %c0_i32_1 = arith.constant 0 : i32
    %c0_i32_2 = arith.constant 0 : i32
    return %c0_i32, %c0_i32_0, %c0_i32_1 : i32, i32, i32
  }
  func.func @transform_2(%arg0: i32) -> (i32, i32) {
    %c0_i32 = arith.constant 0 : i32
    %c0_i32_0 = arith.constant 0 : i32
    %c0_i32_1 = arith.constant 0 : i32
    return %c0_i32, %c0_i32_0 : i32, i32
  }
  func.func @transform_3(%arg0: i32) -> (i32, i32) {
    %c0_i32 = arith.constant 0 : i32
    %c0_i32_0 = arith.constant 0 : i32
    %c0_i32_1 = arith.constant 0 : i32
    return %c0_i32, %c0_i32_0 : i32, i32
  }
  func.func @transform_4(%arg0: i32) -> (i32, i32, i32) {
    %c0_i32 = arith.constant 0 : i32
    %c0_i32_0 = arith.constant 0 : i32
    %c0_i32_1 = arith.constant 0 : i32
    return %arg0, %c0_i32, %c0_i32_0 : i32, i32, i32
  }
  func.func @transform_5(%arg0: i32) -> (i32, i32, i32) {
    %c0_i32 = arith.constant 0 : i32
    %c0_i32_0 = arith.constant 0 : i32
    %c0_i32_1 = arith.constant 0 : i32
    return %arg0, %c0_i32, %c0_i32_0 : i32, i32, i32
  }
}

module attributes {stable_mosaic.version = 11 : i64} {
  func.func @_conv_pass_kernel(%arg0: i32, %arg1: memref<8x16x256xbf16, #tpu.memory_space<vmem>>, %arg2: memref<3x256x256xbf16, #tpu.memory_space<vmem>>, %arg3: memref<1x256xf32, #tpu.memory_space<vmem>>, %arg4: memref<1x256xf32, #tpu.memory_space<vmem>>, %arg5: memref<8x16x256xbf16, #tpu.memory_space<vmem>>, %arg6: memref<1x2x256xf32, #tpu.memory_space<vmem>>) attributes {dimension_semantics = [#tpu.dimension_semantics<parallel>], iteration_bounds = array<i64: 4>, scalar_prefetch = 0 : i64, scratch_operands = 0 : i64, tpu.core_type = #tpu.core_type<tc>, window_params = [{transform_indices = @transform_0, window_bounds = array<i64: 8, 16, 256>}, {pipeline_mode = #tpu.pipeline_mode<synchronous>, transform_indices = @transform_1, window_bounds = array<i64: 3, 256, 256>}, {pipeline_mode = #tpu.pipeline_mode<synchronous>, transform_indices = @transform_2, window_bounds = array<i64: 1, 256>}, {pipeline_mode = #tpu.pipeline_mode<synchronous>, transform_indices = @transform_3, window_bounds = array<i64: 1, 256>}, {transform_indices = @transform_4, window_bounds = array<i64: 8, 16, 256>}, {transform_indices = @transform_5, window_bounds = array<i64: 1, 2, 256>}]} {
    %c0 = arith.constant 0 : index
    %c0_0 = arith.constant 0 : index
    %c0_1 = arith.constant 0 : index
    %0 = vector.load %arg1[%c0, %c0_0, %c0_1] : memref<8x16x256xbf16, #tpu.memory_space<vmem>>, vector<8x16x256xbf16>
    %1 = arith.extf %0 : vector<8x16x256xbf16> to vector<8x16x256xf32>
    %2 = vector.shape_cast %1 : vector<8x16x256xf32> to vector<128x256xf32>
    %c0_2 = arith.constant 0 : index
    %c0_3 = arith.constant 0 : index
    %3 = vector.load %arg3[%c0_2, %c0_3] : memref<1x256xf32, #tpu.memory_space<vmem>>, vector<1x256xf32>
    %4 = vector.broadcast %3 : vector<1x256xf32> to vector<128x256xf32>
    %5 = arith.mulf %2, %4 : vector<128x256xf32>
    %c0_4 = arith.constant 0 : index
    %c0_5 = arith.constant 0 : index
    %6 = vector.load %arg4[%c0_4, %c0_5] : memref<1x256xf32, #tpu.memory_space<vmem>>, vector<1x256xf32>
    %7 = vector.broadcast %6 : vector<1x256xf32> to vector<128x256xf32>
    %8 = arith.addf %5, %7 : vector<128x256xf32>
    %cst = arith.constant 0.000000e+00 : f32
    %9 = vector.broadcast %cst : f32 to vector<128x256xf32>
    %10 = arith.maximumf %8, %9 : vector<128x256xf32>
    %11 = tpu.iota {dimensions = array<i32: 0>} : vector<128x1xi32>
    %c16_i32 = arith.constant 16 : i32
    %c0_i32 = arith.constant 0 : i32
    %12 = arith.cmpi eq, %c16_i32, %c0_i32 : i32
    %c1_i32 = arith.constant 1 : i32
    %13 = arith.select %12, %c1_i32, %c16_i32 : i32
    %14 = vector.broadcast %13 : i32 to vector<128x1xi32>
    %15 = arith.remsi %11, %14 : vector<128x1xi32>
    %c0_i32_6 = arith.constant 0 : i32
    %16 = vector.broadcast %c0_i32_6 : i32 to vector<128x1xi32>
    %17 = arith.cmpi ne, %15, %16 : vector<128x1xi32>
    %c0_i32_7 = arith.constant 0 : i32
    %18 = vector.broadcast %c0_i32_7 : i32 to vector<128x1xi32>
    %19 = arith.cmpi slt, %15, %18 : vector<128x1xi32>
    %c0_i32_8 = arith.constant 0 : i32
    %20 = arith.cmpi slt, %13, %c0_i32_8 : i32
    %21 = vector.broadcast %20 : i1 to vector<128x1xi1>
    %22 = vector.broadcast %21 : vector<128x1xi1> to vector<128x1xi1>
    %23 = arith.xori %19, %22 : vector<128x1xi1>
    %24 = arith.andi %23, %17 : vector<128x1xi1>
    %25 = vector.broadcast %13 : i32 to vector<128x1xi32>
    %26 = arith.addi %15, %25 : vector<128x1xi32>
    %27 = arith.select %24, %26, %15 : vector<128x1xi1>, vector<128x1xi32>
    %cst_9 = arith.constant 0.000000e+00 : f32
    %28 = vector.broadcast %cst_9 : f32 to vector<128x256xf32>
    %c0_i32_10 = arith.constant 0 : i32
    %29 = vector.broadcast %c0_i32_10 : i32 to vector<128x1xi32>
    %30 = arith.cmpi ne, %27, %29 : vector<128x1xi32>
    %c1_i32_11 = arith.constant 1 : i32
    %31 = tpu.dynamic_rotate %10 by %c1_i32_11 dim 0 : vector<128x256xf32>, i32 -> vector<128x256xf32>
    %32 = vector.shape_cast %30 : vector<128x1xi1> to vector<128x1xi1>
    %33 = vector.broadcast %32 : vector<128x1xi1> to vector<128x256xi1>
    %34 = arith.select %33, %31, %28 : vector<128x256xi1>, vector<128x256xf32>
    %c15_i32 = arith.constant 15 : i32
    %35 = vector.broadcast %c15_i32 : i32 to vector<128x1xi32>
    %36 = arith.cmpi ne, %27, %35 : vector<128x1xi32>
    %c127_i32 = arith.constant 127 : i32
    %37 = tpu.dynamic_rotate %10 by %c127_i32 dim 0 : vector<128x256xf32>, i32 -> vector<128x256xf32>
    %38 = vector.shape_cast %36 : vector<128x1xi1> to vector<128x1xi1>
    %39 = vector.broadcast %38 : vector<128x1xi1> to vector<128x256xi1>
    %40 = arith.select %39, %37, %28 : vector<128x256xi1>, vector<128x256xf32>
    %41 = arith.truncf %10 : vector<128x256xf32> to vector<128x256xbf16>
    %c1 = arith.constant 1 : index
    %c0_12 = arith.constant 0 : index
    %c0_13 = arith.constant 0 : index
    %42 = vector.load %arg2[%c1, %c0_12, %c0_13] : memref<3x256x256xbf16, #tpu.memory_space<vmem>>, vector<1x256x256xbf16>
    %43 = vector.shape_cast %42 : vector<1x256x256xbf16> to vector<256x256xbf16>
    %cst_14 = arith.constant dense<0.000000e+00> : vector<128x256xf32>
    %44 = tpu.matmul %41, %43, %cst_14 {dimension_numbers = #tpu.dot_dimension_numbers<[1], [0], [0], [1], [0, 0, 1, 1], [], []>} : vector<128x256xbf16>, vector<256x256xbf16>, vector<128x256xf32> -> vector<128x256xf32>
    %45 = arith.truncf %34 : vector<128x256xf32> to vector<128x256xbf16>
    %c0_15 = arith.constant 0 : index
    %c0_16 = arith.constant 0 : index
    %c0_17 = arith.constant 0 : index
    %46 = vector.load %arg2[%c0_15, %c0_16, %c0_17] : memref<3x256x256xbf16, #tpu.memory_space<vmem>>, vector<1x256x256xbf16>
    %47 = vector.shape_cast %46 : vector<1x256x256xbf16> to vector<256x256xbf16>
    %cst_18 = arith.constant dense<0.000000e+00> : vector<128x256xf32>
    %48 = tpu.matmul %45, %47, %cst_18 {dimension_numbers = #tpu.dot_dimension_numbers<[1], [0], [0], [1], [0, 0, 1, 1], [], []>} : vector<128x256xbf16>, vector<256x256xbf16>, vector<128x256xf32> -> vector<128x256xf32>
    %49 = arith.addf %44, %48 : vector<128x256xf32>
    %50 = arith.truncf %40 : vector<128x256xf32> to vector<128x256xbf16>
    %c2 = arith.constant 2 : index
    %c0_19 = arith.constant 0 : index
    %c0_20 = arith.constant 0 : index
    %51 = vector.load %arg2[%c2, %c0_19, %c0_20] : memref<3x256x256xbf16, #tpu.memory_space<vmem>>, vector<1x256x256xbf16>
    %52 = vector.shape_cast %51 : vector<1x256x256xbf16> to vector<256x256xbf16>
    %cst_21 = arith.constant dense<0.000000e+00> : vector<128x256xf32>
    %53 = tpu.matmul %50, %52, %cst_21 {dimension_numbers = #tpu.dot_dimension_numbers<[1], [0], [0], [1], [0, 0, 1, 1], [], []>} : vector<128x256xbf16>, vector<256x256xbf16>, vector<128x256xf32> -> vector<128x256xf32>
    %54 = arith.addf %49, %53 : vector<128x256xf32>
    %55 = vector.shape_cast %54 : vector<128x256xf32> to vector<8x16x256xf32>
    %56 = arith.truncf %55 : vector<8x16x256xf32> to vector<8x16x256xbf16>
    %c0_22 = arith.constant 0 : index
    %c0_23 = arith.constant 0 : index
    %c0_24 = arith.constant 0 : index
    %57 = vector.load %arg5[%c0_22, %c0_23, %c0_24] : memref<8x16x256xbf16, #tpu.memory_space<vmem>>, vector<8x16x256xbf16>
    tpu.vector_store %arg5[%c0_22, %c0_23, %c0_24], %56 {strides = array<i32>} : memref<8x16x256xbf16, #tpu.memory_space<vmem>>, vector<8x16x256xbf16>,
    %cst_25 = arith.constant dense<0.000000e+00> : vector<256xf32>
    %58 = vector.multi_reduction <add>, %54, %cst_25 [0] : vector<128x256xf32> to vector<256xf32>
    %59 = vector.shape_cast %58 : vector<256xf32> to vector<1x256xf32>
    %c0_26 = arith.constant 0 : index
    %c0_27 = arith.constant 0 : index
    %c0_28 = arith.constant 0 : index
    %60 = vector.load %arg6[%c0_26, %c0_27, %c0_28] : memref<1x2x256xf32, #tpu.memory_space<vmem>>, vector<1x1x256xf32>
    %61 = vector.shape_cast %60 : vector<1x1x256xf32> to vector<1x256xf32>
    %62 = vector.shape_cast %59 : vector<1x256xf32> to vector<1x1x256xf32>
    tpu.vector_store %arg6[%c0_26, %c0_27, %c0_28], %62 {strides = array<i32>} : memref<1x2x256xf32, #tpu.memory_space<vmem>>, vector<1x1x256xf32>,
    %63 = arith.mulf %54, %54 : vector<128x256xf32>
    %cst_29 = arith.constant dense<0.000000e+00> : vector<256xf32>
    %64 = vector.multi_reduction <add>, %63, %cst_29 [0] : vector<128x256xf32> to vector<256xf32>
    %65 = vector.shape_cast %64 : vector<256xf32> to vector<1x256xf32>
    %c0_30 = arith.constant 0 : index
    %c1_31 = arith.constant 1 : index
    %c0_32 = arith.constant 0 : index
    %66 = vector.load %arg6[%c0_30, %c1_31, %c0_32] : memref<1x2x256xf32, #tpu.memory_space<vmem>>, vector<1x1x256xf32>
    %67 = vector.shape_cast %66 : vector<1x1x256xf32> to vector<1x256xf32>
    %68 = vector.shape_cast %65 : vector<1x256xf32> to vector<1x1x256xf32>
    tpu.vector_store %arg6[%c0_30, %c1_31, %c0_32], %68 {strides = array<i32>} : memref<1x2x256xf32, #tpu.memory_space<vmem>>, vector<1x1x256xf32>,
    return
  }
  func.func @transform_0(%arg0: i32) -> (i32, i32, i32) {
    %c0_i32 = arith.constant 0 : i32
    %c0_i32_0 = arith.constant 0 : i32
    %c0_i32_1 = arith.constant 0 : i32
    return %arg0, %c0_i32, %c0_i32_0 : i32, i32, i32
  }
  func.func @transform_1(%arg0: i32) -> (i32, i32, i32) {
    %c0_i32 = arith.constant 0 : i32
    %c0_i32_0 = arith.constant 0 : i32
    %c0_i32_1 = arith.constant 0 : i32
    %c0_i32_2 = arith.constant 0 : i32
    return %c0_i32, %c0_i32_0, %c0_i32_1 : i32, i32, i32
  }
  func.func @transform_2(%arg0: i32) -> (i32, i32) {
    %c0_i32 = arith.constant 0 : i32
    %c0_i32_0 = arith.constant 0 : i32
    %c0_i32_1 = arith.constant 0 : i32
    return %c0_i32, %c0_i32_0 : i32, i32
  }
  func.func @transform_3(%arg0: i32) -> (i32, i32) {
    %c0_i32 = arith.constant 0 : i32
    %c0_i32_0 = arith.constant 0 : i32
    %c0_i32_1 = arith.constant 0 : i32
    return %c0_i32, %c0_i32_0 : i32, i32
  }
  func.func @transform_4(%arg0: i32) -> (i32, i32, i32) {
    %c0_i32 = arith.constant 0 : i32
    %c0_i32_0 = arith.constant 0 : i32
    %c0_i32_1 = arith.constant 0 : i32
    return %arg0, %c0_i32, %c0_i32_0 : i32, i32, i32
  }
  func.func @transform_5(%arg0: i32) -> (i32, i32, i32) {
    %c0_i32 = arith.constant 0 : i32
    %c0_i32_0 = arith.constant 0 : i32
    %c0_i32_1 = arith.constant 0 : i32
    return %arg0, %c0_i32, %c0_i32_0 : i32, i32, i32
  }
}

module attributes {stable_mosaic.version = 11 : i64} {
  func.func @_bn_add_relu_kernel(%arg0: i32, %arg1: memref<8x16x256xbf16, #tpu.memory_space<vmem>>, %arg2: memref<8x16x256xf32, #tpu.memory_space<vmem>>, %arg3: memref<1x256xf32, #tpu.memory_space<vmem>>, %arg4: memref<1x256xf32, #tpu.memory_space<vmem>>, %arg5: memref<8x16x256xf32, #tpu.memory_space<vmem>>) attributes {dimension_semantics = [#tpu.dimension_semantics<parallel>], iteration_bounds = array<i64: 4>, scalar_prefetch = 0 : i64, scratch_operands = 0 : i64, tpu.core_type = #tpu.core_type<tc>, window_params = [{transform_indices = @transform_0, window_bounds = array<i64: 8, 16, 256>}, {transform_indices = @transform_1, window_bounds = array<i64: 8, 16, 256>}, {pipeline_mode = #tpu.pipeline_mode<synchronous>, transform_indices = @transform_2, window_bounds = array<i64: 1, 256>}, {pipeline_mode = #tpu.pipeline_mode<synchronous>, transform_indices = @transform_3, window_bounds = array<i64: 1, 256>}, {transform_indices = @transform_4, window_bounds = array<i64: 8, 16, 256>}]} {
    %c0 = arith.constant 0 : index
    %c0_0 = arith.constant 0 : index
    %c0_1 = arith.constant 0 : index
    %0 = vector.load %arg1[%c0, %c0_0, %c0_1] : memref<8x16x256xbf16, #tpu.memory_space<vmem>>, vector<8x16x256xbf16>
    %1 = arith.extf %0 : vector<8x16x256xbf16> to vector<8x16x256xf32>
    %c0_2 = arith.constant 0 : index
    %c0_3 = arith.constant 0 : index
    %2 = vector.load %arg3[%c0_2, %c0_3] : memref<1x256xf32, #tpu.memory_space<vmem>>, vector<1x256xf32>
    %3 = vector.shape_cast %2 : vector<1x256xf32> to vector<1x1x256xf32>
    %4 = vector.broadcast %3 : vector<1x1x256xf32> to vector<8x16x256xf32>
    %5 = arith.mulf %1, %4 : vector<8x16x256xf32>
    %c0_4 = arith.constant 0 : index
    %c0_5 = arith.constant 0 : index
    %6 = vector.load %arg4[%c0_4, %c0_5] : memref<1x256xf32, #tpu.memory_space<vmem>>, vector<1x256xf32>
    %7 = vector.shape_cast %6 : vector<1x256xf32> to vector<1x1x256xf32>
    %8 = vector.broadcast %7 : vector<1x1x256xf32> to vector<8x16x256xf32>
    %9 = arith.addf %5, %8 : vector<8x16x256xf32>
    %c0_6 = arith.constant 0 : index
    %c0_7 = arith.constant 0 : index
    %c0_8 = arith.constant 0 : index
    %10 = vector.load %arg2[%c0_6, %c0_7, %c0_8] : memref<8x16x256xf32, #tpu.memory_space<vmem>>, vector<8x16x256xf32>
    %11 = arith.addf %9, %10 : vector<8x16x256xf32>
    %cst = arith.constant 0.000000e+00 : f32
    %12 = vector.broadcast %cst : f32 to vector<8x16x256xf32>
    %13 = arith.maximumf %11, %12 : vector<8x16x256xf32>
    %c0_9 = arith.constant 0 : index
    %c0_10 = arith.constant 0 : index
    %c0_11 = arith.constant 0 : index
    %14 = vector.load %arg5[%c0_9, %c0_10, %c0_11] : memref<8x16x256xf32, #tpu.memory_space<vmem>>, vector<8x16x256xf32>
    tpu.vector_store %arg5[%c0_9, %c0_10, %c0_11], %13 {strides = array<i32>} : memref<8x16x256xf32, #tpu.memory_space<vmem>>, vector<8x16x256xf32>,
    return
  }
  func.func @transform_0(%arg0: i32) -> (i32, i32, i32) {
    %c0_i32 = arith.constant 0 : i32
    %c0_i32_0 = arith.constant 0 : i32
    %c0_i32_1 = arith.constant 0 : i32
    return %arg0, %c0_i32, %c0_i32_0 : i32, i32, i32
  }
  func.func @transform_1(%arg0: i32) -> (i32, i32, i32) {
    %c0_i32 = arith.constant 0 : i32
    %c0_i32_0 = arith.constant 0 : i32
    %c0_i32_1 = arith.constant 0 : i32
    return %arg0, %c0_i32, %c0_i32_0 : i32, i32, i32
  }
  func.func @transform_2(%arg0: i32) -> (i32, i32) {
    %c0_i32 = arith.constant 0 : i32
    %c0_i32_0 = arith.constant 0 : i32
    %c0_i32_1 = arith.constant 0 : i32
    return %c0_i32, %c0_i32_0 : i32, i32
  }
  func.func @transform_3(%arg0: i32) -> (i32, i32) {
    %c0_i32 = arith.constant 0 : i32
    %c0_i32_0 = arith.constant 0 : i32
    %c0_i32_1 = arith.constant 0 : i32
    return %c0_i32, %c0_i32_0 : i32, i32
  }
  func.func @transform_4(%arg0: i32) -> (i32, i32, i32) {
    %c0_i32 = arith.constant 0 : i32
    %c0_i32_0 = arith.constant 0 : i32
    %c0_i32_1 = arith.constant 0 : i32
    return %arg0, %c0_i32, %c0_i32_0 : i32, i32, i32
  }
}

</mosaic_0001>

<llo_original>
// kernel: tile.48
$region0: #{tile.48}
  #allocation0 [shape = 's32[1]{0}', space=sflag, size = 0x4, scoped, tag = 'scoped memory for tile.48']
  %s0 = inlined_call_operand.vmem [shape: f32[16], index: 0, kind: input, shape index: {}]
  %s1 = inlined_call_operand.vmem [shape: f32[16,16], index: 1, kind: output, shape index: {}]
  // Predicated region
  $region2: #{tile.48} parent=0 // pred_check
    _
  $region3: #{tile.48} parent=0 // pred_check_branch
    %3 = sbr.rel (0) target = $region5
  $region4: #{tile.48} parent=0 // pred_region
    _
  $region5: #{tile.48} parent=0 // pred_fallthru
    _
  %v4 = vld [vmem:[%s0] ss:$0 sm:$0xff]
  %5 = vst [vmem:[%s1] sm:$0xff] %v4
  %s6 = scalar_lea.vmem %s1, 8
  %7 = vst [vmem:[%s6] sm:$0xff] %v4

// kernel: tile.49
$region0: #{tile.49}
  %s0 = inlined_call_operand.vmem [shape: f32[16,16], index: 0, kind: input, shape index: {}]
  %s1 = inlined_call_operand.vmem [shape: f32[1,256], index: 1, kind: output, shape index: {}]
  $region1: #{tile.49} parent=0
    #allocation0 [shape = 'u8[8192]{0}', space=vmem, size = 0x2000, scoped, tag = 'scoped mem for output reshape']
    %s2 = smov 3
    %v3 = vld [vmem:[%s0] ss:$8 sm:%s2]
    %vm4 = vcmask 130048
    %5 = vst.msk [vmem:[#allocation0] ss:$8 sm:$0x3] %vm4, %v3
    %s6 = scalar_lea.vmem %s0, 7
    %s7 = smov 3
    %v8 = vld [vmem:[%s6] ss:$8 sm:%s7]
    %9 = vrot.lane.b32.xlu0 %v8, 112
    %v10 = vpop.permute.xlu0 %9
    %vm11 = vcmask 1048448
    %12 = vst.msk [vmem:[#allocation0] ss:$8 sm:$0x3] %vm11, %v10
    %s13 = scalar_lea.vmem %s0, 6
    %s14 = smov 3
    %v15 = vld [vmem:[%s13] ss:$8 sm:%s14]
    %16 = vrot.lane.b32.xlu0 %v15, 96
    %v17 = vpop.permute.xlu0 %16
    %vm18 = vcmask 917248
    %19 = vst.msk [vmem:[#allocation0] ss:$8 sm:$0x3] %vm18, %v17
    %s20 = scalar_lea.vmem %s0, 5
    %s21 = smov 3
    %v22 = vld [vmem:[%s20] ss:$8 sm:%s21]
    %23 = vrot.lane.b32.xlu0 %v22, 80
    %v24 = vpop.permute.xlu0 %23
    %vm25 = vcmask 786048
    %26 = vst.msk [vmem:[#allocation0] ss:$8 sm:$0x3] %vm25, %v24
    %s27 = scalar_lea.vmem %s0, 4
    %s28 = smov 3
    %v29 = vld [vmem:[%s27] ss:$8 sm:%s28]
    %30 = vrot.lane.b32.xlu0 %v29, 64
    %v31 = vpop.permute.xlu0 %30
    %vm32 = vcmask 654848
    %33 = vst.msk [vmem:[#allocation0] ss:$8 sm:$0x3] %vm32, %v31
    %s34 = scalar_lea.vmem %s0, 3
    %s35 = smov 3
    %v36 = vld [vmem:[%s34] ss:$8 sm:%s35]
    %37 = vrot.lane.b32.xlu0 %v36, 48
    %v38 = vpop.permute.xlu0 %37
    %vm39 = vcmask 523648
    %40 = vst.msk [vmem:[#allocation0] ss:$8 sm:$0x3] %vm39, %v38
    %s41 = scalar_lea.vmem %s0, 2
    %s42 = smov 3
    %v43 = vld [vmem:[%s41] ss:$8 sm:%s42]
    %44 = vrot.lane.b32.xlu0 %v43, 32
    %v45 = vpop.permute.xlu0 %44
    %vm46 = vcmask 392448
    %47 = vst.msk [vmem:[#allocation0] ss:$8 sm:$0x3] %vm46, %v45
    %s48 = scalar_lea.vmem %s0, 1
    %s49 = smov 3
    %v50 = vld [vmem:[%s48] ss:$8 sm:%s49]
    %51 = vrot.lane.b32.xlu0 %v50, 16
    %v52 = vpop.permute.xlu0 %51
    %vm53 = vcmask 261248
    %54 = vst.msk [vmem:[#allocation0] ss:$8 sm:$0x3] %vm53, %v52
    %s56 = ssub.s32 2, 1
    %v57 = vld [vmem:[#allocation0] sm:%s56]
    %s59 = ssub.s32 2, 1
    %60 = vst [vmem:[%s1] sm:%s59] %v57
    %s61 = scalar_lea.vmem [#allocation0], 8
    %v62 = vld [vmem:[%s61] sm:%s56]
    %s64 = ssub.s32 2, 1
    %s65 = scalar_lea.vmem %s1, 1
    %66 = vst [vmem:[%s65] sm:%s64] %v62

// kernel: forward_layer.6
$region0: #{forward_layer.6}
  #allocation0 [shape = 'u32[]', space=smem, size = 0x4, offset = 0x4, fixed_abs, tag = 'smem constant byte address 0x4 - core index']
  #allocation1 [shape = 'u32[72,128]{1,0:T(1,128)}', space=vmem, size = 0x9000, scoped, tag = 'internal scratch']
  %s0 = inlined_call_operand.vmem [shape: f32[32,16,256], index: 0, kind: input, shape index: {}]
  %s1 = inlined_call_operand.vmem [shape: bf16[3,256,256], index: 1, kind: input, shape index: {}]
  %s2 = inlined_call_operand.vmem [shape: f32[1,256], index: 2, kind: input, shape index: {}, may-alias: {2,3}]
  %s3 = inlined_call_operand.vmem [shape: f32[1,256], index: 3, kind: input, shape index: {}, may-alias: {2,3}]
  %s4 = inlined_call_operand.vmem [shape: bf16[32,16,256], index: 4, kind: output, shape index: {0}]
  %s5 = inlined_call_operand.vmem [shape: f32[4,2,256], index: 5, kind: output, shape index: {1}]
  %6 = xla_tuple %s4, %s5
  %s7 = sld [smem:[#allocation0]]
  $region57: #{forward_layer.6} parent=0
    _
  %s9 = ssub.s32 1, %s7
  %s10 = scalar_select 0, %s9, %s7
  loop: start=0, step=1, limit=6
  $region2: #{forward_layer.6} parent=0 // loop_pre_header
    _
  $region3: #{forward_layer.6} parent=0 // loop_header
    %s12 = sphi 0, %s16
    %p13 = scmp.ge.s32.totalorder %s12, 6
    %s22 = sphi 0, %s24
    %s25 = sphi 0, %s22
    %s26 = sphi 0, %s25
    %s42 = sphi 0, %s26
    %s46 = sphi 0, %s46
    %s48 = sphi 0, %s46
    %s49 = sphi 0, %s48
    %s63 = sphi 0, %s49
    %s67 = sphi 0, %s67
    %s69 = sphi 0, %s67
    %s70 = sphi 0, %s69
    %s84 = sphi 0, %s70
    %s88 = sphi 0, %s88
    %s90 = sphi 0, %s88
    %s91 = sphi 0, %s90
    %s105 = sphi 0, %s91
    %s111 = sphi 0, %s113
    %s114 = sphi 0, %s111
    %s115 = sphi 0, %s114
    %s131 = sphi 0, %s115
    %s137 = sphi 0, %s139
    %s140 = sphi 0, %s137
    %s141 = sphi 0, %s140
    %s157 = sphi 0, %s141
  $region4: #{forward_layer.6} parent=0 // loop_header_branch
    %15 = sbr.rel (%p13) target = $region8
  $region5: #{forward_layer.6} parent=0 // loop_body
    %s17 = ssub.s32 %s12, 1
    %s18 = ssub.s32 %s12, 2
    %s19 = sadd.s32 %s12, 1
    %s20 = ssub.s32 %s12, %s19
    %p21 = scmp.eq.s32.totalorder %s20, 0
    %s23 = sadd.s32 %s22, 1
    %s24 = scalar_select %p21, %s22, %s23
    %p27 = pneg %p21
    %p28 = scmp.eq.s32.totalorder %s12, 3
    %p29 = por %p27, %p28
    %p30 = scmp.ne.s32.totalorder %s22, %s25
    %p31 = scmp.eq.s32.totalorder %s12, 0
    %p32 = por %p30, %p31
    %p33 = scmp.ne.s32.totalorder %s22, %s25
    %p34 = scmp.eq.s32.totalorder %s17, 3
    %p35 = por %p33, %p34
    %p36 = scmp.ne.s32.totalorder %s25, %s26
    %p37 = scmp.eq.s32.totalorder %s17, 0
    %p38 = por %p36, %p37
    %p39 = scmp.ne.s32.totalorder %s25, %s26
    %p40 = scmp.eq.s32.totalorder %s18, 3
    %p41 = por %p39, %p40
    %p43 = scmp.ne.s32.totalorder %s26, %s42
    %p44 = scmp.eq.s32.totalorder %s18, 0
    %p45 = por %p43, %p44
    %s47 = sadd.s32 %s46, 1
    %p50 = scmp.eq.s32.totalorder %s12, 3
    %p51 = scmp.ne.s32.totalorder %s46, %s48
    %p52 = scmp.eq.s32.totalorder %s12, 0
    %p53 = por %p51, %p52
    %p54 = scmp.ne.s32.totalorder %s46, %s48
    %p55 = scmp.eq.s32.totalorder %s17, 3
    %p56 = por %p54, %p55
    %p57 = scmp.ne.s32.totalorder %s48, %s49
    %p58 = scmp.eq.s32.totalorder %s17, 0
    %p59 = por %p57, %p58
    %p60 = scmp.ne.s32.totalorder %s48, %s49
    %p61 = scmp.eq.s32.totalorder %s18, 3
    %p62 = por %p60, %p61
    %p64 = scmp.ne.s32.totalorder %s49, %s63
    %p65 = scmp.eq.s32.totalorder %s18, 0
    %p66 = por %p64, %p65
    %s68 = sadd.s32 %s67, 1
    %p71 = scmp.eq.s32.totalorder %s12, 3
    %p72 = scmp.ne.s32.totalorder %s67, %s69
    %p73 = scmp.eq.s32.totalorder %s12, 0
    %p74 = por %p72, %p73
    %p75 = scmp.ne.s32.totalorder %s67, %s69
    %p76 = scmp.eq.s32.totalorder %s17, 3
    %p77 = por %p75, %p76
    %p78 = scmp.ne.s32.totalorder %s69, %s70
    %p79 = scmp.eq.s32.totalorder %s17, 0
    %p80 = por %p78, %p79
    %p81 = scmp.ne.s32.totalorder %s69, %s70
    %p82 = scmp.eq.s32.totalorder %s18, 3
    %p83 = por %p81, %p82
    %p85 = scmp.ne.s32.totalorder %s70, %s84
    %p86 = scmp.eq.s32.totalorder %s18, 0
    %p87 = por %p85, %p86
    %s89 = sadd.s32 %s88, 1
    %p92 = scmp.eq.s32.totalorder %s12, 3
    %p93 = scmp.ne.s32.totalorder %s88, %s90
    %p94 = scmp.eq.s32.totalorder %s12, 0
    %p95 = por %p93, %p94
    %p96 = scmp.ne.s32.totalorder %s88, %s90
    %p97 = scmp.eq.s32.totalorder %s17, 3
    %p98 = por %p96, %p97
    %p99 = scmp.ne.s32.totalorder %s90, %s91
    %p100 = scmp.eq.s32.totalorder %s17, 0
    %p101 = por %p99, %p100
    %p102 = scmp.ne.s32.totalorder %s90, %s91
    %p103 = scmp.eq.s32.totalorder %s18, 3
    %p104 = por %p102, %p103
    %p106 = scmp.ne.s32.totalorder %s91, %s105
    %p107 = scmp.eq.s32.totalorder %s18, 0
    %p108 = por %p106, %p107
    %s109 = ssub.s32 %s12, %s19
    %p110 = scmp.eq.s32.totalorder %s109, 0
    %s112 = sadd.s32 %s111, 1
    %s113 = scalar_select %p110, %s111, %s112
    %p116 = pneg %p110
    %p117 = scmp.eq.s32.totalorder %s12, 3
    %p118 = por %p116, %p117
    %p119 = scmp.ne.s32.totalorder %s111, %s114
    %p120 = scmp.eq.s32.totalorder %s12, 0
    %p121 = por %p119, %p120
    %p122 = scmp.ne.s32.totalorder %s111, %s114
    %p123 = scmp.eq.s32.totalorder %s17, 3
    %p124 = por %p122, %p123
    %p125 = scmp.ne.s32.totalorder %s114, %s115
    %p126 = scmp.eq.s32.totalorder %s17, 0
    %p127 = por %p125, %p126
    %p128 = scmp.ne.s32.totalorder %s114, %s115
    %p129 = scmp.eq.s32.totalorder %s18, 3
    %p130 = por %p128, %p129
    %p132 = scmp.ne.s32.totalorder %s115, %s131
    %p133 = scmp.eq.s32.totalorder %s18, 0
    %p134 = por %p132, %p133
    %s135 = ssub.s32 %s12, %s19
    %p136 = scmp.eq.s32.totalorder %s135, 0
    %s138 = sadd.s32 %s137, 1
    %s139 = scalar_select %p136, %s137, %s138
    %p142 = pneg %p136
    %p143 = scmp.eq.s32.totalorder %s12, 3
    %p144 = por %p142, %p143
    %p145 = scmp.ne.s32.totalorder %s137, %s140
    %p146 = scmp.eq.s32.totalorder %s12, 0
    %p147 = por %p145, %p146
    %p148 = scmp.ne.s32.totalorder %s137, %s140
    %p149 = scmp.eq.s32.totalorder %s17, 3
    %p150 = por %p148, %p149
    %p151 = scmp.ne.s32.totalorder %s140, %s141
    %p152 = scmp.eq.s32.totalorder %s17, 0
    %p153 = por %p151, %p152
    %p154 = scmp.ne.s32.totalorder %s140, %s141
    %p155 = scmp.eq.s32.totalorder %s18, 3
    %p156 = por %p154, %p155
    %p158 = scmp.ne.s32.totalorder %s141, %s157
    %p159 = scmp.eq.s32.totalorder %s18, 0
    %p160 = por %p158, %p159
    %p161 = scmp.le.s32.totalorder 1, %s12
    %p162 = scmp.lt.s32.totalorder %s12, 5
    %p163 = pnand %p161, %p162
    %p164 = pneg %p163
    // Predicated region
    $region9: #{forward_layer.6} parent=5 // pred_check
      _
    $region10: #{forward_layer.6} parent=5 // pred_check_branch
      %166 = sbr.rel (%p163) target = $region12
    $region11: #{forward_layer.6} parent=5 // pred_region
      %s167 = ssub.s32 %s12, 1
      // Predicated region
      $region13: #{forward_layer.6} parent=11 // pred_check
        %p168 = pneg %p59
      $region14: #{forward_layer.6} parent=11 // pred_check_branch
        %170 = sbr.rel (%p168) target = $region16
      $region15: #{forward_layer.6} parent=11 // pred_region
        _
      $region16: #{forward_layer.6} parent=11 // pred_fallthru
        _
      // Predicated region
      $region17: #{forward_layer.6} parent=11 // pred_check
        %p171 = pneg %p80
      $region18: #{forward_layer.6} parent=11 // pred_check_branch
        %173 = sbr.rel (%p171) target = $region20
      $region19: #{forward_layer.6} parent=11 // pred_region
        _
      $region20: #{forward_layer.6} parent=11 // pred_fallthru
        _
      // Predicated region
      $region21: #{forward_layer.6} parent=11 // pred_check
        %p174 = pneg %p101
      $region22: #{forward_layer.6} parent=11 // pred_check_branch
        %176 = sbr.rel (%p174) target = $region24
      $region23: #{forward_layer.6} parent=11 // pred_region
        _
      $region24: #{forward_layer.6} parent=11 // pred_fallthru
        _
    $region12: #{forward_layer.6} parent=5 // pred_fallthru
      _
    %p177 = scmp.lt.s32.totalorder %s12, 4
    // Predicated region
    $region25: #{forward_layer.6} parent=5 // pred_check
      %p178 = pneg %p177
    $region26: #{forward_layer.6} parent=5 // pred_check_branch
      %180 = sbr.rel (%p178) target = $region28
    $region27: #{forward_layer.6} parent=5 // pred_region
      // Predicated region
      $region29: #{forward_layer.6} parent=27 // pred_check
        %p181 = pneg %p32
      $region30: #{forward_layer.6} parent=27 // pred_check_branch
        %183 = sbr.rel (%p181) target = $region32
      $region31: #{forward_layer.6} parent=27 // pred_region
        %s184 = smul.u32 8, %s12
        %p185 = scmp.lt.s32.totalorder %s184, 31
        %s186 = scalar_select %p185, %s184, 31
        %s187 = smul.addr %s186, 4
        %s188 = smul.addr %s187, 8
        %s189 = scalar_lea.vmem %s0, %s188
        %s190 = smul.u32 8, %s12
      $region32: #{forward_layer.6} parent=27 // pred_fallthru
        _
    $region28: #{forward_layer.6} parent=5 // pred_fallthru
      _
    %p191 = scmp.le.s32.totalorder 1, %s12
    %p192 = scmp.lt.s32.totalorder %s12, 5
    %p193 = pnand %p191, %p192
    %p194 = pneg %p193
    // Predicated region
    $region33: #{forward_layer.6} parent=5 // pred_check
      _
    $region34: #{forward_layer.6} parent=5 // pred_check_branch
      %196 = sbr.rel (%p193) target = $region36
    $region35: #{forward_layer.6} parent=5 // pred_region
      %s197 = ssub.s32 %s12, 1
      %s198 = smul.u32 8, %s17
      %p199 = scmp.lt.s32.totalorder %s198, 31
      %s200 = scalar_select %p199, %s198, 31
      %s201 = smul.addr %s200, 4
      %s202 = smul.addr %s201, 8
      %s203 = scalar_lea.vmem %s0, %s202
      %p204 = pneg %p38
      %p205 = pneg %p35
      %p206 = pneg %p59
      %p207 = pneg %p56
      %p208 = pneg %p80
      %p209 = pneg %p77
      %p210 = pneg %p101
      %p211 = pneg %p98
      %p212 = pneg %p127
      %p213 = pneg %p124
      %s214 = smul.u32 8, %s17
      %p215 = scmp.lt.s32.totalorder %s214, 31
      %s216 = scalar_select %p215, %s214, 31
      %s217 = smul.addr %s216, 4
      %s218 = smul.addr %s217, 4
      %s219 = scalar_lea.vmem %s4, %s218
      %p220 = pneg %p153
      %p221 = pneg %p150
      %p222 = scmp.lt.s32.totalorder %s17, 3
      %s223 = scalar_select %p222, %s17, 3
      %s224 = smul.addr %s223, 2
      %s225 = smul.addr %s224, 2
      %s226 = scalar_lea.vmem %s5, %s225
      %s227 = smul.u32 8, %s17
      %p228 = scmp.lt.s32.totalorder %s227, 31
      %s229 = scalar_select %p228, %s227, 31
      %s230 = smul.addr %s229, 4
      %s231 = smul.addr %s230, 8
      %s232 = scalar_lea.vmem %s0, %s231
      %s233 = smul.u32 8, %s17
      %s234 = smul.u32 8, %s17
      %p235 = scmp.lt.s32.totalorder %s234, 31
      %s236 = scalar_select %p235, %s234, 31
      %s237 = smul.addr %s236, 4
      %s238 = smul.addr %s237, 4
      %s239 = scalar_lea.vmem %s4, %s238
      %s240 = smul.u32 8, %s17
      %p241 = scmp.lt.s32.totalorder %s17, 3
      %s242 = scalar_select %p241, %s17, 3
      %s243 = smul.addr %s242, 2
      %s244 = smul.addr %s243, 2
      %s245 = scalar_lea.vmem %s5, %s244
      %v246 = vld [vmem:[%s232] sm:$0xff]
      %v247 = vld [vmem:[%s232 + $0x8] sm:$0xff]
      %v248 = vld [vmem:[%s232 + $0x10] sm:$0xff]
      %v249 = vld [vmem:[%s232 + $0x18] sm:$0xff]
      %v250 = vld [vmem:[%s232 + $0x20] sm:$0xff]
      %v251 = vld [vmem:[%s232 + $0x28] sm:$0xff]
      %v252 = vld [vmem:[%s232 + $0x30] sm:$0xff]
      %v253 = vld [vmem:[%s232 + $0x38] sm:$0xff]
      %v254 = vld [vmem:[%s232 + $0x40] sm:$0xff]
      %v255 = vld [vmem:[%s232 + $0x48] sm:$0xff]
      %v256 = vld [vmem:[%s232 + $0x50] sm:$0xff]
      %v257 = vld [vmem:[%s232 + $0x58] sm:$0xff]
      %v258 = vld [vmem:[%s232 + $0x60] sm:$0xff]
      %v259 = vld [vmem:[%s232 + $0x68] sm:$0xff]
      %v260 = vld [vmem:[%s232 + $0x70] sm:$0xff]
      %v261 = vld [vmem:[%s232 + $0x78] sm:$0xff]
      %v262 = vld [vmem:[%s232 + $0x80] sm:$0xff]
      %v263 = vld [vmem:[%s232 + $0x88] sm:$0xff]
      %v264 = vld [vmem:[%s232 + $0x90] sm:$0xff]
      %v265 = vld [vmem:[%s232 + $0x98] sm:$0xff]
      %v266 = vld [vmem:[%s232 + $0xa0] sm:$0xff]
      %v267 = vld [vmem:[%s232 + $0xa8] sm:$0xff]
      %v268 = vld [vmem:[%s232 + $0xb0] sm:$0xff]
      %v269 = vld [vmem:[%s232 + $0xb8] sm:$0xff]
      %v270 = vld [vmem:[%s232 + $0xc0] sm:$0xff]
      %v271 = vld [vmem:[%s232 + $0xc8] sm:$0xff]
      %v272 = vld [vmem:[%s232 + $0xd0] sm:$0xff]
      %v273 = vld [vmem:[%s232 + $0xd8] sm:$0xff]
      %v274 = vld [vmem:[%s232 + $0xe0] sm:$0xff]
      %v275 = vld [vmem:[%s232 + $0xe8] sm:$0xff]
      %v276 = vld [vmem:[%s232 + $0xf0] sm:$0xff]
      %v277 = vld [vmem:[%s232 + $0xf8] sm:$0xff]
      %v278 = vlaneseq
      %v279 = vshrl.u32 %v278, 7
      %v280 = vadd.s32 %v279, 8
      %v281 = vadd.s32 %v279, 16
      %v282 = vadd.s32 %v279, 24
      %v283 = vadd.s32 %v279, 32
      %v284 = vadd.s32 %v279, 40
      %v285 = vadd.s32 %v279, 48
      %v286 = vadd.s32 %v279, 56
      %v287 = vadd.s32 %v279, 64
      %v288 = vadd.s32 %v279, 72
      %v289 = vadd.s32 %v279, 80
      %v290 = vadd.s32 %v279, 88
      %v291 = vadd.s32 %v279, 96
      %v292 = vadd.s32 %v279, 104
      %v293 = vadd.s32 %v279, 112
      %v294 = vadd.s32 %v279, 120
      %vm295 = vcmp.lt.s32.totalorder %v279, 0
      %v296 = vsub.s32 0, %v279
      %v297 = vsel %vm295, %v296, %v279
      %v298 = vshrl.u32 %v297, 4
      %v299 = vand.u32 %v297, 15
      %v300 = vsub.s32 0, %v299
      %v301 = vsel %vm295, %v300, %v299
      %vm302 = vcmp.lt.s32.totalorder %v280, 0
      %v303 = vsub.s32 0, %v280
      %v304 = vsel %vm302, %v303, %v280
      %v305 = vshrl.u32 %v304, 4
      %v306 = vand.u32 %v304, 15
      %v307 = vsub.s32 0, %v306
      %v308 = vsel %vm302, %v307, %v306
      %vm309 = vcmp.lt.s32.totalorder %v281, 0
      %v310 = vsub.s32 0, %v281
      %v311 = vsel %vm309, %v310, %v281
      %v312 = vshrl.u32 %v311, 4
      %v313 = vand.u32 %v311, 15
      %v314 = vsub.s32 0, %v313
      %v315 = vsel %vm309, %v314, %v313
      %vm316 = vcmp.lt.s32.totalorder %v282, 0
      %v317 = vsub.s32 0, %v282
      %v318 = vsel %vm316, %v317, %v282
      %v319 = vshrl.u32 %v318, 4
      %v320 = vand.u32 %v318, 15
      %v321 = vsub.s32 0, %v320
      %v322 = vsel %vm316, %v321, %v320
      %vm323 = vcmp.lt.s32.totalorder %v283, 0
      %v324 = vsub.s32 0, %v283
      %v325 = vsel %vm323, %v324, %v283
      %v326 = vshrl.u32 %v325, 4
      %v327 = vand.u32 %v325, 15
      %v328 = vsub.s32 0, %v327
      %v329 = vsel %vm323, %v328, %v327
      %vm330 = vcmp.lt.s32.totalorder %v284, 0
      %v331 = vsub.s32 0, %v284
      %v332 = vsel %vm330, %v331, %v284
      %v333 = vshrl.u32 %v332, 4
      %v334 = vand.u32 %v332, 15
      %v335 = vsub.s32 0, %v334
      %v336 = vsel %vm330, %v335, %v334
      %vm337 = vcmp.lt.s32.totalorder %v285, 0
      %v338 = vsub.s32 0, %v285
      %v339 = vsel %vm337, %v338, %v285
      %v340 = vshrl.u32 %v339, 4
      %v341 = vand.u32 %v339, 15
      %v342 = vsub.s32 0, %v341
      %v343 = vsel %vm337, %v342, %v341
      %vm344 = vcmp.lt.s32.totalorder %v286, 0
      %v345 = vsub.s32 0, %v286
      %v346 = vsel %vm344, %v345, %v286
      %v347 = vshrl.u32 %v346, 4
      %v348 = vand.u32 %v346, 15
      %v349 = vsub.s32 0, %v348
      %v350 = vsel %vm344, %v349, %v348
      %vm351 = vcmp.lt.s32.totalorder %v287, 0
      %v352 = vsub.s32 0, %v287
      %v353 = vsel %vm351, %v352, %v287
      %v354 = vshrl.u32 %v353, 4
      %v355 = vand.u32 %v353, 15
      %v356 = vsub.s32 0, %v355
      %v357 = vsel %vm351, %v356, %v355
      %vm358 = vcmp.lt.s32.totalorder %v288, 0
      %v359 = vsub.s32 0, %v288
      %v360 = vsel %vm358, %v359, %v288
      %v361 = vshrl.u32 %v360, 4
      %v362 = vand.u32 %v360, 15
      %v363 = vsub.s32 0, %v362
      %v364 = vsel %vm358, %v363, %v362
      %vm365 = vcmp.lt.s32.totalorder %v289, 0
      %v366 = vsub.s32 0, %v289
      %v367 = vsel %vm365, %v366, %v289
      %v368 = vshrl.u32 %v367, 4
      %v369 = vand.u32 %v367, 15
      %v370 = vsub.s32 0, %v369
      %v371 = vsel %vm365, %v370, %v369
      %vm372 = vcmp.lt.s32.totalorder %v290, 0
      %v373 = vsub.s32 0, %v290
      %v374 = vsel %vm372, %v373, %v290
      %v375 = vshrl.u32 %v374, 4
      %v376 = vand.u32 %v374, 15
      %v377 = vsub.s32 0, %v376
      %v378 = vsel %vm372, %v377, %v376
      %vm379 = vcmp.lt.s32.totalorder %v291, 0
      %v380 = vsub.s32 0, %v291
      %v381 = vsel %vm379, %v380, %v291
      %v382 = vshrl.u32 %v381, 4
      %v383 = vand.u32 %v381, 15
      %v384 = vsub.s32 0, %v383
      %v385 = vsel %vm379, %v384, %v383
      %vm386 = vcmp.lt.s32.totalorder %v292, 0
      %v387 = vsub.s32 0, %v292
      %v388 = vsel %vm386, %v387, %v292
      %v389 = vshrl.u32 %v388, 4
      %v390 = vand.u32 %v388, 15
      %v391 = vsub.s32 0, %v390
      %v392 = vsel %vm386, %v391, %v390
      %vm393 = vcmp.lt.s32.totalorder %v293, 0
      %v394 = vsub.s32 0, %v293
      %v395 = vsel %vm393, %v394, %v293
      %v396 = vshrl.u32 %v395, 4
      %v397 = vand.u32 %v395, 15
      %v398 = vsub.s32 0, %v397
      %v399 = vsel %vm393, %v398, %v397
      %vm400 = vcmp.lt.s32.totalorder %v294, 0
      %v401 = vsub.s32 0, %v294
      %v402 = vsel %vm400, %v401, %v294
      %v403 = vshrl.u32 %v402, 4
      %v404 = vand.u32 %v402, 15
      %v405 = vsub.s32 0, %v404
      %v406 = vsel %vm400, %v405, %v404
      %vm407 = vcmp.ne.s32.totalorder %v301, 0
      %vm408 = vcmp.ne.s32.totalorder %v308, 0
      %vm409 = vcmp.ne.s32.totalorder %v315, 0
      %vm410 = vcmp.ne.s32.totalorder %v322, 0
      %vm411 = vcmp.ne.s32.totalorder %v329, 0
      %vm412 = vcmp.ne.s32.totalorder %v336, 0
      %vm413 = vcmp.ne.s32.totalorder %v343, 0
      %vm414 = vcmp.ne.s32.totalorder %v350, 0
      %vm415 = vcmp.ne.s32.totalorder %v357, 0
      %vm416 = vcmp.ne.s32.totalorder %v364, 0
      %vm417 = vcmp.ne.s32.totalorder %v371, 0
      %vm418 = vcmp.ne.s32.totalorder %v378, 0
      %vm419 = vcmp.ne.s32.totalorder %v385, 0
      %vm420 = vcmp.ne.s32.totalorder %v392, 0
      %vm421 = vcmp.ne.s32.totalorder %v399, 0
      %vm422 = vcmp.ne.s32.totalorder %v406, 0
      %vm423 = vcmp.lt.s32.totalorder %v301, 0
      %vm424 = vcmp.lt.s32.totalorder %v308, 0
      %vm425 = vcmp.lt.s32.totalorder %v315, 0
      %vm426 = vcmp.lt.s32.totalorder %v322, 0
      %vm427 = vcmp.lt.s32.totalorder %v329, 0
      %vm428 = vcmp.lt.s32.totalorder %v336, 0
      %vm429 = vcmp.lt.s32.totalorder %v343, 0
      %vm430 = vcmp.lt.s32.totalorder %v350, 0
      %vm431 = vcmp.lt.s32.totalorder %v357, 0
      %vm432 = vcmp.lt.s32.totalorder %v364, 0
      %vm433 = vcmp.lt.s32.totalorder %v371, 0
      %vm434 = vcmp.lt.s32.totalorder %v378, 0
      %vm435 = vcmp.lt.s32.totalorder %v385, 0
      %vm436 = vcmp.lt.s32.totalorder %v392, 0
      %vm437 = vcmp.lt.s32.totalorder %v399, 0
      %vm438 = vcmp.lt.s32.totalorder %v406, 0
      %vm439 = vmand %vm423, %vm407
      %vm440 = vmand %vm424, %vm408
      %vm441 = vmand %vm425, %vm409
      %vm442 = vmand %vm426, %vm410
      %vm443 = vmand %vm427, %vm411
      %vm444 = vmand %vm428, %vm412
      %vm445 = vmand %vm429, %vm413
      %vm446 = vmand %vm430, %vm414
      %vm447 = vmand %vm431, %vm415
      %vm448 = vmand %vm432, %vm416
      %vm449 = vmand %vm433, %vm417
      %vm450 = vmand %vm434, %vm418
      %vm451 = vmand %vm435, %vm419
      %vm452 = vmand %vm436, %vm420
      %vm453 = vmand %vm437, %vm421
      %vm454 = vmand %vm438, %vm422
      %v455 = vadd.s32 %v301, 16
      %v456 = vadd.s32 %v308, 16
      %v457 = vadd.s32 %v315, 16
      %v458 = vadd.s32 %v322, 16
      %v459 = vadd.s32 %v329, 16
      %v460 = vadd.s32 %v336, 16
      %v461 = vadd.s32 %v343, 16
      %v462 = vadd.s32 %v350, 16
      %v463 = vadd.s32 %v357, 16
      %v464 = vadd.s32 %v364, 16
      %v465 = vadd.s32 %v371, 16
      %v466 = vadd.s32 %v378, 16
      %v467 = vadd.s32 %v385, 16
      %v468 = vadd.s32 %v392, 16
      %v469 = vadd.s32 %v399, 16
      %v470 = vadd.s32 %v406, 16
      %v471 = vsel %vm439, %v455, %v301
      %v472 = vsel %vm440, %v456, %v308
      %v473 = vsel %vm441, %v457, %v315
      %v474 = vsel %vm442, %v458, %v322
      %v475 = vsel %vm443, %v459, %v329
      %v476 = vsel %vm444, %v460, %v336
      %v477 = vsel %vm445, %v461, %v343
      %v478 = vsel %vm446, %v462, %v350
      %v479 = vsel %vm447, %v463, %v357
      %v480 = vsel %vm448, %v464, %v364
      %v481 = vsel %vm449, %v465, %v371
      %v482 = vsel %vm450, %v466, %v378
      %v483 = vsel %vm451, %v467, %v385
      %v484 = vsel %vm452, %v468, %v392
      %v485 = vsel %vm453, %v469, %v399
      %v486 = vsel %vm454, %v470, %v406
      %vm487 = vcmp.ne.s32.totalorder %v471, 0
      %vm488 = vcmp.ne.s32.totalorder %v472, 0
      %vm489 = vcmp.ne.s32.totalorder %v473, 0
      %vm490 = vcmp.ne.s32.totalorder %v474, 0
      %vm491 = vcmp.ne.s32.totalorder %v475, 0
      %vm492 = vcmp.ne.s32.totalorder %v476, 0
      %vm493 = vcmp.ne.s32.totalorder %v477, 0
      %vm494 = vcmp.ne.s32.totalorder %v478, 0
      %vm495 = vcmp.ne.s32.totalorder %v479, 0
      %vm496 = vcmp.ne.s32.totalorder %v480, 0
      %vm497 = vcmp.ne.s32.totalorder %v481, 0
      %vm498 = vcmp.ne.s32.totalorder %v482, 0
      %vm499 = vcmp.ne.s32.totalorder %v483, 0
      %vm500 = vcmp.ne.s32.totalorder %v484, 0
      %vm501 = vcmp.ne.s32.totalorder %v485, 0
      %vm502 = vcmp.ne.s32.totalorder %v486, 0
      %v503 = vrot.slane %v246, 7
      %v504 = vrot.slane %v247, 7
      %v505 = vrot.slane %v248, 7
      %v506 = vrot.slane %v249, 7
      %v507 = vrot.slane %v250, 7
      %v508 = vrot.slane %v251, 7
      %v509 = vrot.slane %v252, 7
      %v510 = vrot.slane %v253, 7
      %v511 = vrot.slane %v254, 7
      %v512 = vrot.slane %v255, 7
      %v513 = vrot.slane %v256, 7
      %v514 = vrot.slane %v257, 7
      %v515 = vrot.slane %v258, 7
      %v516 = vrot.slane %v259, 7
      %v517 = vrot.slane %v260, 7
      %v518 = vrot.slane %v261, 7
      %v519 = vrot.slane %v262, 7
      %v520 = vrot.slane %v263, 7
      %v521 = vrot.slane %v264, 7
      %v522 = vrot.slane %v265, 7
      %v523 = vrot.slane %v266, 7
      %v524 = vrot.slane %v267, 7
      %v525 = vrot.slane %v268, 7
      %v526 = vrot.slane %v269, 7
      %v527 = vrot.slane %v270, 7
      %v528 = vrot.slane %v271, 7
      %v529 = vrot.slane %v272, 7
      %v530 = vrot.slane %v273, 7
      %v531 = vrot.slane %v274, 7
      %v532 = vrot.slane %v275, 7
      %v533 = vrot.slane %v276, 7
      %v534 = vrot.slane %v277, 7
      %vm535 = vcmp.lt.s32.totalorder %v279, 1
      %v536 = vsel %vm535, %v531, %v533
      %v537 = vsel %vm535, %v532, %v534
      %v538 = vsel %vm535, %v529, %v531
      %v539 = vsel %vm535, %v530, %v532
      %v540 = vsel %vm535, %v527, %v529
      %v541 = vsel %vm535, %v528, %v530
      %v542 = vsel %vm535, %v525, %v527
      %v543 = vsel %vm535, %v526, %v528
      %v544 = vsel %vm535, %v523, %v525
      %v545 = vsel %vm535, %v524, %v526
      %v546 = vsel %vm535, %v521, %v523
      %v547 = vsel %vm535, %v522, %v524
      %v548 = vsel %vm535, %v519, %v521
      %v549 = vsel %vm535, %v520, %v522
      %v550 = vsel %vm535, %v517, %v519
      %v551 = vsel %vm535, %v518, %v520
      %v552 = vsel %vm535, %v515, %v517
      %v553 = vsel %vm535, %v516, %v518
      %v554 = vsel %vm535, %v513, %v515
      %v555 = vsel %vm535, %v514, %v516
      %v556 = vsel %vm535, %v511, %v513
      %v557 = vsel %vm535, %v512, %v514
      %v558 = vsel %vm535, %v509, %v511
      %v559 = vsel %vm535, %v510, %v512
      %v560 = vsel %vm535, %v507, %v509
      %v561 = vsel %vm535, %v508, %v510
      %v562 = vsel %vm535, %v505, %v507
      %v563 = vsel %vm535, %v506, %v508
      %v564 = vsel %vm535, %v503, %v505
      %v565 = vsel %vm535, %v504, %v506
      %v566 = vsel %vm535, %v533, %v503
      %v567 = vsel %vm535, %v534, %v504
      %v568 = vsel %vm487, 1, 0
      %v569 = vsel %vm488, 1, 0
      %v570 = vsel %vm489, 1, 0
      %v571 = vsel %vm490, 1, 0
      %v572 = vsel %vm491, 1, 0
      %v573 = vsel %vm492, 1, 0
      %v574 = vsel %vm493, 1, 0
      %v575 = vsel %vm494, 1, 0
      %v576 = vsel %vm495, 1, 0
      %v577 = vsel %vm496, 1, 0
      %v578 = vsel %vm497, 1, 0
      %v579 = vsel %vm498, 1, 0
      %v580 = vsel %vm499, 1, 0
      %v581 = vsel %vm500, 1, 0
      %v582 = vsel %vm501, 1, 0
      %v583 = vsel %vm502, 1, 0
      %vm584 = vcmp.eq.s32.totalorder %v568, 1
      %vm585 = vcmp.eq.s32.totalorder %v569, 1
      %vm586 = vcmp.eq.s32.totalorder %v570, 1
      %vm587 = vcmp.eq.s32.totalorder %v571, 1
      %vm588 = vcmp.eq.s32.totalorder %v572, 1
      %vm589 = vcmp.eq.s32.totalorder %v573, 1
      %vm590 = vcmp.eq.s32.totalorder %v574, 1
      %vm591 = vcmp.eq.s32.totalorder %v575, 1
      %vm592 = vcmp.eq.s32.totalorder %v576, 1
      %vm593 = vcmp.eq.s32.totalorder %v577, 1
      %vm594 = vcmp.eq.s32.totalorder %v578, 1
      %vm595 = vcmp.eq.s32.totalorder %v579, 1
      %vm596 = vcmp.eq.s32.totalorder %v580, 1
      %vm597 = vcmp.eq.s32.totalorder %v581, 1
      %vm598 = vcmp.eq.s32.totalorder %v582, 1
      %vm599 = vcmp.eq.s32.totalorder %v583, 1
      %v600 = vsel %vm584, %v566, 0.0
      %v601 = vsel %vm584, %v567, 0.0
      %v602 = vsel %vm585, %v564, 0.0
      %v603 = vsel %vm585, %v565, 0.0
      %v604 = vsel %vm586, %v562, 0.0
      %v605 = vsel %vm586, %v563, 0.0
      %v606 = vsel %vm587, %v560, 0.0
      %v607 = vsel %vm587, %v561, 0.0
      %v608 = vsel %vm588, %v558, 0.0
      %v609 = vsel %vm588, %v559, 0.0
      %v610 = vsel %vm589, %v556, 0.0
      %v611 = vsel %vm589, %v557, 0.0
      %v612 = vsel %vm590, %v554, 0.0
      %v613 = vsel %vm590, %v555, 0.0
      %v614 = vsel %vm591, %v552, 0.0
      %v615 = vsel %vm591, %v553, 0.0
      %v616 = vsel %vm592, %v550, 0.0
      %v617 = vsel %vm592, %v551, 0.0
      %v618 = vsel %vm593, %v548, 0.0
      %v619 = vsel %vm593, %v549, 0.0
      %v620 = vsel %vm594, %v546, 0.0
      %v621 = vsel %vm594, %v547, 0.0
      %v622 = vsel %vm595, %v544, 0.0
      %v623 = vsel %vm595, %v545, 0.0
      %v624 = vsel %vm596, %v542, 0.0
      %v625 = vsel %vm596, %v543, 0.0
      %v626 = vsel %vm597, %v540, 0.0
      %v627 = vsel %vm597, %v541, 0.0
      %v628 = vsel %vm598, %v538, 0.0
      %v629 = vsel %vm598, %v539, 0.0
      %v630 = vsel %vm599, %v536, 0.0
      %v631 = vsel %vm599, %v537, 0.0
      %vm632 = vcmp.ne.s32.totalorder %v471, 15
      %vm633 = vcmp.ne.s32.totalorder %v472, 15
      %vm634 = vcmp.ne.s32.totalorder %v473, 15
      %vm635 = vcmp.ne.s32.totalorder %v474, 15
      %vm636 = vcmp.ne.s32.totalorder %v475, 15
      %vm637 = vcmp.ne.s32.totalorder %v476, 15
      %vm638 = vcmp.ne.s32.totalorder %v477, 15
      %vm639 = vcmp.ne.s32.totalorder %v478, 15
      %vm640 = vcmp.ne.s32.totalorder %v479, 15
      %vm641 = vcmp.ne.s32.totalorder %v480, 15
      %vm642 = vcmp.ne.s32.totalorder %v481, 15
      %vm643 = vcmp.ne.s32.totalorder %v482, 15
      %vm644 = vcmp.ne.s32.totalorder %v483, 15
      %vm645 = vcmp.ne.s32.totalorder %v484, 15
      %vm646 = vcmp.ne.s32.totalorder %v485, 15
      %vm647 = vcmp.ne.s32.totalorder %v486, 15
      %v648 = vrot.slane %v246, 1
      %v649 = vrot.slane %v247, 1
      %v650 = vrot.slane %v248, 1
      %v651 = vrot.slane %v249, 1
      %v652 = vrot.slane %v250, 1
      %v653 = vrot.slane %v251, 1
      %v654 = vrot.slane %v252, 1
      %v655 = vrot.slane %v253, 1
      %v656 = vrot.slane %v254, 1
      %v657 = vrot.slane %v255, 1
      %v658 = vrot.slane %v256, 1
      %v659 = vrot.slane %v257, 1
      %v660 = vrot.slane %v258, 1
      %v661 = vrot.slane %v259, 1
      %v662 = vrot.slane %v260, 1
      %v663 = vrot.slane %v261, 1
      %v664 = vrot.slane %v262, 1
      %v665 = vrot.slane %v263, 1
      %v666 = vrot.slane %v264, 1
      %v667 = vrot.slane %v265, 1
      %v668 = vrot.slane %v266, 1
      %v669 = vrot.slane %v267, 1
      %v670 = vrot.slane %v268, 1
      %v671 = vrot.slane %v269, 1
      %v672 = vrot.slane %v270, 1
      %v673 = vrot.slane %v271, 1
      %v674 = vrot.slane %v272, 1
      %v675 = vrot.slane %v273, 1
      %v676 = vrot.slane %v274, 1
      %v677 = vrot.slane %v275, 1
      %v678 = vrot.slane %v276, 1
      %v679 = vrot.slane %v277, 1
      %vm680 = vcmp.lt.s32.totalorder %v279, 7
      %v681 = vsel %vm680, %v676, %v678
      %v682 = vsel %vm680, %v677, %v679
      %v683 = vsel %vm680, %v674, %v676
      %v684 = vsel %vm680, %v675, %v677
      %v685 = vsel %vm680, %v672, %v674
      %v686 = vsel %vm680, %v673, %v675
      %v687 = vsel %vm680, %v670, %v672
      %v688 = vsel %vm680, %v671, %v673
      %v689 = vsel %vm680, %v668, %v670
      %v690 = vsel %vm680, %v669, %v671
      %v691 = vsel %vm680, %v666, %v668
      %v692 = vsel %vm680, %v667, %v669
      %v693 = vsel %vm680, %v664, %v666
      %v694 = vsel %vm680, %v665, %v667
      %v695 = vsel %vm680, %v662, %v664
      %v696 = vsel %vm680, %v663, %v665
      %v697 = vsel %vm680, %v660, %v662
      %v698 = vsel %vm680, %v661, %v663
      %v699 = vsel %vm680, %v658, %v660
      %v700 = vsel %vm680, %v659, %v661
      %v701 = vsel %vm680, %v656, %v658
      %v702 = vsel %vm680, %v657, %v659
      %v703 = vsel %vm680, %v654, %v656
      %v704 = vsel %vm680, %v655, %v657
      %v705 = vsel %vm680, %v652, %v654
      %v706 = vsel %vm680, %v653, %v655
      %v707 = vsel %vm680, %v650, %v652
      %v708 = vsel %vm680, %v651, %v653
      %v709 = vsel %vm680, %v648, %v650
      %v710 = vsel %vm680, %v649, %v651
      %v711 = vsel %vm680, %v678, %v648
      %v712 = vsel %vm680, %v679, %v649
      %v713 = vsel %vm632, 1, 0
      %v714 = vsel %vm633, 1, 0
      %v715 = vsel %vm634, 1, 0
      %v716 = vsel %vm635, 1, 0
      %v717 = vsel %vm636, 1, 0
      %v718 = vsel %vm637, 1, 0
      %v719 = vsel %vm638, 1, 0
      %v720 = vsel %vm639, 1, 0
      %v721 = vsel %vm640, 1, 0
      %v722 = vsel %vm641, 1, 0
      %v723 = vsel %vm642, 1, 0
      %v724 = vsel %vm643, 1, 0
      %v725 = vsel %vm644, 1, 0
      %v726 = vsel %vm645, 1, 0
      %v727 = vsel %vm646, 1, 0
      %v728 = vsel %vm647, 1, 0
      %vm729 = vcmp.eq.s32.totalorder %v713, 1
      %vm730 = vcmp.eq.s32.totalorder %v714, 1
      %vm731 = vcmp.eq.s32.totalorder %v715, 1
      %vm732 = vcmp.eq.s32.totalorder %v716, 1
      %vm733 = vcmp.eq.s32.totalorder %v717, 1
      %vm734 = vcmp.eq.s32.totalorder %v718, 1
      %vm735 = vcmp.eq.s32.totalorder %v719, 1
      %vm736 = vcmp.eq.s32.totalorder %v720, 1
      %vm737 = vcmp.eq.s32.totalorder %v721, 1
      %vm738 = vcmp.eq.s32.totalorder %v722, 1
      %vm739 = vcmp.eq.s32.totalorder %v723, 1
      %vm740 = vcmp.eq.s32.totalorder %v724, 1
      %vm741 = vcmp.eq.s32.totalorder %v725, 1
      %vm742 = vcmp.eq.s32.totalorder %v726, 1
      %vm743 = vcmp.eq.s32.totalorder %v727, 1
      %vm744 = vcmp.eq.s32.totalorder %v728, 1
      %v745 = vsel %vm729, %v709, 0.0
      %v746 = vsel %vm729, %v710, 0.0
      %v747 = vsel %vm730, %v707, 0.0
      %v748 = vsel %vm730, %v708, 0.0
      %v749 = vsel %vm731, %v705, 0.0
      %v750 = vsel %vm731, %v706, 0.0
      %v751 = vsel %vm732, %v703, 0.0
      %v752 = vsel %vm732, %v704, 0.0
      %v753 = vsel %vm733, %v701, 0.0
      %v754 = vsel %vm733, %v702, 0.0
      %v755 = vsel %vm734, %v699, 0.0
      %v756 = vsel %vm734, %v700, 0.0
      %v757 = vsel %vm735, %v697, 0.0
      %v758 = vsel %vm735, %v698, 0.0
      %v759 = vsel %vm736, %v695, 0.0
      %v760 = vsel %vm736, %v696, 0.0
      %v761 = vsel %vm737, %v693, 0.0
      %v762 = vsel %vm737, %v694, 0.0
      %v763 = vsel %vm738, %v691, 0.0
      %v764 = vsel %vm738, %v692, 0.0
      %v765 = vsel %vm739, %v689, 0.0
      %v766 = vsel %vm739, %v690, 0.0
      %v767 = vsel %vm740, %v687, 0.0
      %v768 = vsel %vm740, %v688, 0.0
      %v769 = vsel %vm741, %v685, 0.0
      %v770 = vsel %vm741, %v686, 0.0
      %v771 = vsel %vm742, %v683, 0.0
      %v772 = vsel %vm742, %v684, 0.0
      %v773 = vsel %vm743, %v681, 0.0
      %v774 = vsel %vm743, %v682, 0.0
      %v775 = vsel %vm744, %v711, 0.0
      %v776 = vsel %vm744, %v712, 0.0
      %v777 = vpack.c.bf16 %v248, %v246
      %v778 = vpack.c.bf16 %v249, %v247
      %v779 = vpack.c.bf16 %v252, %v250
      %v780 = vpack.c.bf16 %v253, %v251
      %v781 = vpack.c.bf16 %v256, %v254
      %v782 = vpack.c.bf16 %v257, %v255
      %v783 = vpack.c.bf16 %v260, %v258
      %v784 = vpack.c.bf16 %v261, %v259
      %v785 = vpack.c.bf16 %v264, %v262
      %v786 = vpack.c.bf16 %v265, %v263
      %v787 = vpack.c.bf16 %v268, %v266
      %v788 = vpack.c.bf16 %v269, %v267
      %v789 = vpack.c.bf16 %v272, %v270
      %v790 = vpack.c.bf16 %v273, %v271
      %v791 = vpack.c.bf16 %v276, %v274
      %v792 = vpack.c.bf16 %v277, %v275
      %s793 = scalar_lea.vmem %s1, 256
      %v794 = vld [vmem:[%s793] sm:$0xff]
      %v795 = vld [vmem:[%s793 + $0x8] sm:$0xff]
      %v796 = vld [vmem:[%s793 + $0x10] sm:$0xff]
      %v797 = vld [vmem:[%s793 + $0x18] sm:$0xff]
      %v798 = vld [vmem:[%s793 + $0x20] sm:$0xff]
      %v799 = vld [vmem:[%s793 + $0x28] sm:$0xff]
      %v800 = vld [vmem:[%s793 + $0x30] sm:$0xff]
      %v801 = vld [vmem:[%s793 + $0x38] sm:$0xff]
      %v802 = vld [vmem:[%s793 + $0x40] sm:$0xff]
      %v803 = vld [vmem:[%s793 + $0x48] sm:$0xff]
      %v804 = vld [vmem:[%s793 + $0x50] sm:$0xff]
      %v805 = vld [vmem:[%s793 + $0x58] sm:$0xff]
      %v806 = vld [vmem:[%s793 + $0x60] sm:$0xff]
      %v807 = vld [vmem:[%s793 + $0x68] sm:$0xff]
      %v808 = vld [vmem:[%s793 + $0x70] sm:$0xff]
      %v809 = vld [vmem:[%s793 + $0x78] sm:$0xff]
      %v810 = vld [vmem:[%s793 + $0x80] sm:$0xff]
      %v811 = vld [vmem:[%s793 + $0x88] sm:$0xff]
      %v812 = vld [vmem:[%s793 + $0x90] sm:$0xff]
      %v813 = vld [vmem:[%s793 + $0x98] sm:$0xff]
      %v814 = vld [vmem:[%s793 + $0xa0] sm:$0xff]
      %v815 = vld [vmem:[%s793 + $0xa8] sm:$0xff]
      %v816 = vld [vmem:[%s793 + $0xb0] sm:$0xff]
      %v817 = vld [vmem:[%s793 + $0xb8] sm:$0xff]
      %v818 = vld [vmem:[%s793 + $0xc0] sm:$0xff]
      %v819 = vld [vmem:[%s793 + $0xc8] sm:$0xff]
      %v820 = vld [vmem:[%s793 + $0xd0] sm:$0xff]
      %v821 = vld [vmem:[%s793 + $0xd8] sm:$0xff]
      %v822 = vld [vmem:[%s793 + $0xe0] sm:$0xff]
      %v823 = vld [vmem:[%s793 + $0xe8] sm:$0xff]
      %v824 = vld [vmem:[%s793 + $0xf0] sm:$0xff]
      %v825 = vld [vmem:[%s793 + $0xf8] sm:$0xff]
      %v826 = vpack.c.bf16 %v602, %v600
      %v827 = vpack.c.bf16 %v603, %v601
      %v828 = vpack.c.bf16 %v606, %v604
      %v829 = vpack.c.bf16 %v607, %v605
      %v830 = vpack.c.bf16 %v610, %v608
      %v831 = vpack.c.bf16 %v611, %v609
      %v832 = vpack.c.bf16 %v614, %v612
      %v833 = vpack.c.bf16 %v615, %v613
      %v834 = vpack.c.bf16 %v618, %v616
      %v835 = vpack.c.bf16 %v619, %v617
      %v836 = vpack.c.bf16 %v622, %v620
      %v837 = vpack.c.bf16 %v623, %v621
      %v838 = vpack.c.bf16 %v626, %v624
      %v839 = vpack.c.bf16 %v627, %v625
      %v840 = vpack.c.bf16 %v630, %v628
      %v841 = vpack.c.bf16 %v631, %v629
      %v842 = vld [vmem:[%s1] sm:$0xff]
      %v843 = vld [vmem:[%s1 + $0x8] sm:$0xff]
      %v844 = vld [vmem:[%s1 + $0x10] sm:$0xff]
      %v845 = vld [vmem:[%s1 + $0x18] sm:$0xff]
      %v846 = vld [vmem:[%s1 + $0x20] sm:$0xff]
      %v847 = vld [vmem:[%s1 + $0x28] sm:$0xff]
      %v848 = vld [vmem:[%s1 + $0x30] sm:$0xff]
      %v849 = vld [vmem:[%s1 + $0x38] sm:$0xff]
      %v850 = vld [vmem:[%s1 + $0x40] sm:$0xff]
      %v851 = vld [vmem:[%s1 + $0x48] sm:$0xff]
      %v852 = vld [vmem:[%s1 + $0x50] sm:$0xff]
      %v853 = vld [vmem:[%s1 + $0x58] sm:$0xff]
      %v854 = vld [vmem:[%s1 + $0x60] sm:$0xff]
      %v855 = vld [vmem:[%s1 + $0x68] sm:$0xff]
      %v856 = vld [vmem:[%s1 + $0x70] sm:$0xff]
      %v857 = vld [vmem:[%s1 + $0x78] sm:$0xff]
      %v858 = vld [vmem:[%s1 + $0x80] sm:$0xff]
      %v859 = vld [vmem:[%s1 + $0x88] sm:$0xff]
      %v860 = vld [vmem:[%s1 + $0x90] sm:$0xff]
      %v861 = vld [vmem:[%s1 + $0x98] sm:$0xff]
      %v862 = vld [vmem:[%s1 + $0xa0] sm:$0xff]
      %v863 = vld [vmem:[%s1 + $0xa8] sm:$0xff]
      %v864 = vld [vmem:[%s1 + $0xb0] sm:$0xff]
      %v865 = vld [vmem:[%s1 + $0xb8] sm:$0xff]
      %v866 = vld [vmem:[%s1 + $0xc0] sm:$0xff]
      %v867 = vld [vmem:[%s1 + $0xc8] sm:$0xff]
      %v868 = vld [vmem:[%s1 + $0xd0] sm:$0xff]
      %v869 = vld [vmem:[%s1 + $0xd8] sm:$0xff]
      %v870 = vld [vmem:[%s1 + $0xe0] sm:$0xff]
      %v871 = vld [vmem:[%s1 + $0xe8] sm:$0xff]
      %v872 = vld [vmem:[%s1 + $0xf0] sm:$0xff]
      %v873 = vld [vmem:[%s1 + $0xf8] sm:$0xff]
      %v906 = vunpack.c.l.b16 %v842
      %v907 = vunpack.c.h.b16 %v842
      %v908 = vunpack.c.l.b16 %v843
      %v909 = vunpack.c.h.b16 %v843
      %v910 = vunpack.c.l.b16 %v844
      %v911 = vunpack.c.h.b16 %v844
      %v912 = vunpack.c.l.b16 %v845
      %v913 = vunpack.c.h.b16 %v845
      %v914 = vunpack.c.l.b16 %v846
      %v915 = vunpack.c.h.b16 %v846
      %v916 = vunpack.c.l.b16 %v847
      %v917 = vunpack.c.h.b16 %v847
      %v918 = vunpack.c.l.b16 %v848
      %v919 = vunpack.c.h.b16 %v848
      %v920 = vunpack.c.l.b16 %v849
      %v921 = vunpack.c.h.b16 %v849
      %v922 = vunpack.c.l.b16 %v850
      %v923 = vunpack.c.h.b16 %v850
      %v924 = vunpack.c.l.b16 %v851
      %v925 = vunpack.c.h.b16 %v851
      %v926 = vunpack.c.l.b16 %v852
      %v927 = vunpack.c.h.b16 %v852
      %v928 = vunpack.c.l.b16 %v853
      %v929 = vunpack.c.h.b16 %v853
      %v930 = vunpack.c.l.b16 %v854
      %v931 = vunpack.c.h.b16 %v854
      %v932 = vunpack.c.l.b16 %v855
      %v933 = vunpack.c.h.b16 %v855
      %v934 = vunpack.c.l.b16 %v856
      %v935 = vunpack.c.h.b16 %v856
      %v936 = vunpack.c.l.b16 %v857
      %v937 = vunpack.c.h.b16 %v857
      %v938 = vunpack.c.l.b16 %v858
      %v939 = vunpack.c.h.b16 %v858
      %v940 = vunpack.c.l.b16 %v859
      %v941 = vunpack.c.h.b16 %v859
      %v942 = vunpack.c.l.b16 %v860
      %v943 = vunpack.c.h.b16 %v860
      %v944 = vunpack.c.l.b16 %v861
      %v945 = vunpack.c.h.b16 %v861
      %v946 = vunpack.c.l.b16 %v862
      %v947 = vunpack.c.h.b16 %v862
      %v948 = vunpack.c.l.b16 %v863
      %v949 = vunpack.c.h.b16 %v863
      %v950 = vunpack.c.l.b16 %v864
      %v951 = vunpack.c.h.b16 %v864
      %v952 = vunpack.c.l.b16 %v865
      %v953 = vunpack.c.h.b16 %v865
      %v954 = vunpack.c.l.b16 %v866
      %v955 = vunpack.c.h.b16 %v866
      %v956 = vunpack.c.l.b16 %v867
      %v957 = vunpack.c.h.b16 %v867
      %v958 = vunpack.c.l.b16 %v868
      %v959 = vunpack.c.h.b16 %v868
      %v960 = vunpack.c.l.b16 %v869
      %v961 = vunpack.c.h.b16 %v869
      %v962 = vunpack.c.l.b16 %v870
      %v963 = vunpack.c.h.b16 %v870
      %v964 = vunpack.c.l.b16 %v871
      %v965 = vunpack.c.h.b16 %v871
      %v966 = vunpack.c.l.b16 %v872
      %v967 = vunpack.c.h.b16 %v872
      %v968 = vunpack.c.l.b16 %v873
      %v969 = vunpack.c.h.b16 %v873
      %v970 = vpack.c.b16 %v908, %v906
      %v971 = vpack.c.b16 %v909, %v907
      %v972 = vpack.c.b16 %v912, %v910
      %v973 = vpack.c.b16 %v913, %v911
      %v974 = vpack.c.b16 %v916, %v914
      %v975 = vpack.c.b16 %v917, %v915
      %v976 = vpack.c.b16 %v920, %v918
      %v977 = vpack.c.b16 %v921, %v919
      %v978 = vpack.c.b16 %v924, %v922
      %v979 = vpack.c.b16 %v925, %v923
      %v980 = vpack.c.b16 %v928, %v926
      %v981 = vpack.c.b16 %v929, %v927
      %v982 = vpack.c.b16 %v932, %v930
      %v983 = vpack.c.b16 %v933, %v931
      %v984 = vpack.c.b16 %v936, %v934
      %v985 = vpack.c.b16 %v937, %v935
      %v986 = vpack.c.b16 %v940, %v938
      %v987 = vpack.c.b16 %v941, %v939
      %v988 = vpack.c.b16 %v944, %v942
      %v989 = vpack.c.b16 %v945, %v943
      %v990 = vpack.c.b16 %v948, %v946
      %v991 = vpack.c.b16 %v949, %v947
      %v992 = vpack.c.b16 %v952, %v950
      %v993 = vpack.c.b16 %v953, %v951
      %v994 = vpack.c.b16 %v956, %v954
      %v995 = vpack.c.b16 %v957, %v955
      %v996 = vpack.c.b16 %v960, %v958
      %v997 = vpack.c.b16 %v961, %v959
      %v998 = vpack.c.b16 %v964, %v962
      %v999 = vpack.c.b16 %v965, %v963
      %v1000 = vpack.c.b16 %v968, %v966
      %v1001 = vpack.c.b16 %v969, %v967
      %1034 = vmatpush.bf16.msra.mxu0 %v984
      %1035 = vmatpush.bf16.msra.mxu0 %v982
      %1036 = vmatpush.bf16.msra.mxu0 %v980
      %1037 = vmatpush.bf16.msra.mxu0 %v978
      %1038 = vmatpush.bf16.msra.mxu0 %v976
      %1039 = vmatpush.bf16.msra.mxu0 %v974
      %1040 = vmatpush.bf16.msra.mxu0 %v972
      %1041 = vmatpush.bf16.msra.mxu0 %v970
      %1042 = vmatmul.bf16.gmra.mxu0 %v826
      %v1043 = vpop.f32.mrf.mxu0
      %v1044 = vadd.f32 0.0, %v1043
      %v1045 = vpop.f32.mrf.mxu0
      %v1046 = vadd.f32 0.0, %v1045
      %1047 = vmatmul.bf16.gmra.mxu0 %v828
      %v1048 = vpop.f32.mrf.mxu0
      %v1049 = vadd.f32 0.0, %v1048
      %v1050 = vpop.f32.mrf.mxu0
      %v1051 = vadd.f32 0.0, %v1050
      %1052 = vmatmul.bf16.gmra.mxu0 %v830
      %v1053 = vpop.f32.mrf.mxu0
      %v1054 = vadd.f32 0.0, %v1053
      %v1055 = vpop.f32.mrf.mxu0
      %v1056 = vadd.f32 0.0, %v1055
      %1057 = vmatmul.bf16.gmra.mxu0 %v832
      %v1058 = vpop.f32.mrf.mxu0
      %v1059 = vadd.f32 0.0, %v1058
      %v1060 = vpop.f32.mrf.mxu0
      %v1061 = vadd.f32 0.0, %v1060
      %1062 = vmatmul.bf16.gmra.mxu0 %v834
      %v1063 = vpop.f32.mrf.mxu0
      %v1064 = vadd.f32 0.0, %v1063
      %v1065 = vpop.f32.mrf.mxu0
      %v1066 = vadd.f32 0.0, %v1065
      %1067 = vmatmul.bf16.gmra.mxu0 %v836
      %v1068 = vpop.f32.mrf.mxu0
      %v1069 = vadd.f32 0.0, %v1068
      %v1070 = vpop.f32.mrf.mxu0
      %v1071 = vadd.f32 0.0, %v1070
      %1072 = vmatmul.bf16.gmra.mxu0 %v838
      %v1073 = vpop.f32.mrf.mxu0
      %v1074 = vadd.f32 0.0, %v1073
      %v1075 = vpop.f32.mrf.mxu0
      %v1076 = vadd.f32 0.0, %v1075
      %1077 = vmatmul.bf16.gmra.mxu0 %v840
      %v1078 = vpop.f32.mrf.mxu0
      %v1079 = vadd.f32 0.0, %v1078
      %v1080 = vpop.f32.mrf.mxu0
      %v1081 = vadd.f32 0.0, %v1080
      %1082 = vdwg.mxu0
      %1083 = vmatpush.bf16.msra.mxu0 %v1000
      %1084 = vmatpush.bf16.msra.mxu0 %v998
      %1085 = vmatpush.bf16.msra.mxu0 %v996
      %1086 = vmatpush.bf16.msra.mxu0 %v994
      %1087 = vmatpush.bf16.msra.mxu0 %v992
      %1088 = vmatpush.bf16.msra.mxu0 %v990
      %1089 = vmatpush.bf16.msra.mxu0 %v988
      %1090 = vmatpush.bf16.msra.mxu0 %v986
      %1091 = vmatmul.bf16.gmra.mxu0 %v827
      %v1092 = vpop.f32.mrf.mxu0
      %v1093 = vadd.f32 %v1044, %v1092
      %v1094 = vpop.f32.mrf.mxu0
      %v1095 = vadd.f32 %v1046, %v1094
      %1096 = vmatmul.bf16.gmra.mxu0 %v829
      %v1097 = vpop.f32.mrf.mxu0
      %v1098 = vadd.f32 %v1049, %v1097
      %v1099 = vpop.f32.mrf.mxu0
      %v1100 = vadd.f32 %v1051, %v1099
      %1101 = vmatmul.bf16.gmra.mxu0 %v831
      %v1102 = vpop.f32.mrf.mxu0
      %v1103 = vadd.f32 %v1054, %v1102
      %v1104 = vpop.f32.mrf.mxu0
      %v1105 = vadd.f32 %v1056, %v1104
      %1106 = vmatmul.bf16.gmra.mxu0 %v833
      %v1107 = vpop.f32.mrf.mxu0
      %v1108 = vadd.f32 %v1059, %v1107
      %v1109 = vpop.f32.mrf.mxu0
      %v1110 = vadd.f32 %v1061, %v1109
      %1111 = vmatmul.bf16.gmra.mxu0 %v835
      %v1112 = vpop.f32.mrf.mxu0
      %v1113 = vadd.f32 %v1064, %v1112
      %v1114 = vpop.f32.mrf.mxu0
      %v1115 = vadd.f32 %v1066, %v1114
      %1116 = vmatmul.bf16.gmra.mxu0 %v837
      %v1117 = vpop.f32.mrf.mxu0
      %v1118 = vadd.f32 %v1069, %v1117
      %v1119 = vpop.f32.mrf.mxu0
      %v1120 = vadd.f32 %v1071, %v1119
      %1121 = vmatmul.bf16.gmra.mxu0 %v839
      %v1122 = vpop.f32.mrf.mxu0
      %v1123 = vadd.f32 %v1074, %v1122
      %v1124 = vpop.f32.mrf.mxu0
      %v1125 = vadd.f32 %v1076, %v1124
      %1126 = vmatmul.bf16.gmra.mxu0 %v841
      %v1127 = vpop.f32.mrf.mxu0
      %v1128 = vadd.f32 %v1079, %v1127
      %v1129 = vpop.f32.mrf.mxu0
      %v1130 = vadd.f32 %v1081, %v1129
      %1131 = vdwg.mxu0
      %1132 = vmatpush.bf16.msra.mxu0 %v985
      %1133 = vmatpush.bf16.msra.mxu0 %v983
      %1134 = vmatpush.bf16.msra.mxu0 %v981
      %1135 = vmatpush.bf16.msra.mxu0 %v979
      %1136 = vmatpush.bf16.msra.mxu0 %v977
      %1137 = vmatpush.bf16.msra.mxu0 %v975
      %1138 = vmatpush.bf16.msra.mxu0 %v973
      %1139 = vmatpush.bf16.msra.mxu0 %v971
      %1140 = vmatmul.bf16.gmra.mxu0 %v826
      %v1141 = vpop.f32.mrf.mxu0
      %v1142 = vadd.f32 0.0, %v1141
      %v1143 = vpop.f32.mrf.mxu0
      %v1144 = vadd.f32 0.0, %v1143
      %1145 = vmatmul.bf16.gmra.mxu0 %v828
      %v1146 = vpop.f32.mrf.mxu0
      %v1147 = vadd.f32 0.0, %v1146
      %v1148 = vpop.f32.mrf.mxu0
      %v1149 = vadd.f32 0.0, %v1148
      %1150 = vmatmul.bf16.gmra.mxu0 %v830
      %v1151 = vpop.f32.mrf.mxu0
      %v1152 = vadd.f32 0.0, %v1151
      %v1153 = vpop.f32.mrf.mxu0
      %v1154 = vadd.f32 0.0, %v1153
      %1155 = vmatmul.bf16.gmra.mxu0 %v832
      %v1156 = vpop.f32.mrf.mxu0
      %v1157 = vadd.f32 0.0, %v1156
      %v1158 = vpop.f32.mrf.mxu0
      %v1159 = vadd.f32 0.0, %v1158
      %1160 = vmatmul.bf16.gmra.mxu0 %v834
      %v1161 = vpop.f32.mrf.mxu0
      %v1162 = vadd.f32 0.0, %v1161
      %v1163 = vpop.f32.mrf.mxu0
      %v1164 = vadd.f32 0.0, %v1163
      %1165 = vmatmul.bf16.gmra.mxu0 %v836
      %v1166 = vpop.f32.mrf.mxu0
      %v1167 = vadd.f32 0.0, %v1166
      %v1168 = vpop.f32.mrf.mxu0
      %v1169 = vadd.f32 0.0, %v1168
      %1170 = vmatmul.bf16.gmra.mxu0 %v838
      %v1171 = vpop.f32.mrf.mxu0
      %v1172 = vadd.f32 0.0, %v1171
      %v1173 = vpop.f32.mrf.mxu0
      %v1174 = vadd.f32 0.0, %v1173
      %1175 = vmatmul.bf16.gmra.mxu0 %v840
      %v1176 = vpop.f32.mrf.mxu0
      %v1177 = vadd.f32 0.0, %v1176
      %v1178 = vpop.f32.mrf.mxu0
      %v1179 = vadd.f32 0.0, %v1178
      %1180 = vdwg.mxu0
      %1181 = vmatpush.bf16.msra.mxu0 %v1001
      %1182 = vmatpush.bf16.msra.mxu0 %v999
      %1183 = vmatpush.bf16.msra.mxu0 %v997
      %1184 = vmatpush.bf16.msra.mxu0 %v995
      %1185 = vmatpush.bf16.msra.mxu0 %v993
      %1186 = vmatpush.bf16.msra.mxu0 %v991
      %1187 = vmatpush.bf16.msra.mxu0 %v989
      %1188 = vmatpush.bf16.msra.mxu0 %v987
      %1189 = vmatmul.bf16.gmra.mxu0 %v827
      %v1190 = vpop.f32.mrf.mxu0
      %v1191 = vadd.f32 %v1142, %v1190
      %v1192 = vpop.f32.mrf.mxu0
      %v1193 = vadd.f32 %v1144, %v1192
      %1194 = vmatmul.bf16.gmra.mxu0 %v829
      %v1195 = vpop.f32.mrf.mxu0
      %v1196 = vadd.f32 %v1147, %v1195
      %v1197 = vpop.f32.mrf.mxu0
      %v1198 = vadd.f32 %v1149, %v1197
      %1199 = vmatmul.bf16.gmra.mxu0 %v831
      %v1200 = vpop.f32.mrf.mxu0
      %v1201 = vadd.f32 %v1152, %v1200
      %v1202 = vpop.f32.mrf.mxu0
      %v1203 = vadd.f32 %v1154, %v1202
      %1204 = vmatmul.bf16.gmra.mxu0 %v833
      %v1205 = vpop.f32.mrf.mxu0
      %v1206 = vadd.f32 %v1157, %v1205
      %v1207 = vpop.f32.mrf.mxu0
      %v1208 = vadd.f32 %v1159, %v1207
      %1209 = vmatmul.bf16.gmra.mxu0 %v835
      %v1210 = vpop.f32.mrf.mxu0
      %v1211 = vadd.f32 %v1162, %v1210
      %v1212 = vpop.f32.mrf.mxu0
      %v1213 = vadd.f32 %v1164, %v1212
      %1214 = vmatmul.bf16.gmra.mxu0 %v837
      %v1215 = vpop.f32.mrf.mxu0
      %v1216 = vadd.f32 %v1167, %v1215
      %v1217 = vpop.f32.mrf.mxu0
      %v1218 = vadd.f32 %v1169, %v1217
      %1219 = vmatmul.bf16.gmra.mxu0 %v839
      %v1220 = vpop.f32.mrf.mxu0
      %v1221 = vadd.f32 %v1172, %v1220
      %v1222 = vpop.f32.mrf.mxu0
      %v1223 = vadd.f32 %v1174, %v1222
      %1224 = vmatmul.bf16.gmra.mxu0 %v841
      %v1225 = vpop.f32.mrf.mxu0
      %v1226 = vadd.f32 %v1177, %v1225
      %v1227 = vpop.f32.mrf.mxu0
      %v1228 = vadd.f32 %v1179, %v1227
      %1229 = vdwg.mxu0
      %v1262 = vunpack.c.l.b16 %v794
      %v1263 = vunpack.c.h.b16 %v794
      %v1264 = vunpack.c.l.b16 %v795
      %v1265 = vunpack.c.h.b16 %v795
      %v1266 = vunpack.c.l.b16 %v796
      %v1267 = vunpack.c.h.b16 %v796
      %v1268 = vunpack.c.l.b16 %v797
      %v1269 = vunpack.c.h.b16 %v797
      %v1270 = vunpack.c.l.b16 %v798
      %v1271 = vunpack.c.h.b16 %v798
      %v1272 = vunpack.c.l.b16 %v799
      %v1273 = vunpack.c.h.b16 %v799
      %v1274 = vunpack.c.l.b16 %v800
      %v1275 = vunpack.c.h.b16 %v800
      %v1276 = vunpack.c.l.b16 %v801
      %v1277 = vunpack.c.h.b16 %v801
      %v1278 = vunpack.c.l.b16 %v802
      %v1279 = vunpack.c.h.b16 %v802
      %v1280 = vunpack.c.l.b16 %v803
      %v1281 = vunpack.c.h.b16 %v803
      %v1282 = vunpack.c.l.b16 %v804
      %v1283 = vunpack.c.h.b16 %v804
      %v1284 = vunpack.c.l.b16 %v805
      %v1285 = vunpack.c.h.b16 %v805
      %v1286 = vunpack.c.l.b16 %v806
      %v1287 = vunpack.c.h.b16 %v806
      %v1288 = vunpack.c.l.b16 %v807
      %v1289 = vunpack.c.h.b16 %v807
      %v1290 = vunpack.c.l.b16 %v808
      %v1291 = vunpack.c.h.b16 %v808
      %v1292 = vunpack.c.l.b16 %v809
      %v1293 = vunpack.c.h.b16 %v809
      %v1294 = vunpack.c.l.b16 %v810
      %v1295 = vunpack.c.h.b16 %v810
      %v1296 = vunpack.c.l.b16 %v811
      %v1297 = vunpack.c.h.b16 %v811
      %v1298 = vunpack.c.l.b16 %v812
      %v1299 = vunpack.c.h.b16 %v812
      %v1300 = vunpack.c.l.b16 %v813
      %v1301 = vunpack.c.h.b16 %v813
      %v1302 = vunpack.c.l.b16 %v814
      %v1303 = vunpack.c.h.b16 %v814
      %v1304 = vunpack.c.l.b16 %v815
      %v1305 = vunpack.c.h.b16 %v815
      %v1306 = vunpack.c.l.b16 %v816
      %v1307 = vunpack.c.h.b16 %v816
      %v1308 = vunpack.c.l.b16 %v817
      %v1309 = vunpack.c.h.b16 %v817
      %v1310 = vunpack.c.l.b16 %v818
      %v1311 = vunpack.c.h.b16 %v818
      %v1312 = vunpack.c.l.b16 %v819
      %v1313 = vunpack.c.h.b16 %v819
      %v1314 = vunpack.c.l.b16 %v820
      %v1315 = vunpack.c.h.b16 %v820
      %v1316 = vunpack.c.l.b16 %v821
      %v1317 = vunpack.c.h.b16 %v821
      %v1318 = vunpack.c.l.b16 %v822
      %v1319 = vunpack.c.h.b16 %v822
      %v1320 = vunpack.c.l.b16 %v823
      %v1321 = vunpack.c.h.b16 %v823
      %v1322 = vunpack.c.l.b16 %v824
      %v1323 = vunpack.c.h.b16 %v824
      %v1324 = vunpack.c.l.b16 %v825
      %v1325 = vunpack.c.h.b16 %v825
      %v1326 = vpack.c.b16 %v1264, %v1262
      %v1327 = vpack.c.b16 %v1265, %v1263
      %v1328 = vpack.c.b16 %v1268, %v1266
      %v1329 = vpack.c.b16 %v1269, %v1267
      %v1330 = vpack.c.b16 %v1272, %v1270
      %v1331 = vpack.c.b16 %v1273, %v1271
      %v1332 = vpack.c.b16 %v1276, %v1274
      %v1333 = vpack.c.b16 %v1277, %v1275
      %v1334 = vpack.c.b16 %v1280, %v1278
      %v1335 = vpack.c.b16 %v1281, %v1279
      %v1336 = vpack.c.b16 %v1284, %v1282
      %v1337 = vpack.c.b16 %v1285, %v1283
      %v1338 = vpack.c.b16 %v1288, %v1286
      %v1339 = vpack.c.b16 %v1289, %v1287
      %v1340 = vpack.c.b16 %v1292, %v1290
      %v1341 = vpack.c.b16 %v1293, %v1291
      %v1342 = vpack.c.b16 %v1296, %v1294
      %v1343 = vpack.c.b16 %v1297, %v1295
      %v1344 = vpack.c.b16 %v1300, %v1298
      %v1345 = vpack.c.b16 %v1301, %v1299
      %v1346 = vpack.c.b16 %v1304, %v1302
      %v1347 = vpack.c.b16 %v1305, %v1303
      %v1348 = vpack.c.b16 %v1308, %v1306
      %v1349 = vpack.c.b16 %v1309, %v1307
      %v1350 = vpack.c.b16 %v1312, %v1310
      %v1351 = vpack.c.b16 %v1313, %v1311
      %v1352 = vpack.c.b16 %v1316, %v1314
      %v1353 = vpack.c.b16 %v1317, %v1315
      %v1354 = vpack.c.b16 %v1320, %v1318
      %v1355 = vpack.c.b16 %v1321, %v1319
      %v1356 = vpack.c.b16 %v1324, %v1322
      %v1357 = vpack.c.b16 %v1325, %v1323
      %1390 = vmatpush.bf16.msra.mxu0 %v1340
      %1391 = vmatpush.bf16.msra.mxu0 %v1338
      %1392 = vmatpush.bf16.msra.mxu0 %v1336
      %1393 = vmatpush.bf16.msra.mxu0 %v1334
      %1394 = vmatpush.bf16.msra.mxu0 %v1332
      %1395 = vmatpush.bf16.msra.mxu0 %v1330
      %1396 = vmatpush.bf16.msra.mxu0 %v1328
      %1397 = vmatpush.bf16.msra.mxu0 %v1326
      %1398 = vmatmul.bf16.gmra.mxu0 %v777
      %v1399 = vpop.f32.mrf.mxu0
      %v1400 = vadd.f32 %v1093, %v1399
      %v1401 = vpop.f32.mrf.mxu0
      %v1402 = vadd.f32 %v1095, %v1401
      %1403 = vmatmul.bf16.gmra.mxu0 %v779
      %v1404 = vpop.f32.mrf.mxu0
      %v1405 = vadd.f32 %v1098, %v1404
      %v1406 = vpop.f32.mrf.mxu0
      %v1407 = vadd.f32 %v1100, %v1406
      %1408 = vmatmul.bf16.gmra.mxu0 %v781
      %v1409 = vpop.f32.mrf.mxu0
      %v1410 = vadd.f32 %v1103, %v1409
      %v1411 = vpop.f32.mrf.mxu0
      %v1412 = vadd.f32 %v1105, %v1411
      %1413 = vmatmul.bf16.gmra.mxu0 %v783
      %v1414 = vpop.f32.mrf.mxu0
      %v1415 = vadd.f32 %v1108, %v1414
      %v1416 = vpop.f32.mrf.mxu0
      %v1417 = vadd.f32 %v1110, %v1416
      %1418 = vmatmul.bf16.gmra.mxu0 %v785
      %v1419 = vpop.f32.mrf.mxu0
      %v1420 = vadd.f32 %v1113, %v1419
      %v1421 = vpop.f32.mrf.mxu0
      %v1422 = vadd.f32 %v1115, %v1421
      %1423 = vmatmul.bf16.gmra.mxu0 %v787
      %v1424 = vpop.f32.mrf.mxu0
      %v1425 = vadd.f32 %v1118, %v1424
      %v1426 = vpop.f32.mrf.mxu0
      %v1427 = vadd.f32 %v1120, %v1426
      %1428 = vmatmul.bf16.gmra.mxu0 %v789
      %v1429 = vpop.f32.mrf.mxu0
      %v1430 = vadd.f32 %v1123, %v1429
      %v1431 = vpop.f32.mrf.mxu0
      %v1432 = vadd.f32 %v1125, %v1431
      %1433 = vmatmul.bf16.gmra.mxu0 %v791
      %v1434 = vpop.f32.mrf.mxu0
      %v1435 = vadd.f32 %v1128, %v1434
      %v1436 = vpop.f32.mrf.mxu0
      %v1437 = vadd.f32 %v1130, %v1436
      %1438 = vdwg.mxu0
      %1439 = vmatpush.bf16.msra.mxu0 %v1356
      %1440 = vmatpush.bf16.msra.mxu0 %v1354
      %1441 = vmatpush.bf16.msra.mxu0 %v1352
      %1442 = vmatpush.bf16.msra.mxu0 %v1350
      %1443 = vmatpush.bf16.msra.mxu0 %v1348
      %1444 = vmatpush.bf16.msra.mxu0 %v1346
      %1445 = vmatpush.bf16.msra.mxu0 %v1344
      %1446 = vmatpush.bf16.msra.mxu0 %v1342
      %1447 = vmatmul.bf16.gmra.mxu0 %v778
      %v1448 = vpop.f32.mrf.mxu0
      %v1449 = vadd.f32 %v1400, %v1448
      %v1450 = vpop.f32.mrf.mxu0
      %v1451 = vadd.f32 %v1402, %v1450
      %1452 = vmatmul.bf16.gmra.mxu0 %v780
      %v1453 = vpop.f32.mrf.mxu0
      %v1454 = vadd.f32 %v1405, %v1453
      %v1455 = vpop.f32.mrf.mxu0
      %v1456 = vadd.f32 %v1407, %v1455
      %1457 = vmatmul.bf16.gmra.mxu0 %v782
      %v1458 = vpop.f32.mrf.mxu0
      %v1459 = vadd.f32 %v1410, %v1458
      %v1460 = vpop.f32.mrf.mxu0
      %v1461 = vadd.f32 %v1412, %v1460
      %1462 = vmatmul.bf16.gmra.mxu0 %v784
      %v1463 = vpop.f32.mrf.mxu0
      %v1464 = vadd.f32 %v1415, %v1463
      %v1465 = vpop.f32.mrf.mxu0
      %v1466 = vadd.f32 %v1417, %v1465
      %1467 = vmatmul.bf16.gmra.mxu0 %v786
      %v1468 = vpop.f32.mrf.mxu0
      %v1469 = vadd.f32 %v1420, %v1468
      %v1470 = vpop.f32.mrf.mxu0
      %v1471 = vadd.f32 %v1422, %v1470
      %1472 = vmatmul.bf16.gmra.mxu0 %v788
      %v1473 = vpop.f32.mrf.mxu0
      %v1474 = vadd.f32 %v1425, %v1473
      %v1475 = vpop.f32.mrf.mxu0
      %v1476 = vadd.f32 %v1427, %v1475
      %1477 = vmatmul.bf16.gmra.mxu0 %v790
      %v1478 = vpop.f32.mrf.mxu0
      %v1479 = vadd.f32 %v1430, %v1478
      %v1480 = vpop.f32.mrf.mxu0
      %v1481 = vadd.f32 %v1432, %v1480
      %1482 = vmatmul.bf16.gmra.mxu0 %v792
      %v1483 = vpop.f32.mrf.mxu0
      %v1484 = vadd.f32 %v1435, %v1483
      %v1485 = vpop.f32.mrf.mxu0
      %v1486 = vadd.f32 %v1437, %v1485
      %1487 = vdwg.mxu0
      %1488 = vmatpush.bf16.msra.mxu0 %v1341
      %1489 = vmatpush.bf16.msra.mxu0 %v1339
      %1490 = vmatpush.bf16.msra.mxu0 %v1337
      %1491 = vmatpush.bf16.msra.mxu0 %v1335
      %1492 = vmatpush.bf16.msra.mxu0 %v1333
      %1493 = vmatpush.bf16.msra.mxu0 %v1331
      %1494 = vmatpush.bf16.msra.mxu0 %v1329
      %1495 = vmatpush.bf16.msra.mxu0 %v1327
      %1496 = vmatmul.bf16.gmra.mxu0 %v777
      %v1497 = vpop.f32.mrf.mxu0
      %v1498 = vadd.f32 %v1191, %v1497
      %v1499 = vpop.f32.mrf.mxu0
      %v1500 = vadd.f32 %v1193, %v1499
      %1501 = vmatmul.bf16.gmra.mxu0 %v779
      %v1502 = vpop.f32.mrf.mxu0
      %v1503 = vadd.f32 %v1196, %v1502
      %v1504 = vpop.f32.mrf.mxu0
      %v1505 = vadd.f32 %v1198, %v1504
      %1506 = vmatmul.bf16.gmra.mxu0 %v781
      %v1507 = vpop.f32.mrf.mxu0
      %v1508 = vadd.f32 %v1201, %v1507
      %v1509 = vpop.f32.mrf.mxu0
      %v1510 = vadd.f32 %v1203, %v1509
      %1511 = vmatmul.bf16.gmra.mxu0 %v783
      %v1512 = vpop.f32.mrf.mxu0
      %v1513 = vadd.f32 %v1206, %v1512
      %v1514 = vpop.f32.mrf.mxu0
      %v1515 = vadd.f32 %v1208, %v1514
      %1516 = vmatmul.bf16.gmra.mxu0 %v785
      %v1517 = vpop.f32.mrf.mxu0
      %v1518 = vadd.f32 %v1211, %v1517
      %v1519 = vpop.f32.mrf.mxu0
      %v1520 = vadd.f32 %v1213, %v1519
      %1521 = vmatmul.bf16.gmra.mxu0 %v787
      %v1522 = vpop.f32.mrf.mxu0
      %v1523 = vadd.f32 %v1216, %v1522
      %v1524 = vpop.f32.mrf.mxu0
      %v1525 = vadd.f32 %v1218, %v1524
      %1526 = vmatmul.bf16.gmra.mxu0 %v789
      %v1527 = vpop.f32.mrf.mxu0
      %v1528 = vadd.f32 %v1221, %v1527
      %v1529 = vpop.f32.mrf.mxu0
      %v1530 = vadd.f32 %v1223, %v1529
      %1531 = vmatmul.bf16.gmra.mxu0 %v791
      %v1532 = vpop.f32.mrf.mxu0
      %v1533 = vadd.f32 %v1226, %v1532
      %v1534 = vpop.f32.mrf.mxu0
      %v1535 = vadd.f32 %v1228, %v1534
      %1536 = vdwg.mxu0
      %1537 = vmatpush.bf16.msra.mxu0 %v1357
      %1538 = vmatpush.bf16.msra.mxu0 %v1355
      %1539 = vmatpush.bf16.msra.mxu0 %v1353
      %1540 = vmatpush.bf16.msra.mxu0 %v1351
      %1541 = vmatpush.bf16.msra.mxu0 %v1349
      %1542 = vmatpush.bf16.msra.mxu0 %v1347
      %1543 = vmatpush.bf16.msra.mxu0 %v1345
      %1544 = vmatpush.bf16.msra.mxu0 %v1343
      %1545 = vmatmul.bf16.gmra.mxu0 %v778
      %v1546 = vpop.f32.mrf.mxu0
      %v1547 = vadd.f32 %v1498, %v1546
      %v1548 = vpop.f32.mrf.mxu0
      %v1549 = vadd.f32 %v1500, %v1548
      %1550 = vmatmul.bf16.gmra.mxu0 %v780
      %v1551 = vpop.f32.mrf.mxu0
      %v1552 = vadd.f32 %v1503, %v1551
      %v1553 = vpop.f32.mrf.mxu0
      %v1554 = vadd.f32 %v1505, %v1553
      %1555 = vmatmul.bf16.gmra.mxu0 %v782
      %v1556 = vpop.f32.mrf.mxu0
      %v1557 = vadd.f32 %v1508, %v1556
      %v1558 = vpop.f32.mrf.mxu0
      %v1559 = vadd.f32 %v1510, %v1558
      %1560 = vmatmul.bf16.gmra.mxu0 %v784
      %v1561 = vpop.f32.mrf.mxu0
      %v1562 = vadd.f32 %v1513, %v1561
      %v1563 = vpop.f32.mrf.mxu0
      %v1564 = vadd.f32 %v1515, %v1563
      %1565 = vmatmul.bf16.gmra.mxu0 %v786
      %v1566 = vpop.f32.mrf.mxu0
      %v1567 = vadd.f32 %v1518, %v1566
      %v1568 = vpop.f32.mrf.mxu0
      %v1569 = vadd.f32 %v1520, %v1568
      %1570 = vmatmul.bf16.gmra.mxu0 %v788
      %v1571 = vpop.f32.mrf.mxu0
      %v1572 = vadd.f32 %v1523, %v1571
      %v1573 = vpop.f32.mrf.mxu0
      %v1574 = vadd.f32 %v1525, %v1573
      %1575 = vmatmul.bf16.gmra.mxu0 %v790
      %v1576 = vpop.f32.mrf.mxu0
      %v1577 = vadd.f32 %v1528, %v1576
      %v1578 = vpop.f32.mrf.mxu0
      %v1579 = vadd.f32 %v1530, %v1578
      %1580 = vmatmul.bf16.gmra.mxu0 %v792
      %v1581 = vpop.f32.mrf.mxu0
      %v1582 = vadd.f32 %v1533, %v1581
      %v1583 = vpop.f32.mrf.mxu0
      %v1584 = vadd.f32 %v1535, %v1583
      %1585 = vdwg.mxu0
      %v1586 = vpack.c.bf16 %v747, %v745
      %v1587 = vpack.c.bf16 %v748, %v746
      %v1588 = vpack.c.bf16 %v751, %v749
      %v1589 = vpack.c.bf16 %v752, %v750
      %v1590 = vpack.c.bf16 %v755, %v753
      %v1591 = vpack.c.bf16 %v756, %v754
      %v1592 = vpack.c.bf16 %v759, %v757
      %v1593 = vpack.c.bf16 %v760, %v758
      %v1594 = vpack.c.bf16 %v763, %v761
      %v1595 = vpack.c.bf16 %v764, %v762
      %v1596 = vpack.c.bf16 %v767, %v765
      %v1597 = vpack.c.bf16 %v768, %v766
      %v1598 = vpack.c.bf16 %v771, %v769
      %v1599 = vpack.c.bf16 %v772, %v770
      %v1600 = vpack.c.bf16 %v775, %v773
      %v1601 = vpack.c.bf16 %v776, %v774
      %s1602 = scalar_lea.vmem %s1, 512
      %v1603 = vld [vmem:[%s1602] sm:$0xff]
      %v1604 = vld [vmem:[%s1602 + $0x8] sm:$0xff]
      %v1605 = vld [vmem:[%s1602 + $0x10] sm:$0xff]
      %v1606 = vld [vmem:[%s1602 + $0x18] sm:$0xff]
      %v1607 = vld [vmem:[%s1602 + $0x20] sm:$0xff]
      %v1608 = vld [vmem:[%s1602 + $0x28] sm:$0xff]
      %v1609 = vld [vmem:[%s1602 + $0x30] sm:$0xff]
      %v1610 = vld [vmem:[%s1602 + $0x38] sm:$0xff]
      %v1611 = vld [vmem:[%s1602 + $0x40] sm:$0xff]
      %v1612 = vld [vmem:[%s1602 + $0x48] sm:$0xff]
      %v1613 = vld [vmem:[%s1602 + $0x50] sm:$0xff]
      %v1614 = vld [vmem:[%s1602 + $0x58] sm:$0xff]
      %v1615 = vld [vmem:[%s1602 + $0x60] sm:$0xff]
      %v1616 = vld [vmem:[%s1602 + $0x68] sm:$0xff]
      %v1617 = vld [vmem:[%s1602 + $0x70] sm:$0xff]
      %v1618 = vld [vmem:[%s1602 + $0x78] sm:$0xff]
      %v1619 = vld [vmem:[%s1602 + $0x80] sm:$0xff]
      %v1620 = vld [vmem:[%s1602 + $0x88] sm:$0xff]
      %v1621 = vld [vmem:[%s1602 + $0x90] sm:$0xff]
      %v1622 = vld [vmem:[%s1602 + $0x98] sm:$0xff]
      %v1623 = vld [vmem:[%s1602 + $0xa0] sm:$0xff]
      %v1624 = vld [vmem:[%s1602 + $0xa8] sm:$0xff]
      %v1625 = vld [vmem:[%s1602 + $0xb0] sm:$0xff]
      %v1626 = vld [vmem:[%s1602 + $0xb8] sm:$0xff]
      %v1627 = vld [vmem:[%s1602 + $0xc0] sm:$0xff]
      %v1628 = vld [vmem:[%s1602 + $0xc8] sm:$0xff]
      %v1629 = vld [vmem:[%s1602 + $0xd0] sm:$0xff]
      %v1630 = vld [vmem:[%s1602 + $0xd8] sm:$0xff]
      %v1631 = vld [vmem:[%s1602 + $0xe0] sm:$0xff]
      %v1632 = vld [vmem:[%s1602 + $0xe8] sm:$0xff]
      %v1633 = vld [vmem:[%s1602 + $0xf0] sm:$0xff]
      %v1634 = vld [vmem:[%s1602 + $0xf8] sm:$0xff]
      %v1667 = vunpack.c.l.b16 %v1603
      %v1668 = vunpack.c.h.b16 %v1603
      %v1669 = vunpack.c.l.b16 %v1604
      %v1670 = vunpack.c.h.b16 %v1604
      %v1671 = vunpack.c.l.b16 %v1605
      %v1672 = vunpack.c.h.b16 %v1605
      %v1673 = vunpack.c.l.b16 %v1606
      %v1674 = vunpack.c.h.b16 %v1606
      %v1675 = vunpack.c.l.b16 %v1607
      %v1676 = vunpack.c.h.b16 %v1607
      %v1677 = vunpack.c.l.b16 %v1608
      %v1678 = vunpack.c.h.b16 %v1608
      %v1679 = vunpack.c.l.b16 %v1609
      %v1680 = vunpack.c.h.b16 %v1609
      %v1681 = vunpack.c.l.b16 %v1610
      %v1682 = vunpack.c.h.b16 %v1610
      %v1683 = vunpack.c.l.b16 %v1611
      %v1684 = vunpack.c.h.b16 %v1611
      %v1685 = vunpack.c.l.b16 %v1612
      %v1686 = vunpack.c.h.b16 %v1612
      %v1687 = vunpack.c.l.b16 %v1613
      %v1688 = vunpack.c.h.b16 %v1613
      %v1689 = vunpack.c.l.b16 %v1614
      %v1690 = vunpack.c.h.b16 %v1614
      %v1691 = vunpack.c.l.b16 %v1615
      %v1692 = vunpack.c.h.b16 %v1615
      %v1693 = vunpack.c.l.b16 %v1616
      %v1694 = vunpack.c.h.b16 %v1616
      %v1695 = vunpack.c.l.b16 %v1617
      %v1696 = vunpack.c.h.b16 %v1617
      %v1697 = vunpack.c.l.b16 %v1618
      %v1698 = vunpack.c.h.b16 %v1618
      %v1699 = vunpack.c.l.b16 %v1619
      %v1700 = vunpack.c.h.b16 %v1619
      %v1701 = vunpack.c.l.b16 %v1620
      %v1702 = vunpack.c.h.b16 %v1620
      %v1703 = vunpack.c.l.b16 %v1621
      %v1704 = vunpack.c.h.b16 %v1621
      %v1705 = vunpack.c.l.b16 %v1622
      %v1706 = vunpack.c.h.b16 %v1622
      %v1707 = vunpack.c.l.b16 %v1623
      %v1708 = vunpack.c.h.b16 %v1623
      %v1709 = vunpack.c.l.b16 %v1624
      %v1710 = vunpack.c.h.b16 %v1624
      %v1711 = vunpack.c.l.b16 %v1625
      %v1712 = vunpack.c.h.b16 %v1625
      %v1713 = vunpack.c.l.b16 %v1626
      %v1714 = vunpack.c.h.b16 %v1626
      %v1715 = vunpack.c.l.b16 %v1627
      %v1716 = vunpack.c.h.b16 %v1627
      %v1717 = vunpack.c.l.b16 %v1628
      %v1718 = vunpack.c.h.b16 %v1628
      %v1719 = vunpack.c.l.b16 %v1629
      %v1720 = vunpack.c.h.b16 %v1629
      %v1721 = vunpack.c.l.b16 %v1630
      %v1722 = vunpack.c.h.b16 %v1630
      %v1723 = vunpack.c.l.b16 %v1631
      %v1724 = vunpack.c.h.b16 %v1631
      %v1725 = vunpack.c.l.b16 %v1632
      %v1726 = vunpack.c.h.b16 %v1632
      %v1727 = vunpack.c.l.b16 %v1633
      %v1728 = vunpack.c.h.b16 %v1633
      %v1729 = vunpack.c.l.b16 %v1634
      %v1730 = vunpack.c.h.b16 %v1634
      %v1731 = vpack.c.b16 %v1669, %v1667
      %v1732 = vpack.c.b16 %v1670, %v1668
      %v1733 = vpack.c.b16 %v1673, %v1671
      %v1734 = vpack.c.b16 %v1674, %v1672
      %v1735 = vpack.c.b16 %v1677, %v1675
      %v1736 = vpack.c.b16 %v1678, %v1676
      %v1737 = vpack.c.b16 %v1681, %v1679
      %v1738 = vpack.c.b16 %v1682, %v1680
      %v1739 = vpack.c.b16 %v1685, %v1683
      %v1740 = vpack.c.b16 %v1686, %v1684
      %v1741 = vpack.c.b16 %v1689, %v1687
      %v1742 = vpack.c.b16 %v1690, %v1688
      %v1743 = vpack.c.b16 %v1693, %v1691
      %v1744 = vpack.c.b16 %v1694, %v1692
      %v1745 = vpack.c.b16 %v1697, %v1695
      %v1746 = vpack.c.b16 %v1698, %v1696
      %v1747 = vpack.c.b16 %v1701, %v1699
      %v1748 = vpack.c.b16 %v1702, %v1700
      %v1749 = vpack.c.b16 %v1705, %v1703
      %v1750 = vpack.c.b16 %v1706, %v1704
      %v1751 = vpack.c.b16 %v1709, %v1707
      %v1752 = vpack.c.b16 %v1710, %v1708
      %v1753 = vpack.c.b16 %v1713, %v1711
      %v1754 = vpack.c.b16 %v1714, %v1712
      %v1755 = vpack.c.b16 %v1717, %v1715
      %v1756 = vpack.c.b16 %v1718, %v1716
      %v1757 = vpack.c.b16 %v1721, %v1719
      %v1758 = vpack.c.b16 %v1722, %v1720
      %v1759 = vpack.c.b16 %v1725, %v1723
      %v1760 = vpack.c.b16 %v1726, %v1724
      %v1761 = vpack.c.b16 %v1729, %v1727
      %v1762 = vpack.c.b16 %v1730, %v1728
      %1795 = vmatpush.bf16.msra.mxu0 %v1745
      %1796 = vmatpush.bf16.msra.mxu0 %v1743
      %1797 = vmatpush.bf16.msra.mxu0 %v1741
      %1798 = vmatpush.bf16.msra.mxu0 %v1739
      %1799 = vmatpush.bf16.msra.mxu0 %v1737
      %1800 = vmatpush.bf16.msra.mxu0 %v1735
      %1801 = vmatpush.bf16.msra.mxu0 %v1733
      %1802 = vmatpush.bf16.msra.mxu0 %v1731
      %1803 = vmatmul.bf16.gmra.mxu0 %v1586
      %v1804 = vpop.f32.mrf.mxu0
      %v1805 = vadd.f32 0.0, %v1804
      %v1806 = vpop.f32.mrf.mxu0
      %v1807 = vadd.f32 0.0, %v1806
      %1808 = vmatmul.bf16.gmra.mxu0 %v1588
      %v1809 = vpop.f32.mrf.mxu0
      %v1810 = vadd.f32 0.0, %v1809
      %v1811 = vpop.f32.mrf.mxu0
      %v1812 = vadd.f32 0.0, %v1811
      %1813 = vmatmul.bf16.gmra.mxu0 %v1590
      %v1814 = vpop.f32.mrf.mxu0
      %v1815 = vadd.f32 0.0, %v1814
      %v1816 = vpop.f32.mrf.mxu0
      %v1817 = vadd.f32 0.0, %v1816
      %1818 = vmatmul.bf16.gmra.mxu0 %v1592
      %v1819 = vpop.f32.mrf.mxu0
      %v1820 = vadd.f32 0.0, %v1819
      %v1821 = vpop.f32.mrf.mxu0
      %v1822 = vadd.f32 0.0, %v1821
      %1823 = vmatmul.bf16.gmra.mxu0 %v1594
      %v1824 = vpop.f32.mrf.mxu0
      %v1825 = vadd.f32 0.0, %v1824
      %v1826 = vpop.f32.mrf.mxu0
      %v1827 = vadd.f32 0.0, %v1826
      %1828 = vmatmul.bf16.gmra.mxu0 %v1596
      %v1829 = vpop.f32.mrf.mxu0
      %v1830 = vadd.f32 0.0, %v1829
      %v1831 = vpop.f32.mrf.mxu0
      %v1832 = vadd.f32 0.0, %v1831
      %1833 = vmatmul.bf16.gmra.mxu0 %v1598
      %v1834 = vpop.f32.mrf.mxu0
      %v1835 = vadd.f32 0.0, %v1834
      %v1836 = vpop.f32.mrf.mxu0
      %v1837 = vadd.f32 0.0, %v1836
      %1838 = vmatmul.bf16.gmra.mxu0 %v1600
      %v1839 = vpop.f32.mrf.mxu0
      %v1840 = vadd.f32 0.0, %v1839
      %v1841 = vpop.f32.mrf.mxu0
      %v1842 = vadd.f32 0.0, %v1841
      %1843 = vdwg.mxu0
      %1844 = vmatpush.bf16.msra.mxu0 %v1761
      %1845 = vmatpush.bf16.msra.mxu0 %v1759
      %1846 = vmatpush.bf16.msra.mxu0 %v1757
      %1847 = vmatpush.bf16.msra.mxu0 %v1755
      %1848 = vmatpush.bf16.msra.mxu0 %v1753
      %1849 = vmatpush.bf16.msra.mxu0 %v1751
      %1850 = vmatpush.bf16.msra.mxu0 %v1749
      %1851 = vmatpush.bf16.msra.mxu0 %v1747
      %1852 = vmatmul.bf16.gmra.mxu0 %v1587
      %v1853 = vpop.f32.mrf.mxu0
      %v1854 = vadd.f32 %v1805, %v1853
      %v1855 = vpop.f32.mrf.mxu0
      %v1856 = vadd.f32 %v1807, %v1855
      %1857 = vmatmul.bf16.gmra.mxu0 %v1589
      %v1858 = vpop.f32.mrf.mxu0
      %v1859 = vadd.f32 %v1810, %v1858
      %v1860 = vpop.f32.mrf.mxu0
      %v1861 = vadd.f32 %v1812, %v1860
      %1862 = vmatmul.bf16.gmra.mxu0 %v1591
      %v1863 = vpop.f32.mrf.mxu0
      %v1864 = vadd.f32 %v1815, %v1863
      %v1865 = vpop.f32.mrf.mxu0
      %v1866 = vadd.f32 %v1817, %v1865
      %1867 = vmatmul.bf16.gmra.mxu0 %v1593
      %v1868 = vpop.f32.mrf.mxu0
      %v1869 = vadd.f32 %v1820, %v1868
      %v1870 = vpop.f32.mrf.mxu0
      %v1871 = vadd.f32 %v1822, %v1870
      %1872 = vmatmul.bf16.gmra.mxu0 %v1595
      %v1873 = vpop.f32.mrf.mxu0
      %v1874 = vadd.f32 %v1825, %v1873
      %v1875 = vpop.f32.mrf.mxu0
      %v1876 = vadd.f32 %v1827, %v1875
      %1877 = vmatmul.bf16.gmra.mxu0 %v1597
      %v1878 = vpop.f32.mrf.mxu0
      %v1879 = vadd.f32 %v1830, %v1878
      %v1880 = vpop.f32.mrf.mxu0
      %v1881 = vadd.f32 %v1832, %v1880
      %1882 = vmatmul.bf16.gmra.mxu0 %v1599
      %v1883 = vpop.f32.mrf.mxu0
      %v1884 = vadd.f32 %v1835, %v1883
      %v1885 = vpop.f32.mrf.mxu0
      %v1886 = vadd.f32 %v1837, %v1885
      %1887 = vmatmul.bf16.gmra.mxu0 %v1601
      %v1888 = vpop.f32.mrf.mxu0
      %v1889 = vadd.f32 %v1840, %v1888
      %v1890 = vpop.f32.mrf.mxu0
      %v1891 = vadd.f32 %v1842, %v1890
      %1892 = vdwg.mxu0
      %1893 = vmatpush.bf16.msra.mxu0 %v1746
      %1894 = vmatpush.bf16.msra.mxu0 %v1744
      %1895 = vmatpush.bf16.msra.mxu0 %v1742
      %1896 = vmatpush.bf16.msra.mxu0 %v1740
      %1897 = vmatpush.bf16.msra.mxu0 %v1738
      %1898 = vmatpush.bf16.msra.mxu0 %v1736
      %1899 = vmatpush.bf16.msra.mxu0 %v1734
      %1900 = vmatpush.bf16.msra.mxu0 %v1732
      %1901 = vmatmul.bf16.gmra.mxu0 %v1586
      %v1902 = vpop.f32.mrf.mxu0
      %v1903 = vadd.f32 0.0, %v1902
      %v1904 = vpop.f32.mrf.mxu0
      %v1905 = vadd.f32 0.0, %v1904
      %1906 = vmatmul.bf16.gmra.mxu0 %v1588
      %v1907 = vpop.f32.mrf.mxu0
      %v1908 = vadd.f32 0.0, %v1907
      %v1909 = vpop.f32.mrf.mxu0
      %v1910 = vadd.f32 0.0, %v1909
      %1911 = vmatmul.bf16.gmra.mxu0 %v1590
      %v1912 = vpop.f32.mrf.mxu0
      %v1913 = vadd.f32 0.0, %v1912
      %v1914 = vpop.f32.mrf.mxu0
      %v1915 = vadd.f32 0.0, %v1914
      %1916 = vmatmul.bf16.gmra.mxu0 %v1592
      %v1917 = vpop.f32.mrf.mxu0
      %v1918 = vadd.f32 0.0, %v1917
      %v1919 = vpop.f32.mrf.mxu0
      %v1920 = vadd.f32 0.0, %v1919
      %1921 = vmatmul.bf16.gmra.mxu0 %v1594
      %v1922 = vpop.f32.mrf.mxu0
      %v1923 = vadd.f32 0.0, %v1922
      %v1924 = vpop.f32.mrf.mxu0
      %v1925 = vadd.f32 0.0, %v1924
      %1926 = vmatmul.bf16.gmra.mxu0 %v1596
      %v1927 = vpop.f32.mrf.mxu0
      %v1928 = vadd.f32 0.0, %v1927
      %v1929 = vpop.f32.mrf.mxu0
      %v1930 = vadd.f32 0.0, %v1929
      %1931 = vmatmul.bf16.gmra.mxu0 %v1598
      %v1932 = vpop.f32.mrf.mxu0
      %v1933 = vadd.f32 0.0, %v1932
      %v1934 = vpop.f32.mrf.mxu0
      %v1935 = vadd.f32 0.0, %v1934
      %1936 = vmatmul.bf16.gmra.mxu0 %v1600
      %v1937 = vpop.f32.mrf.mxu0
      %v1938 = vadd.f32 0.0, %v1937
      %v1939 = vpop.f32.mrf.mxu0
      %v1940 = vadd.f32 0.0, %v1939
      %1941 = vdwg.mxu0
      %1942 = vmatpush.bf16.msra.mxu0 %v1762
      %1943 = vmatpush.bf16.msra.mxu0 %v1760
      %1944 = vmatpush.bf16.msra.mxu0 %v1758
      %1945 = vmatpush.bf16.msra.mxu0 %v1756
      %1946 = vmatpush.bf16.msra.mxu0 %v1754
      %1947 = vmatpush.bf16.msra.mxu0 %v1752
      %1948 = vmatpush.bf16.msra.mxu0 %v1750
      %1949 = vmatpush.bf16.msra.mxu0 %v1748
      %1950 = vmatmul.bf16.gmra.mxu0 %v1587
      %v1951 = vpop.f32.mrf.mxu0
      %v1952 = vadd.f32 %v1903, %v1951
      %v1953 = vpop.f32.mrf.mxu0
      %v1954 = vadd.f32 %v1905, %v1953
      %1955 = vmatmul.bf16.gmra.mxu0 %v1589
      %v1956 = vpop.f32.mrf.mxu0
      %v1957 = vadd.f32 %v1908, %v1956
      %v1958 = vpop.f32.mrf.mxu0
      %v1959 = vadd.f32 %v1910, %v1958
      %1960 = vmatmul.bf16.gmra.mxu0 %v1591
      %v1961 = vpop.f32.mrf.mxu0
      %v1962 = vadd.f32 %v1913, %v1961
      %v1963 = vpop.f32.mrf.mxu0
      %v1964 = vadd.f32 %v1915, %v1963
      %1965 = vmatmul.bf16.gmra.mxu0 %v1593
      %v1966 = vpop.f32.mrf.mxu0
      %v1967 = vadd.f32 %v1918, %v1966
      %v1968 = vpop.f32.mrf.mxu0
      %v1969 = vadd.f32 %v1920, %v1968
      %1970 = vmatmul.bf16.gmra.mxu0 %v1595
      %v1971 = vpop.f32.mrf.mxu0
      %v1972 = vadd.f32 %v1923, %v1971
      %v1973 = vpop.f32.mrf.mxu0
      %v1974 = vadd.f32 %v1925, %v1973
      %1975 = vmatmul.bf16.gmra.mxu0 %v1597
      %v1976 = vpop.f32.mrf.mxu0
      %v1977 = vadd.f32 %v1928, %v1976
      %v1978 = vpop.f32.mrf.mxu0
      %v1979 = vadd.f32 %v1930, %v1978
      %1980 = vmatmul.bf16.gmra.mxu0 %v1599
      %v1981 = vpop.f32.mrf.mxu0
      %v1982 = vadd.f32 %v1933, %v1981
      %v1983 = vpop.f32.mrf.mxu0
      %v1984 = vadd.f32 %v1935, %v1983
      %1985 = vmatmul.bf16.gmra.mxu0 %v1601
      %v1986 = vpop.f32.mrf.mxu0
      %v1987 = vadd.f32 %v1938, %v1986
      %v1988 = vpop.f32.mrf.mxu0
      %v1989 = vadd.f32 %v1940, %v1988
      %1990 = vdwg.mxu0
      %v1991 = vadd.f32 %v1449, %v1854
      %v1992 = vadd.f32 %v1547, %v1952
      %v1993 = vadd.f32 %v1451, %v1856
      %v1994 = vadd.f32 %v1549, %v1954
      %v1995 = vadd.f32 %v1454, %v1859
      %v1996 = vadd.f32 %v1552, %v1957
      %v1997 = vadd.f32 %v1456, %v1861
      %v1998 = vadd.f32 %v1554, %v1959
      %v1999 = vadd.f32 %v1459, %v1864
      %v2000 = vadd.f32 %v1557, %v1962
      %v2001 = vadd.f32 %v1461, %v1866
      %v2002 = vadd.f32 %v1559, %v1964
      %v2003 = vadd.f32 %v1464, %v1869
      %v2004 = vadd.f32 %v1562, %v1967
      %v2005 = vadd.f32 %v1466, %v1871
      %v2006 = vadd.f32 %v1564, %v1969
      %v2007 = vadd.f32 %v1469, %v1874
      %v2008 = vadd.f32 %v1567, %v1972
      %v2009 = vadd.f32 %v1471, %v1876
      %v2010 = vadd.f32 %v1569, %v1974
      %v2011 = vadd.f32 %v1474, %v1879
      %v2012 = vadd.f32 %v1572, %v1977
      %v2013 = vadd.f32 %v1476, %v1881
      %v2014 = vadd.f32 %v1574, %v1979
      %v2015 = vadd.f32 %v1479, %v1884
      %v2016 = vadd.f32 %v1577, %v1982
      %v2017 = vadd.f32 %v1481, %v1886
      %v2018 = vadd.f32 %v1579, %v1984
      %v2019 = vadd.f32 %v1484, %v1889
      %v2020 = vadd.f32 %v1582, %v1987
      %v2021 = vadd.f32 %v1486, %v1891
      %v2022 = vadd.f32 %v1584, %v1989
      %v2023 = vpack.c.bf16 %v1992, %v1991
      %v2024 = vpack.c.bf16 %v1994, %v1993
      %v2025 = vpack.c.bf16 %v1996, %v1995
      %v2026 = vpack.c.bf16 %v1998, %v1997
      %v2027 = vpack.c.bf16 %v2000, %v1999
      %v2028 = vpack.c.bf16 %v2002, %v2001
      %v2029 = vpack.c.bf16 %v2004, %v2003
      %v2030 = vpack.c.bf16 %v2006, %v2005
      %v2031 = vpack.c.bf16 %v2008, %v2007
      %v2032 = vpack.c.bf16 %v2010, %v2009
      %v2033 = vpack.c.bf16 %v2012, %v2011
      %v2034 = vpack.c.bf16 %v2014, %v2013
      %v2035 = vpack.c.bf16 %v2016, %v2015
      %v2036 = vpack.c.bf16 %v2018, %v2017
      %v2037 = vpack.c.bf16 %v2020, %v2019
      %v2038 = vpack.c.bf16 %v2022, %v2021
      %2039 = vst [vmem:[%s239] sm:$0xff] %v2023
      %2040 = vst [vmem:[%s239 + $0x8] sm:$0xff] %v2024
      %2041 = vst [vmem:[%s239 + $0x10] sm:$0xff] %v2025
      %2042 = vst [vmem:[%s239 + $0x18] sm:$0xff] %v2026
      %2043 = vst [vmem:[%s239 + $0x20] sm:$0xff] %v2027
      %2044 = vst [vmem:[%s239 + $0x28] sm:$0xff] %v2028
      %2045 = vst [vmem:[%s239 + $0x30] sm:$0xff] %v2029
      %2046 = vst [vmem:[%s239 + $0x38] sm:$0xff] %v2030
      %2047 = vst [vmem:[%s239 + $0x40] sm:$0xff] %v2031
      %2048 = vst [vmem:[%s239 + $0x48] sm:$0xff] %v2032
      %2049 = vst [vmem:[%s239 + $0x50] sm:$0xff] %v2033
      %2050 = vst [vmem:[%s239 + $0x58] sm:$0xff] %v2034
      %2051 = vst [vmem:[%s239 + $0x60] sm:$0xff] %v2035
      %2052 = vst [vmem:[%s239 + $0x68] sm:$0xff] %v2036
      %2053 = vst [vmem:[%s239 + $0x70] sm:$0xff] %v2037
      %2054 = vst [vmem:[%s239 + $0x78] sm:$0xff] %v2038
      %v2055 = vadd.f32 %v1991, %v1993
      %v2056 = vadd.f32 %v2055, %v1995
      %v2057 = vadd.f32 %v2056, %v1997
      %v2058 = vadd.f32 %v2057, %v1999
      %v2059 = vadd.f32 %v2058, %v2001
      %v2060 = vadd.f32 %v2059, %v2003
      %v2061 = vadd.f32 %v2060, %v2005
      %v2062 = vadd.f32 %v2061, %v2007
      %v2063 = vadd.f32 %v2062, %v2009
      %v2064 = vadd.f32 %v2063, %v2011
      %v2065 = vadd.f32 %v2064, %v2013
      %v2066 = vadd.f32 %v2065, %v2015
      %v2067 = vadd.f32 %v2066, %v2017
      %v2068 = vadd.f32 %v2067, %v2019
      %v2069 = vadd.f32 %v2068, %v2021
      %v2070 = vrot.slane %v2069, 4
      %v2071 = vadd.f32 %v2069, %v2070
      %v2072 = vrot.slane %v2071, 2
      %v2073 = vadd.f32 %v2071, %v2072
      %v2074 = vrot.slane %v2073, 1
      %v2075 = vadd.f32 %v2073, %v2074
      %v2076 = vadd.f32 %v1992, %v1994
      %v2077 = vadd.f32 %v2076, %v1996
      %v2078 = vadd.f32 %v2077, %v1998
      %v2079 = vadd.f32 %v2078, %v2000
      %v2080 = vadd.f32 %v2079, %v2002
      %v2081 = vadd.f32 %v2080, %v2004
      %v2082 = vadd.f32 %v2081, %v2006
      %v2083 = vadd.f32 %v2082, %v2008
      %v2084 = vadd.f32 %v2083, %v2010
      %v2085 = vadd.f32 %v2084, %v2012
      %v2086 = vadd.f32 %v2085, %v2014
      %v2087 = vadd.f32 %v2086, %v2016
      %v2088 = vadd.f32 %v2087, %v2018
      %v2089 = vadd.f32 %v2088, %v2020
      %v2090 = vadd.f32 %v2089, %v2022
      %v2091 = vrot.slane %v2090, 4
      %v2092 = vadd.f32 %v2090, %v2091
      %v2093 = vrot.slane %v2092, 2
      %v2094 = vadd.f32 %v2092, %v2093
      %v2095 = vrot.slane %v2094, 1
      %v2096 = vadd.f32 %v2094, %v2095
      %v2099 = vrot.slane %v2096, 7
      %vm2100 = vcmask 1040384
      %v2101 = vsel %vm2100, %v2075, %v2099
      %v2103 = vlaneseq
      %vm2104 = vcmp.ge.s32.totalorder %v2103, 0
      %vm2105 = vcmp.lt.s32.totalorder %v2103, 256
      %vm2106 = vmand %vm2104, %vm2105
      %2107 = vst.msk [vmem:[%s245] ss:$2 sm:$0x3] %vm2106, %v2101
      %v2108 = vmul.f32 %v1991, %v1991
      %v2109 = vmul.f32 %v1992, %v1992
      %v2110 = vmul.f32 %v1993, %v1993
      %v2111 = vmul.f32 %v1994, %v1994
      %v2112 = vmul.f32 %v1995, %v1995
      %v2113 = vmul.f32 %v1996, %v1996
      %v2114 = vmul.f32 %v1997, %v1997
      %v2115 = vmul.f32 %v1998, %v1998
      %v2116 = vmul.f32 %v1999, %v1999
      %v2117 = vmul.f32 %v2000, %v2000
      %v2118 = vmul.f32 %v2001, %v2001
      %v2119 = vmul.f32 %v2002, %v2002
      %v2120 = vmul.f32 %v2003, %v2003
      %v2121 = vmul.f32 %v2004, %v2004
      %v2122 = vmul.f32 %v2005, %v2005
      %v2123 = vmul.f32 %v2006, %v2006
      %v2124 = vmul.f32 %v2007, %v2007
      %v2125 = vmul.f32 %v2008, %v2008
      %v2126 = vmul.f32 %v2009, %v2009
      %v2127 = vmul.f32 %v2010, %v2010
      %v2128 = vmul.f32 %v2011, %v2011
      %v2129 = vmul.f32 %v2012, %v2012
      %v2130 = vmul.f32 %v2013, %v2013
      %v2131 = vmul.f32 %v2014, %v2014
      %v2132 = vmul.f32 %v2015, %v2015
      %v2133 = vmul.f32 %v2016, %v2016
      %v2134 = vmul.f32 %v2017, %v2017
      %v2135 = vmul.f32 %v2018, %v2018
      %v2136 = vmul.f32 %v2019, %v2019
      %v2137 = vmul.f32 %v2020, %v2020
      %v2138 = vmul.f32 %v2021, %v2021
      %v2139 = vmul.f32 %v2022, %v2022
      %v2140 = vadd.f32 %v2108, %v2110
      %v2141 = vadd.f32 %v2140, %v2112
      %v2142 = vadd.f32 %v2141, %v2114
      %v2143 = vadd.f32 %v2142, %v2116
      %v2144 = vadd.f32 %v2143, %v2118
      %v2145 = vadd.f32 %v2144, %v2120
      %v2146 = vadd.f32 %v2145, %v2122
      %v2147 = vadd.f32 %v2146, %v2124
      %v2148 = vadd.f32 %v2147, %v2126
      %v2149 = vadd.f32 %v2148, %v2128
      %v2150 = vadd.f32 %v2149, %v2130
      %v2151 = vadd.f32 %v2150, %v2132
      %v2152 = vadd.f32 %v2151, %v2134
      %v2153 = vadd.f32 %v2152, %v2136
      %v2154 = vadd.f32 %v2153, %v2138
      %v2155 = vrot.slane %v2154, 4
      %v2156 = vadd.f32 %v2154, %v2155
      %v2157 = vrot.slane %v2156, 2
      %v2158 = vadd.f32 %v2156, %v2157
      %v2159 = vrot.slane %v2158, 1
      %v2160 = vadd.f32 %v2158, %v2159
      %v2161 = vadd.f32 %v2109, %v2111
      %v2162 = vadd.f32 %v2161, %v2113
      %v2163 = vadd.f32 %v2162, %v2115
      %v2164 = vadd.f32 %v2163, %v2117
      %v2165 = vadd.f32 %v2164, %v2119
      %v2166 = vadd.f32 %v2165, %v2121
      %v2167 = vadd.f32 %v2166, %v2123
      %v2168 = vadd.f32 %v2167, %v2125
      %v2169 = vadd.f32 %v2168, %v2127
      %v2170 = vadd.f32 %v2169, %v2129
      %v2171 = vadd.f32 %v2170, %v2131
      %v2172 = vadd.f32 %v2171, %v2133
      %v2173 = vadd.f32 %v2172, %v2135
      %v2174 = vadd.f32 %v2173, %v2137
      %v2175 = vadd.f32 %v2174, %v2139
      %v2176 = vrot.slane %v2175, 4
      %v2177 = vadd.f32 %v2175, %v2176
      %v2178 = vrot.slane %v2177, 2
      %v2179 = vadd.f32 %v2177, %v2178
      %v2180 = vrot.slane %v2179, 1
      %v2181 = vadd.f32 %v2179, %v2180
      %v2184 = vrot.slane %v2181, 7
      %v2185 = vsel %vm2100, %v2160, %v2184
      %s2187 = scalar_lea.vmem %s245, 1
      %2188 = vst.msk [vmem:[%s2187] ss:$2 sm:$0x3] %vm2106, %v2185
      %s2189 = smul.u32 8, %s17
      %p2190 = scmp.lt.s32.totalorder %s2189, 31
      %s2191 = scalar_select %p2190, %s2189, 31
      %s2192 = smul.addr %s2191, 4
      %s2193 = smul.addr %s2192, 4
      %s2194 = scalar_lea.vmem %s4, %s2193
      %p2195 = scmp.lt.s32.totalorder %s17, 3
      %s2196 = scalar_select %p2195, %s17, 3
      %s2197 = smul.addr %s2196, 2
      %s2198 = smul.addr %s2197, 2
      %s2199 = scalar_lea.vmem %s5, %s2198
      // Predicated region
      $region37: #{forward_layer.6} parent=35 // pred_check
        %p2200 = pneg %p124
      $region38: #{forward_layer.6} parent=35 // pred_check_branch
        %2202 = sbr.rel (%p2200) target = $region40
      $region39: #{forward_layer.6} parent=35 // pred_region
        %s2203 = smul.u32 8, %s17
      $region40: #{forward_layer.6} parent=35 // pred_fallthru
        _
      // Predicated region
      $region41: #{forward_layer.6} parent=35 // pred_check
        %p2204 = pneg %p150
      $region42: #{forward_layer.6} parent=35 // pred_check_branch
        %2206 = sbr.rel (%p2204) target = $region44
      $region43: #{forward_layer.6} parent=35 // pred_region
        _
      $region44: #{forward_layer.6} parent=35 // pred_fallthru
        _
    $region36: #{forward_layer.6} parent=5 // pred_fallthru
      _
    %p2207 = scmp.le.s32.totalorder 2, %s12
    // Predicated region
    $region45: #{forward_layer.6} parent=5 // pred_check
      %p2208 = pneg %p2207
    $region46: #{forward_layer.6} parent=5 // pred_check_branch
      %2210 = sbr.rel (%p2208) target = $region48
    $region47: #{forward_layer.6} parent=5 // pred_region
      %s2211 = ssub.s32 %s12, 2
      // Predicated region
      $region49: #{forward_layer.6} parent=47 // pred_check
        %p2212 = pneg %p130
      $region50: #{forward_layer.6} parent=47 // pred_check_branch
        %2214 = sbr.rel (%p2212) target = $region52
      $region51: #{forward_layer.6} parent=47 // pred_region
        %s2215 = smul.u32 8, %s18
        %p2216 = scmp.lt.s32.totalorder %s2215, 31
        %s2217 = scalar_select %p2216, %s2215, 31
        %s2218 = smul.addr %s2217, 4
        %s2219 = smul.addr %s2218, 4
        %s2220 = scalar_lea.vmem %s4, %s2219
      $region52: #{forward_layer.6} parent=47 // pred_fallthru
        _
      // Predicated region
      $region53: #{forward_layer.6} parent=47 // pred_check
        %p2221 = pneg %p156
      $region54: #{forward_layer.6} parent=47 // pred_check_branch
        %2223 = sbr.rel (%p2221) target = $region56
      $region55: #{forward_layer.6} parent=47 // pred_region
        %p2224 = scmp.lt.s32.totalorder %s18, 3
        %s2225 = scalar_select %p2224, %s18, 3
        %s2226 = smul.addr %s2225, 2
        %s2227 = smul.addr %s2226, 2
        %s2228 = scalar_lea.vmem %s5, %s2227
      $region56: #{forward_layer.6} parent=47 // pred_fallthru
        _
    $region48: #{forward_layer.6} parent=5 // pred_fallthru
      _
  $region6: #{forward_layer.6} parent=0 // loop_footer
    %s16 = sadd.s32 1, %s12
  $region7: #{forward_layer.6} parent=0 // loop_footer_branch
    %11 = sbr.rel target = $region3
  $region8: #{forward_layer.6} parent=0 // loop_exit
    _

// kernel: forward_layer.7
$region0: #{forward_layer.7}
  #allocation0 [shape = 'u32[]', space=smem, size = 0x4, offset = 0x4, fixed_abs, tag = 'smem constant byte address 0x4 - core index']
  #allocation1 [shape = 'u32[72,128]{1,0:T(1,128)}', space=vmem, size = 0x9000, scoped, tag = 'internal scratch']
  %s0 = inlined_call_operand.vmem [shape: bf16[32,16,256], index: 0, kind: input, shape index: {}]
  %s1 = inlined_call_operand.vmem [shape: bf16[3,256,256], index: 1, kind: input, shape index: {}]
  %s2 = inlined_call_operand.vmem [shape: f32[1,256], index: 2, kind: input, shape index: {}]
  %s3 = inlined_call_operand.vmem [shape: f32[1,256], index: 3, kind: input, shape index: {}]
  %s4 = inlined_call_operand.vmem [shape: bf16[32,16,256], index: 4, kind: output, shape index: {0}]
  %s5 = inlined_call_operand.vmem [shape: f32[4,2,256], index: 5, kind: output, shape index: {1}]
  %6 = xla_tuple %s4, %s5
  %s7 = sld [smem:[#allocation0]]
  $region57: #{forward_layer.7} parent=0
    _
  %s9 = ssub.s32 1, %s7
  %s10 = scalar_select 0, %s9, %s7
  loop: start=0, step=1, limit=6
  $region2: #{forward_layer.7} parent=0 // loop_pre_header
    _
  $region3: #{forward_layer.7} parent=0 // loop_header
    %s12 = sphi 0, %s16
    %p13 = scmp.ge.s32.totalorder %s12, 6
    %s22 = sphi 0, %s24
    %s25 = sphi 0, %s22
    %s26 = sphi 0, %s25
    %s42 = sphi 0, %s26
    %s46 = sphi 0, %s46
    %s48 = sphi 0, %s46
    %s49 = sphi 0, %s48
    %s63 = sphi 0, %s49
    %s67 = sphi 0, %s67
    %s69 = sphi 0, %s67
    %s70 = sphi 0, %s69
    %s84 = sphi 0, %s70
    %s88 = sphi 0, %s88
    %s90 = sphi 0, %s88
    %s91 = sphi 0, %s90
    %s105 = sphi 0, %s91
    %s111 = sphi 0, %s113
    %s114 = sphi 0, %s111
    %s115 = sphi 0, %s114
    %s131 = sphi 0, %s115
    %s137 = sphi 0, %s139
    %s140 = sphi 0, %s137
    %s141 = sphi 0, %s140
    %s157 = sphi 0, %s141
  $region4: #{forward_layer.7} parent=0 // loop_header_branch
    %15 = sbr.rel (%p13) target = $region8
  $region5: #{forward_layer.7} parent=0 // loop_body
    %s17 = ssub.s32 %s12, 1
    %s18 = ssub.s32 %s12, 2
    %s19 = sadd.s32 %s12, 1
    %s20 = ssub.s32 %s12, %s19
    %p21 = scmp.eq.s32.totalorder %s20, 0
    %s23 = sadd.s32 %s22, 1
    %s24 = scalar_select %p21, %s22, %s23
    %p27 = pneg %p21
    %p28 = scmp.eq.s32.totalorder %s12, 3
    %p29 = por %p27, %p28
    %p30 = scmp.ne.s32.totalorder %s22, %s25
    %p31 = scmp.eq.s32.totalorder %s12, 0
    %p32 = por %p30, %p31
    %p33 = scmp.ne.s32.totalorder %s22, %s25
    %p34 = scmp.eq.s32.totalorder %s17, 3
    %p35 = por %p33, %p34
    %p36 = scmp.ne.s32.totalorder %s25, %s26
    %p37 = scmp.eq.s32.totalorder %s17, 0
    %p38 = por %p36, %p37
    %p39 = scmp.ne.s32.totalorder %s25, %s26
    %p40 = scmp.eq.s32.totalorder %s18, 3
    %p41 = por %p39, %p40
    %p43 = scmp.ne.s32.totalorder %s26, %s42
    %p44 = scmp.eq.s32.totalorder %s18, 0
    %p45 = por %p43, %p44
    %s47 = sadd.s32 %s46, 1
    %p50 = scmp.eq.s32.totalorder %s12, 3
    %p51 = scmp.ne.s32.totalorder %s46, %s48
    %p52 = scmp.eq.s32.totalorder %s12, 0
    %p53 = por %p51, %p52
    %p54 = scmp.ne.s32.totalorder %s46, %s48
    %p55 = scmp.eq.s32.totalorder %s17, 3
    %p56 = por %p54, %p55
    %p57 = scmp.ne.s32.totalorder %s48, %s49
    %p58 = scmp.eq.s32.totalorder %s17, 0
    %p59 = por %p57, %p58
    %p60 = scmp.ne.s32.totalorder %s48, %s49
    %p61 = scmp.eq.s32.totalorder %s18, 3
    %p62 = por %p60, %p61
    %p64 = scmp.ne.s32.totalorder %s49, %s63
    %p65 = scmp.eq.s32.totalorder %s18, 0
    %p66 = por %p64, %p65
    %s68 = sadd.s32 %s67, 1
    %p71 = scmp.eq.s32.totalorder %s12, 3
    %p72 = scmp.ne.s32.totalorder %s67, %s69
    %p73 = scmp.eq.s32.totalorder %s12, 0
    %p74 = por %p72, %p73
    %p75 = scmp.ne.s32.totalorder %s67, %s69
    %p76 = scmp.eq.s32.totalorder %s17, 3
    %p77 = por %p75, %p76
    %p78 = scmp.ne.s32.totalorder %s69, %s70
    %p79 = scmp.eq.s32.totalorder %s17, 0
    %p80 = por %p78, %p79
    %p81 = scmp.ne.s32.totalorder %s69, %s70
    %p82 = scmp.eq.s32.totalorder %s18, 3
    %p83 = por %p81, %p82
    %p85 = scmp.ne.s32.totalorder %s70, %s84
    %p86 = scmp.eq.s32.totalorder %s18, 0
    %p87 = por %p85, %p86
    %s89 = sadd.s32 %s88, 1
    %p92 = scmp.eq.s32.totalorder %s12, 3
    %p93 = scmp.ne.s32.totalorder %s88, %s90
    %p94 = scmp.eq.s32.totalorder %s12, 0
    %p95 = por %p93, %p94
    %p96 = scmp.ne.s32.totalorder %s88, %s90
    %p97 = scmp.eq.s32.totalorder %s17, 3
    %p98 = por %p96, %p97
    %p99 = scmp.ne.s32.totalorder %s90, %s91
    %p100 = scmp.eq.s32.totalorder %s17, 0
    %p101 = por %p99, %p100
    %p102 = scmp.ne.s32.totalorder %s90, %s91
    %p103 = scmp.eq.s32.totalorder %s18, 3
    %p104 = por %p102, %p103
    %p106 = scmp.ne.s32.totalorder %s91, %s105
    %p107 = scmp.eq.s32.totalorder %s18, 0
    %p108 = por %p106, %p107
    %s109 = ssub.s32 %s12, %s19
    %p110 = scmp.eq.s32.totalorder %s109, 0
    %s112 = sadd.s32 %s111, 1
    %s113 = scalar_select %p110, %s111, %s112
    %p116 = pneg %p110
    %p117 = scmp.eq.s32.totalorder %s12, 3
    %p118 = por %p116, %p117
    %p119 = scmp.ne.s32.totalorder %s111, %s114
    %p120 = scmp.eq.s32.totalorder %s12, 0
    %p121 = por %p119, %p120
    %p122 = scmp.ne.s32.totalorder %s111, %s114
    %p123 = scmp.eq.s32.totalorder %s17, 3
    %p124 = por %p122, %p123
    %p125 = scmp.ne.s32.totalorder %s114, %s115
    %p126 = scmp.eq.s32.totalorder %s17, 0
    %p127 = por %p125, %p126
    %p128 = scmp.ne.s32.totalorder %s114, %s115
    %p129 = scmp.eq.s32.totalorder %s18, 3
    %p130 = por %p128, %p129
    %p132 = scmp.ne.s32.totalorder %s115, %s131
    %p133 = scmp.eq.s32.totalorder %s18, 0
    %p134 = por %p132, %p133
    %s135 = ssub.s32 %s12, %s19
    %p136 = scmp.eq.s32.totalorder %s135, 0
    %s138 = sadd.s32 %s137, 1
    %s139 = scalar_select %p136, %s137, %s138
    %p142 = pneg %p136
    %p143 = scmp.eq.s32.totalorder %s12, 3
    %p144 = por %p142, %p143
    %p145 = scmp.ne.s32.totalorder %s137, %s140
    %p146 = scmp.eq.s32.totalorder %s12, 0
    %p147 = por %p145, %p146
    %p148 = scmp.ne.s32.totalorder %s137, %s140
    %p149 = scmp.eq.s32.totalorder %s17, 3
    %p150 = por %p148, %p149
    %p151 = scmp.ne.s32.totalorder %s140, %s141
    %p152 = scmp.eq.s32.totalorder %s17, 0
    %p153 = por %p151, %p152
    %p154 = scmp.ne.s32.totalorder %s140, %s141
    %p155 = scmp.eq.s32.totalorder %s18, 3
    %p156 = por %p154, %p155
    %p158 = scmp.ne.s32.totalorder %s141, %s157
    %p159 = scmp.eq.s32.totalorder %s18, 0
    %p160 = por %p158, %p159
    %p161 = scmp.le.s32.totalorder 1, %s12
    %p162 = scmp.lt.s32.totalorder %s12, 5
    %p163 = pnand %p161, %p162
    %p164 = pneg %p163
    // Predicated region
    $region9: #{forward_layer.7} parent=5 // pred_check
      _
    $region10: #{forward_layer.7} parent=5 // pred_check_branch
      %166 = sbr.rel (%p163) target = $region12
    $region11: #{forward_layer.7} parent=5 // pred_region
      %s167 = ssub.s32 %s12, 1
      // Predicated region
      $region13: #{forward_layer.7} parent=11 // pred_check
        %p168 = pneg %p59
      $region14: #{forward_layer.7} parent=11 // pred_check_branch
        %170 = sbr.rel (%p168) target = $region16
      $region15: #{forward_layer.7} parent=11 // pred_region
        _
      $region16: #{forward_layer.7} parent=11 // pred_fallthru
        _
      // Predicated region
      $region17: #{forward_layer.7} parent=11 // pred_check
        %p171 = pneg %p80
      $region18: #{forward_layer.7} parent=11 // pred_check_branch
        %173 = sbr.rel (%p171) target = $region20
      $region19: #{forward_layer.7} parent=11 // pred_region
        _
      $region20: #{forward_layer.7} parent=11 // pred_fallthru
        _
      // Predicated region
      $region21: #{forward_layer.7} parent=11 // pred_check
        %p174 = pneg %p101
      $region22: #{forward_layer.7} parent=11 // pred_check_branch
        %176 = sbr.rel (%p174) target = $region24
      $region23: #{forward_layer.7} parent=11 // pred_region
        _
      $region24: #{forward_layer.7} parent=11 // pred_fallthru
        _
    $region12: #{forward_layer.7} parent=5 // pred_fallthru
      _
    %p177 = scmp.lt.s32.totalorder %s12, 4
    // Predicated region
    $region25: #{forward_layer.7} parent=5 // pred_check
      %p178 = pneg %p177
    $region26: #{forward_layer.7} parent=5 // pred_check_branch
      %180 = sbr.rel (%p178) target = $region28
    $region27: #{forward_layer.7} parent=5 // pred_region
      // Predicated region
      $region29: #{forward_layer.7} parent=27 // pred_check
        %p181 = pneg %p32
      $region30: #{forward_layer.7} parent=27 // pred_check_branch
        %183 = sbr.rel (%p181) target = $region32
      $region31: #{forward_layer.7} parent=27 // pred_region
        %s184 = smul.u32 8, %s12
        %p185 = scmp.lt.s32.totalorder %s184, 31
        %s186 = scalar_select %p185, %s184, 31
        %s187 = smul.addr %s186, 4
        %s188 = smul.addr %s187, 4
        %s189 = scalar_lea.vmem %s0, %s188
        %s190 = smul.u32 8, %s12
      $region32: #{forward_layer.7} parent=27 // pred_fallthru
        _
    $region28: #{forward_layer.7} parent=5 // pred_fallthru
      _
    %p191 = scmp.le.s32.totalorder 1, %s12
    %p192 = scmp.lt.s32.totalorder %s12, 5
    %p193 = pnand %p191, %p192
    %p194 = pneg %p193
    // Predicated region
    $region33: #{forward_layer.7} parent=5 // pred_check
      _
    $region34: #{forward_layer.7} parent=5 // pred_check_branch
      %196 = sbr.rel (%p193) target = $region36
    $region35: #{forward_layer.7} parent=5 // pred_region
      %s197 = ssub.s32 %s12, 1
      %s198 = smul.u32 8, %s17
      %p199 = scmp.lt.s32.totalorder %s198, 31
      %s200 = scalar_select %p199, %s198, 31
      %s201 = smul.addr %s200, 4
      %s202 = smul.addr %s201, 4
      %s203 = scalar_lea.vmem %s0, %s202
      %p204 = pneg %p38
      %p205 = pneg %p35
      %p206 = pneg %p59
      %p207 = pneg %p56
      %p208 = pneg %p80
      %p209 = pneg %p77
      %p210 = pneg %p101
      %p211 = pneg %p98
      %p212 = pneg %p127
      %p213 = pneg %p124
      %s214 = smul.u32 8, %s17
      %p215 = scmp.lt.s32.totalorder %s214, 31
      %s216 = scalar_select %p215, %s214, 31
      %s217 = smul.addr %s216, 4
      %s218 = smul.addr %s217, 4
      %s219 = scalar_lea.vmem %s4, %s218
      %p220 = pneg %p153
      %p221 = pneg %p150
      %p222 = scmp.lt.s32.totalorder %s17, 3
      %s223 = scalar_select %p222, %s17, 3
      %s224 = smul.addr %s223, 2
      %s225 = smul.addr %s224, 2
      %s226 = scalar_lea.vmem %s5, %s225
      %s227 = smul.u32 8, %s17
      %p228 = scmp.lt.s32.totalorder %s227, 31
      %s229 = scalar_select %p228, %s227, 31
      %s230 = smul.addr %s229, 4
      %s231 = smul.addr %s230, 4
      %s232 = scalar_lea.vmem %s0, %s231
      %s233 = smul.u32 8, %s17
      %s234 = smul.u32 8, %s17
      %p235 = scmp.lt.s32.totalorder %s234, 31
      %s236 = scalar_select %p235, %s234, 31
      %s237 = smul.addr %s236, 4
      %s238 = smul.addr %s237, 4
      %s239 = scalar_lea.vmem %s4, %s238
      %s240 = smul.u32 8, %s17
      %p241 = scmp.lt.s32.totalorder %s17, 3
      %s242 = scalar_select %p241, %s17, 3
      %s243 = smul.addr %s242, 2
      %s244 = smul.addr %s243, 2
      %s245 = scalar_lea.vmem %s5, %s244
      %v246 = vld [vmem:[%s232] sm:$0xff]
      %v247 = vld [vmem:[%s232 + $0x8] sm:$0xff]
      %v248 = vld [vmem:[%s232 + $0x10] sm:$0xff]
      %v249 = vld [vmem:[%s232 + $0x18] sm:$0xff]
      %v250 = vld [vmem:[%s232 + $0x20] sm:$0xff]
      %v251 = vld [vmem:[%s232 + $0x28] sm:$0xff]
      %v252 = vld [vmem:[%s232 + $0x30] sm:$0xff]
      %v253 = vld [vmem:[%s232 + $0x38] sm:$0xff]
      %v254 = vld [vmem:[%s232 + $0x40] sm:$0xff]
      %v255 = vld [vmem:[%s232 + $0x48] sm:$0xff]
      %v256 = vld [vmem:[%s232 + $0x50] sm:$0xff]
      %v257 = vld [vmem:[%s232 + $0x58] sm:$0xff]
      %v258 = vld [vmem:[%s232 + $0x60] sm:$0xff]
      %v259 = vld [vmem:[%s232 + $0x68] sm:$0xff]
      %v260 = vld [vmem:[%s232 + $0x70] sm:$0xff]
      %v261 = vld [vmem:[%s232 + $0x78] sm:$0xff]
      %v262 = vunpack.c.l.bf16 %v246
      %v263 = vunpack.c.h.bf16 %v246
      %v264 = vunpack.c.l.bf16 %v247
      %v265 = vunpack.c.h.bf16 %v247
      %v266 = vunpack.c.l.bf16 %v248
      %v267 = vunpack.c.h.bf16 %v248
      %v268 = vunpack.c.l.bf16 %v249
      %v269 = vunpack.c.h.bf16 %v249
      %v270 = vunpack.c.l.bf16 %v250
      %v271 = vunpack.c.h.bf16 %v250
      %v272 = vunpack.c.l.bf16 %v251
      %v273 = vunpack.c.h.bf16 %v251
      %v274 = vunpack.c.l.bf16 %v252
      %v275 = vunpack.c.h.bf16 %v252
      %v276 = vunpack.c.l.bf16 %v253
      %v277 = vunpack.c.h.bf16 %v253
      %v278 = vunpack.c.l.bf16 %v254
      %v279 = vunpack.c.h.bf16 %v254
      %v280 = vunpack.c.l.bf16 %v255
      %v281 = vunpack.c.h.bf16 %v255
      %v282 = vunpack.c.l.bf16 %v256
      %v283 = vunpack.c.h.bf16 %v256
      %v284 = vunpack.c.l.bf16 %v257
      %v285 = vunpack.c.h.bf16 %v257
      %v286 = vunpack.c.l.bf16 %v258
      %v287 = vunpack.c.h.bf16 %v258
      %v288 = vunpack.c.l.bf16 %v259
      %v289 = vunpack.c.h.bf16 %v259
      %v290 = vunpack.c.l.bf16 %v260
      %v291 = vunpack.c.h.bf16 %v260
      %v292 = vunpack.c.l.bf16 %v261
      %v293 = vunpack.c.h.bf16 %v261
      %v294 = vld [vmem:[%s2] sm:$0x3]
      %v296 = vperm.slane %v294, 0
      %v297 = vperm.slane %v294, 1
      %v300 = vmul.f32 %v262, %v296
      %v301 = vmul.f32 %v263, %v297
      %v302 = vmul.f32 %v264, %v296
      %v303 = vmul.f32 %v265, %v297
      %v304 = vmul.f32 %v266, %v296
      %v305 = vmul.f32 %v267, %v297
      %v306 = vmul.f32 %v268, %v296
      %v307 = vmul.f32 %v269, %v297
      %v308 = vmul.f32 %v270, %v296
      %v309 = vmul.f32 %v271, %v297
      %v310 = vmul.f32 %v272, %v296
      %v311 = vmul.f32 %v273, %v297
      %v312 = vmul.f32 %v274, %v296
      %v313 = vmul.f32 %v275, %v297
      %v314 = vmul.f32 %v276, %v296
      %v315 = vmul.f32 %v277, %v297
      %v316 = vmul.f32 %v278, %v296
      %v317 = vmul.f32 %v279, %v297
      %v318 = vmul.f32 %v280, %v296
      %v319 = vmul.f32 %v281, %v297
      %v320 = vmul.f32 %v282, %v296
      %v321 = vmul.f32 %v283, %v297
      %v322 = vmul.f32 %v284, %v296
      %v323 = vmul.f32 %v285, %v297
      %v324 = vmul.f32 %v286, %v296
      %v325 = vmul.f32 %v287, %v297
      %v326 = vmul.f32 %v288, %v296
      %v327 = vmul.f32 %v289, %v297
      %v328 = vmul.f32 %v290, %v296
      %v329 = vmul.f32 %v291, %v297
      %v330 = vmul.f32 %v292, %v296
      %v331 = vmul.f32 %v293, %v297
      %v332 = vld [vmem:[%s3] sm:$0x3]
      %v334 = vperm.slane %v332, 0
      %v335 = vperm.slane %v332, 1
      %v338 = vadd.f32 %v300, %v334
      %v339 = vadd.f32 %v301, %v335
      %v340 = vadd.f32 %v302, %v334
      %v341 = vadd.f32 %v303, %v335
      %v342 = vadd.f32 %v304, %v334
      %v343 = vadd.f32 %v305, %v335
      %v344 = vadd.f32 %v306, %v334
      %v345 = vadd.f32 %v307, %v335
      %v346 = vadd.f32 %v308, %v334
      %v347 = vadd.f32 %v309, %v335
      %v348 = vadd.f32 %v310, %v334
      %v349 = vadd.f32 %v311, %v335
      %v350 = vadd.f32 %v312, %v334
      %v351 = vadd.f32 %v313, %v335
      %v352 = vadd.f32 %v314, %v334
      %v353 = vadd.f32 %v315, %v335
      %v354 = vadd.f32 %v316, %v334
      %v355 = vadd.f32 %v317, %v335
      %v356 = vadd.f32 %v318, %v334
      %v357 = vadd.f32 %v319, %v335
      %v358 = vadd.f32 %v320, %v334
      %v359 = vadd.f32 %v321, %v335
      %v360 = vadd.f32 %v322, %v334
      %v361 = vadd.f32 %v323, %v335
      %v362 = vadd.f32 %v324, %v334
      %v363 = vadd.f32 %v325, %v335
      %v364 = vadd.f32 %v326, %v334
      %v365 = vadd.f32 %v327, %v335
      %v366 = vadd.f32 %v328, %v334
      %v367 = vadd.f32 %v329, %v335
      %v368 = vadd.f32 %v330, %v334
      %v369 = vadd.f32 %v331, %v335
      %v370 = vmax.f32 %v338, 0.0
      %v371 = vmax.f32 %v339, 0.0
      %v372 = vmax.f32 %v340, 0.0
      %v373 = vmax.f32 %v341, 0.0
      %v374 = vmax.f32 %v342, 0.0
      %v375 = vmax.f32 %v343, 0.0
      %v376 = vmax.f32 %v344, 0.0
      %v377 = vmax.f32 %v345, 0.0
      %v378 = vmax.f32 %v346, 0.0
      %v379 = vmax.f32 %v347, 0.0
      %v380 = vmax.f32 %v348, 0.0
      %v381 = vmax.f32 %v349, 0.0
      %v382 = vmax.f32 %v350, 0.0
      %v383 = vmax.f32 %v351, 0.0
      %v384 = vmax.f32 %v352, 0.0
      %v385 = vmax.f32 %v353, 0.0
      %v386 = vmax.f32 %v354, 0.0
      %v387 = vmax.f32 %v355, 0.0
      %v388 = vmax.f32 %v356, 0.0
      %v389 = vmax.f32 %v357, 0.0
      %v390 = vmax.f32 %v358, 0.0
      %v391 = vmax.f32 %v359, 0.0
      %v392 = vmax.f32 %v360, 0.0
      %v393 = vmax.f32 %v361, 0.0
      %v394 = vmax.f32 %v362, 0.0
      %v395 = vmax.f32 %v363, 0.0
      %v396 = vmax.f32 %v364, 0.0
      %v397 = vmax.f32 %v365, 0.0
      %v398 = vmax.f32 %v366, 0.0
      %v399 = vmax.f32 %v367, 0.0
      %v400 = vmax.f32 %v368, 0.0
      %v401 = vmax.f32 %v369, 0.0
      %v402 = vlaneseq
      %v403 = vshrl.u32 %v402, 7
      %v404 = vadd.s32 %v403, 8
      %v405 = vadd.s32 %v403, 16
      %v406 = vadd.s32 %v403, 24
      %v407 = vadd.s32 %v403, 32
      %v408 = vadd.s32 %v403, 40
      %v409 = vadd.s32 %v403, 48
      %v410 = vadd.s32 %v403, 56
      %v411 = vadd.s32 %v403, 64
      %v412 = vadd.s32 %v403, 72
      %v413 = vadd.s32 %v403, 80
      %v414 = vadd.s32 %v403, 88
      %v415 = vadd.s32 %v403, 96
      %v416 = vadd.s32 %v403, 104
      %v417 = vadd.s32 %v403, 112
      %v418 = vadd.s32 %v403, 120
      %vm419 = vcmp.lt.s32.totalorder %v403, 0
      %v420 = vsub.s32 0, %v403
      %v421 = vsel %vm419, %v420, %v403
      %v422 = vshrl.u32 %v421, 4
      %v423 = vand.u32 %v421, 15
      %v424 = vsub.s32 0, %v423
      %v425 = vsel %vm419, %v424, %v423
      %vm426 = vcmp.lt.s32.totalorder %v404, 0
      %v427 = vsub.s32 0, %v404
      %v428 = vsel %vm426, %v427, %v404
      %v429 = vshrl.u32 %v428, 4
      %v430 = vand.u32 %v428, 15
      %v431 = vsub.s32 0, %v430
      %v432 = vsel %vm426, %v431, %v430
      %vm433 = vcmp.lt.s32.totalorder %v405, 0
      %v434 = vsub.s32 0, %v405
      %v435 = vsel %vm433, %v434, %v405
      %v436 = vshrl.u32 %v435, 4
      %v437 = vand.u32 %v435, 15
      %v438 = vsub.s32 0, %v437
      %v439 = vsel %vm433, %v438, %v437
      %vm440 = vcmp.lt.s32.totalorder %v406, 0
      %v441 = vsub.s32 0, %v406
      %v442 = vsel %vm440, %v441, %v406
      %v443 = vshrl.u32 %v442, 4
      %v444 = vand.u32 %v442, 15
      %v445 = vsub.s32 0, %v444
      %v446 = vsel %vm440, %v445, %v444
      %vm447 = vcmp.lt.s32.totalorder %v407, 0
      %v448 = vsub.s32 0, %v407
      %v449 = vsel %vm447, %v448, %v407
      %v450 = vshrl.u32 %v449, 4
      %v451 = vand.u32 %v449, 15
      %v452 = vsub.s32 0, %v451
      %v453 = vsel %vm447, %v452, %v451
      %vm454 = vcmp.lt.s32.totalorder %v408, 0
      %v455 = vsub.s32 0, %v408
      %v456 = vsel %vm454, %v455, %v408
      %v457 = vshrl.u32 %v456, 4
      %v458 = vand.u32 %v456, 15
      %v459 = vsub.s32 0, %v458
      %v460 = vsel %vm454, %v459, %v458
      %vm461 = vcmp.lt.s32.totalorder %v409, 0
      %v462 = vsub.s32 0, %v409
      %v463 = vsel %vm461, %v462, %v409
      %v464 = vshrl.u32 %v463, 4
      %v465 = vand.u32 %v463, 15
      %v466 = vsub.s32 0, %v465
      %v467 = vsel %vm461, %v466, %v465
      %vm468 = vcmp.lt.s32.totalorder %v410, 0
      %v469 = vsub.s32 0, %v410
      %v470 = vsel %vm468, %v469, %v410
      %v471 = vshrl.u32 %v470, 4
      %v472 = vand.u32 %v470, 15
      %v473 = vsub.s32 0, %v472
      %v474 = vsel %vm468, %v473, %v472
      %vm475 = vcmp.lt.s32.totalorder %v411, 0
      %v476 = vsub.s32 0, %v411
      %v477 = vsel %vm475, %v476, %v411
      %v478 = vshrl.u32 %v477, 4
      %v479 = vand.u32 %v477, 15
      %v480 = vsub.s32 0, %v479
      %v481 = vsel %vm475, %v480, %v479
      %vm482 = vcmp.lt.s32.totalorder %v412, 0
      %v483 = vsub.s32 0, %v412
      %v484 = vsel %vm482, %v483, %v412
      %v485 = vshrl.u32 %v484, 4
      %v486 = vand.u32 %v484, 15
      %v487 = vsub.s32 0, %v486
      %v488 = vsel %vm482, %v487, %v486
      %vm489 = vcmp.lt.s32.totalorder %v413, 0
      %v490 = vsub.s32 0, %v413
      %v491 = vsel %vm489, %v490, %v413
      %v492 = vshrl.u32 %v491, 4
      %v493 = vand.u32 %v491, 15
      %v494 = vsub.s32 0, %v493
      %v495 = vsel %vm489, %v494, %v493
      %vm496 = vcmp.lt.s32.totalorder %v414, 0
      %v497 = vsub.s32 0, %v414
      %v498 = vsel %vm496, %v497, %v414
      %v499 = vshrl.u32 %v498, 4
      %v500 = vand.u32 %v498, 15
      %v501 = vsub.s32 0, %v500
      %v502 = vsel %vm496, %v501, %v500
      %vm503 = vcmp.lt.s32.totalorder %v415, 0
      %v504 = vsub.s32 0, %v415
      %v505 = vsel %vm503, %v504, %v415
      %v506 = vshrl.u32 %v505, 4
      %v507 = vand.u32 %v505, 15
      %v508 = vsub.s32 0, %v507
      %v509 = vsel %vm503, %v508, %v507
      %vm510 = vcmp.lt.s32.totalorder %v416, 0
      %v511 = vsub.s32 0, %v416
      %v512 = vsel %vm510, %v511, %v416
      %v513 = vshrl.u32 %v512, 4
      %v514 = vand.u32 %v512, 15
      %v515 = vsub.s32 0, %v514
      %v516 = vsel %vm510, %v515, %v514
      %vm517 = vcmp.lt.s32.totalorder %v417, 0
      %v518 = vsub.s32 0, %v417
      %v519 = vsel %vm517, %v518, %v417
      %v520 = vshrl.u32 %v519, 4
      %v521 = vand.u32 %v519, 15
      %v522 = vsub.s32 0, %v521
      %v523 = vsel %vm517, %v522, %v521
      %vm524 = vcmp.lt.s32.totalorder %v418, 0
      %v525 = vsub.s32 0, %v418
      %v526 = vsel %vm524, %v525, %v418
      %v527 = vshrl.u32 %v526, 4
      %v528 = vand.u32 %v526, 15
      %v529 = vsub.s32 0, %v528
      %v530 = vsel %vm524, %v529, %v528
      %vm531 = vcmp.ne.s32.totalorder %v425, 0
      %vm532 = vcmp.ne.s32.totalorder %v432, 0
      %vm533 = vcmp.ne.s32.totalorder %v439, 0
      %vm534 = vcmp.ne.s32.totalorder %v446, 0
      %vm535 = vcmp.ne.s32.totalorder %v453, 0
      %vm536 = vcmp.ne.s32.totalorder %v460, 0
      %vm537 = vcmp.ne.s32.totalorder %v467, 0
      %vm538 = vcmp.ne.s32.totalorder %v474, 0
      %vm539 = vcmp.ne.s32.totalorder %v481, 0
      %vm540 = vcmp.ne.s32.totalorder %v488, 0
      %vm541 = vcmp.ne.s32.totalorder %v495, 0
      %vm542 = vcmp.ne.s32.totalorder %v502, 0
      %vm543 = vcmp.ne.s32.totalorder %v509, 0
      %vm544 = vcmp.ne.s32.totalorder %v516, 0
      %vm545 = vcmp.ne.s32.totalorder %v523, 0
      %vm546 = vcmp.ne.s32.totalorder %v530, 0
      %vm547 = vcmp.lt.s32.totalorder %v425, 0
      %vm548 = vcmp.lt.s32.totalorder %v432, 0
      %vm549 = vcmp.lt.s32.totalorder %v439, 0
      %vm550 = vcmp.lt.s32.totalorder %v446, 0
      %vm551 = vcmp.lt.s32.totalorder %v453, 0
      %vm552 = vcmp.lt.s32.totalorder %v460, 0
      %vm553 = vcmp.lt.s32.totalorder %v467, 0
      %vm554 = vcmp.lt.s32.totalorder %v474, 0
      %vm555 = vcmp.lt.s32.totalorder %v481, 0
      %vm556 = vcmp.lt.s32.totalorder %v488, 0
      %vm557 = vcmp.lt.s32.totalorder %v495, 0
      %vm558 = vcmp.lt.s32.totalorder %v502, 0
      %vm559 = vcmp.lt.s32.totalorder %v509, 0
      %vm560 = vcmp.lt.s32.totalorder %v516, 0
      %vm561 = vcmp.lt.s32.totalorder %v523, 0
      %vm562 = vcmp.lt.s32.totalorder %v530, 0
      %vm563 = vmand %vm547, %vm531
      %vm564 = vmand %vm548, %vm532
      %vm565 = vmand %vm549, %vm533
      %vm566 = vmand %vm550, %vm534
      %vm567 = vmand %vm551, %vm535
      %vm568 = vmand %vm552, %vm536
      %vm569 = vmand %vm553, %vm537
      %vm570 = vmand %vm554, %vm538
      %vm571 = vmand %vm555, %vm539
      %vm572 = vmand %vm556, %vm540
      %vm573 = vmand %vm557, %vm541
      %vm574 = vmand %vm558, %vm542
      %vm575 = vmand %vm559, %vm543
      %vm576 = vmand %vm560, %vm544
      %vm577 = vmand %vm561, %vm545
      %vm578 = vmand %vm562, %vm546
      %v579 = vadd.s32 %v425, 16
      %v580 = vadd.s32 %v432, 16
      %v581 = vadd.s32 %v439, 16
      %v582 = vadd.s32 %v446, 16
      %v583 = vadd.s32 %v453, 16
      %v584 = vadd.s32 %v460, 16
      %v585 = vadd.s32 %v467, 16
      %v586 = vadd.s32 %v474, 16
      %v587 = vadd.s32 %v481, 16
      %v588 = vadd.s32 %v488, 16
      %v589 = vadd.s32 %v495, 16
      %v590 = vadd.s32 %v502, 16
      %v591 = vadd.s32 %v509, 16
      %v592 = vadd.s32 %v516, 16
      %v593 = vadd.s32 %v523, 16
      %v594 = vadd.s32 %v530, 16
      %v595 = vsel %vm563, %v579, %v425
      %v596 = vsel %vm564, %v580, %v432
      %v597 = vsel %vm565, %v581, %v439
      %v598 = vsel %vm566, %v582, %v446
      %v599 = vsel %vm567, %v583, %v453
      %v600 = vsel %vm568, %v584, %v460
      %v601 = vsel %vm569, %v585, %v467
      %v602 = vsel %vm570, %v586, %v474
      %v603 = vsel %vm571, %v587, %v481
      %v604 = vsel %vm572, %v588, %v488
      %v605 = vsel %vm573, %v589, %v495
      %v606 = vsel %vm574, %v590, %v502
      %v607 = vsel %vm575, %v591, %v509
      %v608 = vsel %vm576, %v592, %v516
      %v609 = vsel %vm577, %v593, %v523
      %v610 = vsel %vm578, %v594, %v530
      %vm611 = vcmp.ne.s32.totalorder %v595, 0
      %vm612 = vcmp.ne.s32.totalorder %v596, 0
      %vm613 = vcmp.ne.s32.totalorder %v597, 0
      %vm614 = vcmp.ne.s32.totalorder %v598, 0
      %vm615 = vcmp.ne.s32.totalorder %v599, 0
      %vm616 = vcmp.ne.s32.totalorder %v600, 0
      %vm617 = vcmp.ne.s32.totalorder %v601, 0
      %vm618 = vcmp.ne.s32.totalorder %v602, 0
      %vm619 = vcmp.ne.s32.totalorder %v603, 0
      %vm620 = vcmp.ne.s32.totalorder %v604, 0
      %vm621 = vcmp.ne.s32.totalorder %v605, 0
      %vm622 = vcmp.ne.s32.totalorder %v606, 0
      %vm623 = vcmp.ne.s32.totalorder %v607, 0
      %vm624 = vcmp.ne.s32.totalorder %v608, 0
      %vm625 = vcmp.ne.s32.totalorder %v609, 0
      %vm626 = vcmp.ne.s32.totalorder %v610, 0
      %v627 = vrot.slane %v370, 7
      %v628 = vrot.slane %v371, 7
      %v629 = vrot.slane %v372, 7
      %v630 = vrot.slane %v373, 7
      %v631 = vrot.slane %v374, 7
      %v632 = vrot.slane %v375, 7
      %v633 = vrot.slane %v376, 7
      %v634 = vrot.slane %v377, 7
      %v635 = vrot.slane %v378, 7
      %v636 = vrot.slane %v379, 7
      %v637 = vrot.slane %v380, 7
      %v638 = vrot.slane %v381, 7
      %v639 = vrot.slane %v382, 7
      %v640 = vrot.slane %v383, 7
      %v641 = vrot.slane %v384, 7
      %v642 = vrot.slane %v385, 7
      %v643 = vrot.slane %v386, 7
      %v644 = vrot.slane %v387, 7
      %v645 = vrot.slane %v388, 7
      %v646 = vrot.slane %v389, 7
      %v647 = vrot.slane %v390, 7
      %v648 = vrot.slane %v391, 7
      %v649 = vrot.slane %v392, 7
      %v650 = vrot.slane %v393, 7
      %v651 = vrot.slane %v394, 7
      %v652 = vrot.slane %v395, 7
      %v653 = vrot.slane %v396, 7
      %v654 = vrot.slane %v397, 7
      %v655 = vrot.slane %v398, 7
      %v656 = vrot.slane %v399, 7
      %v657 = vrot.slane %v400, 7
      %v658 = vrot.slane %v401, 7
      %vm659 = vcmp.lt.s32.totalorder %v403, 1
      %v660 = vsel %vm659, %v655, %v657
      %v661 = vsel %vm659, %v656, %v658
      %v662 = vsel %vm659, %v653, %v655
      %v663 = vsel %vm659, %v654, %v656
      %v664 = vsel %vm659, %v651, %v653
      %v665 = vsel %vm659, %v652, %v654
      %v666 = vsel %vm659, %v649, %v651
      %v667 = vsel %vm659, %v650, %v652
      %v668 = vsel %vm659, %v647, %v649
      %v669 = vsel %vm659, %v648, %v650
      %v670 = vsel %vm659, %v645, %v647
      %v671 = vsel %vm659, %v646, %v648
      %v672 = vsel %vm659, %v643, %v645
      %v673 = vsel %vm659, %v644, %v646
      %v674 = vsel %vm659, %v641, %v643
      %v675 = vsel %vm659, %v642, %v644
      %v676 = vsel %vm659, %v639, %v641
      %v677 = vsel %vm659, %v640, %v642
      %v678 = vsel %vm659, %v637, %v639
      %v679 = vsel %vm659, %v638, %v640
      %v680 = vsel %vm659, %v635, %v637
      %v681 = vsel %vm659, %v636, %v638
      %v682 = vsel %vm659, %v633, %v635
      %v683 = vsel %vm659, %v634, %v636
      %v684 = vsel %vm659, %v631, %v633
      %v685 = vsel %vm659, %v632, %v634
      %v686 = vsel %vm659, %v629, %v631
      %v687 = vsel %vm659, %v630, %v632
      %v688 = vsel %vm659, %v627, %v629
      %v689 = vsel %vm659, %v628, %v630
      %v690 = vsel %vm659, %v657, %v627
      %v691 = vsel %vm659, %v658, %v628
      %v692 = vsel %vm611, 1, 0
      %v693 = vsel %vm612, 1, 0
      %v694 = vsel %vm613, 1, 0
      %v695 = vsel %vm614, 1, 0
      %v696 = vsel %vm615, 1, 0
      %v697 = vsel %vm616, 1, 0
      %v698 = vsel %vm617, 1, 0
      %v699 = vsel %vm618, 1, 0
      %v700 = vsel %vm619, 1, 0
      %v701 = vsel %vm620, 1, 0
      %v702 = vsel %vm621, 1, 0
      %v703 = vsel %vm622, 1, 0
      %v704 = vsel %vm623, 1, 0
      %v705 = vsel %vm624, 1, 0
      %v706 = vsel %vm625, 1, 0
      %v707 = vsel %vm626, 1, 0
      %vm708 = vcmp.eq.s32.totalorder %v692, 1
      %vm709 = vcmp.eq.s32.totalorder %v693, 1
      %vm710 = vcmp.eq.s32.totalorder %v694, 1
      %vm711 = vcmp.eq.s32.totalorder %v695, 1
      %vm712 = vcmp.eq.s32.totalorder %v696, 1
      %vm713 = vcmp.eq.s32.totalorder %v697, 1
      %vm714 = vcmp.eq.s32.totalorder %v698, 1
      %vm715 = vcmp.eq.s32.totalorder %v699, 1
      %vm716 = vcmp.eq.s32.totalorder %v700, 1
      %vm717 = vcmp.eq.s32.totalorder %v701, 1
      %vm718 = vcmp.eq.s32.totalorder %v702, 1
      %vm719 = vcmp.eq.s32.totalorder %v703, 1
      %vm720 = vcmp.eq.s32.totalorder %v704, 1
      %vm721 = vcmp.eq.s32.totalorder %v705, 1
      %vm722 = vcmp.eq.s32.totalorder %v706, 1
      %vm723 = vcmp.eq.s32.totalorder %v707, 1
      %v724 = vsel %vm708, %v690, 0.0
      %v725 = vsel %vm708, %v691, 0.0
      %v726 = vsel %vm709, %v688, 0.0
      %v727 = vsel %vm709, %v689, 0.0
      %v728 = vsel %vm710, %v686, 0.0
      %v729 = vsel %vm710, %v687, 0.0
      %v730 = vsel %vm711, %v684, 0.0
      %v731 = vsel %vm711, %v685, 0.0
      %v732 = vsel %vm712, %v682, 0.0
      %v733 = vsel %vm712, %v683, 0.0
      %v734 = vsel %vm713, %v680, 0.0
      %v735 = vsel %vm713, %v681, 0.0
      %v736 = vsel %vm714, %v678, 0.0
      %v737 = vsel %vm714, %v679, 0.0
      %v738 = vsel %vm715, %v676, 0.0
      %v739 = vsel %vm715, %v677, 0.0
      %v740 = vsel %vm716, %v674, 0.0
      %v741 = vsel %vm716, %v675, 0.0
      %v742 = vsel %vm717, %v672, 0.0
      %v743 = vsel %vm717, %v673, 0.0
      %v744 = vsel %vm718, %v670, 0.0
      %v745 = vsel %vm718, %v671, 0.0
      %v746 = vsel %vm719, %v668, 0.0
      %v747 = vsel %vm719, %v669, 0.0
      %v748 = vsel %vm720, %v666, 0.0
      %v749 = vsel %vm720, %v667, 0.0
      %v750 = vsel %vm721, %v664, 0.0
      %v751 = vsel %vm721, %v665, 0.0
      %v752 = vsel %vm722, %v662, 0.0
      %v753 = vsel %vm722, %v663, 0.0
      %v754 = vsel %vm723, %v660, 0.0
      %v755 = vsel %vm723, %v661, 0.0
      %vm756 = vcmp.ne.s32.totalorder %v595, 15
      %vm757 = vcmp.ne.s32.totalorder %v596, 15
      %vm758 = vcmp.ne.s32.totalorder %v597, 15
      %vm759 = vcmp.ne.s32.totalorder %v598, 15
      %vm760 = vcmp.ne.s32.totalorder %v599, 15
      %vm761 = vcmp.ne.s32.totalorder %v600, 15
      %vm762 = vcmp.ne.s32.totalorder %v601, 15
      %vm763 = vcmp.ne.s32.totalorder %v602, 15
      %vm764 = vcmp.ne.s32.totalorder %v603, 15
      %vm765 = vcmp.ne.s32.totalorder %v604, 15
      %vm766 = vcmp.ne.s32.totalorder %v605, 15
      %vm767 = vcmp.ne.s32.totalorder %v606, 15
      %vm768 = vcmp.ne.s32.totalorder %v607, 15
      %vm769 = vcmp.ne.s32.totalorder %v608, 15
      %vm770 = vcmp.ne.s32.totalorder %v609, 15
      %vm771 = vcmp.ne.s32.totalorder %v610, 15
      %v772 = vrot.slane %v370, 1
      %v773 = vrot.slane %v371, 1
      %v774 = vrot.slane %v372, 1
      %v775 = vrot.slane %v373, 1
      %v776 = vrot.slane %v374, 1
      %v777 = vrot.slane %v375, 1
      %v778 = vrot.slane %v376, 1
      %v779 = vrot.slane %v377, 1
      %v780 = vrot.slane %v378, 1
      %v781 = vrot.slane %v379, 1
      %v782 = vrot.slane %v380, 1
      %v783 = vrot.slane %v381, 1
      %v784 = vrot.slane %v382, 1
      %v785 = vrot.slane %v383, 1
      %v786 = vrot.slane %v384, 1
      %v787 = vrot.slane %v385, 1
      %v788 = vrot.slane %v386, 1
      %v789 = vrot.slane %v387, 1
      %v790 = vrot.slane %v388, 1
      %v791 = vrot.slane %v389, 1
      %v792 = vrot.slane %v390, 1
      %v793 = vrot.slane %v391, 1
      %v794 = vrot.slane %v392, 1
      %v795 = vrot.slane %v393, 1
      %v796 = vrot.slane %v394, 1
      %v797 = vrot.slane %v395, 1
      %v798 = vrot.slane %v396, 1
      %v799 = vrot.slane %v397, 1
      %v800 = vrot.slane %v398, 1
      %v801 = vrot.slane %v399, 1
      %v802 = vrot.slane %v400, 1
      %v803 = vrot.slane %v401, 1
      %vm804 = vcmp.lt.s32.totalorder %v403, 7
      %v805 = vsel %vm804, %v800, %v802
      %v806 = vsel %vm804, %v801, %v803
      %v807 = vsel %vm804, %v798, %v800
      %v808 = vsel %vm804, %v799, %v801
      %v809 = vsel %vm804, %v796, %v798
      %v810 = vsel %vm804, %v797, %v799
      %v811 = vsel %vm804, %v794, %v796
      %v812 = vsel %vm804, %v795, %v797
      %v813 = vsel %vm804, %v792, %v794
      %v814 = vsel %vm804, %v793, %v795
      %v815 = vsel %vm804, %v790, %v792
      %v816 = vsel %vm804, %v791, %v793
      %v817 = vsel %vm804, %v788, %v790
      %v818 = vsel %vm804, %v789, %v791
      %v819 = vsel %vm804, %v786, %v788
      %v820 = vsel %vm804, %v787, %v789
      %v821 = vsel %vm804, %v784, %v786
      %v822 = vsel %vm804, %v785, %v787
      %v823 = vsel %vm804, %v782, %v784
      %v824 = vsel %vm804, %v783, %v785
      %v825 = vsel %vm804, %v780, %v782
      %v826 = vsel %vm804, %v781, %v783
      %v827 = vsel %vm804, %v778, %v780
      %v828 = vsel %vm804, %v779, %v781
      %v829 = vsel %vm804, %v776, %v778
      %v830 = vsel %vm804, %v777, %v779
      %v831 = vsel %vm804, %v774, %v776
      %v832 = vsel %vm804, %v775, %v777
      %v833 = vsel %vm804, %v772, %v774
      %v834 = vsel %vm804, %v773, %v775
      %v835 = vsel %vm804, %v802, %v772
      %v836 = vsel %vm804, %v803, %v773
      %v837 = vsel %vm756, 1, 0
      %v838 = vsel %vm757, 1, 0
      %v839 = vsel %vm758, 1, 0
      %v840 = vsel %vm759, 1, 0
      %v841 = vsel %vm760, 1, 0
      %v842 = vsel %vm761, 1, 0
      %v843 = vsel %vm762, 1, 0
      %v844 = vsel %vm763, 1, 0
      %v845 = vsel %vm764, 1, 0
      %v846 = vsel %vm765, 1, 0
      %v847 = vsel %vm766, 1, 0
      %v848 = vsel %vm767, 1, 0
      %v849 = vsel %vm768, 1, 0
      %v850 = vsel %vm769, 1, 0
      %v851 = vsel %vm770, 1, 0
      %v852 = vsel %vm771, 1, 0
      %vm853 = vcmp.eq.s32.totalorder %v837, 1
      %vm854 = vcmp.eq.s32.totalorder %v838, 1
      %vm855 = vcmp.eq.s32.totalorder %v839, 1
      %vm856 = vcmp.eq.s32.totalorder %v840, 1
      %vm857 = vcmp.eq.s32.totalorder %v841, 1
      %vm858 = vcmp.eq.s32.totalorder %v842, 1
      %vm859 = vcmp.eq.s32.totalorder %v843, 1
      %vm860 = vcmp.eq.s32.totalorder %v844, 1
      %vm861 = vcmp.eq.s32.totalorder %v845, 1
      %vm862 = vcmp.eq.s32.totalorder %v846, 1
      %vm863 = vcmp.eq.s32.totalorder %v847, 1
      %vm864 = vcmp.eq.s32.totalorder %v848, 1
      %vm865 = vcmp.eq.s32.totalorder %v849, 1
      %vm866 = vcmp.eq.s32.totalorder %v850, 1
      %vm867 = vcmp.eq.s32.totalorder %v851, 1
      %vm868 = vcmp.eq.s32.totalorder %v852, 1
      %v869 = vsel %vm853, %v833, 0.0
      %v870 = vsel %vm853, %v834, 0.0
      %v871 = vsel %vm854, %v831, 0.0
      %v872 = vsel %vm854, %v832, 0.0
      %v873 = vsel %vm855, %v829, 0.0
      %v874 = vsel %vm855, %v830, 0.0
      %v875 = vsel %vm856, %v827, 0.0
      %v876 = vsel %vm856, %v828, 0.0
      %v877 = vsel %vm857, %v825, 0.0
      %v878 = vsel %vm857, %v826, 0.0
      %v879 = vsel %vm858, %v823, 0.0
      %v880 = vsel %vm858, %v824, 0.0
      %v881 = vsel %vm859, %v821, 0.0
      %v882 = vsel %vm859, %v822, 0.0
      %v883 = vsel %vm860, %v819, 0.0
      %v884 = vsel %vm860, %v820, 0.0
      %v885 = vsel %vm861, %v817, 0.0
      %v886 = vsel %vm861, %v818, 0.0
      %v887 = vsel %vm862, %v815, 0.0
      %v888 = vsel %vm862, %v816, 0.0
      %v889 = vsel %vm863, %v813, 0.0
      %v890 = vsel %vm863, %v814, 0.0
      %v891 = vsel %vm864, %v811, 0.0
      %v892 = vsel %vm864, %v812, 0.0
      %v893 = vsel %vm865, %v809, 0.0
      %v894 = vsel %vm865, %v810, 0.0
      %v895 = vsel %vm866, %v807, 0.0
      %v896 = vsel %vm866, %v808, 0.0
      %v897 = vsel %vm867, %v805, 0.0
      %v898 = vsel %vm867, %v806, 0.0
      %v899 = vsel %vm868, %v835, 0.0
      %v900 = vsel %vm868, %v836, 0.0
      %v901 = vpack.c.bf16 %v372, %v370
      %v902 = vpack.c.bf16 %v373, %v371
      %v903 = vpack.c.bf16 %v376, %v374
      %v904 = vpack.c.bf16 %v377, %v375
      %v905 = vpack.c.bf16 %v380, %v378
      %v906 = vpack.c.bf16 %v381, %v379
      %v907 = vpack.c.bf16 %v384, %v382
      %v908 = vpack.c.bf16 %v385, %v383
      %v909 = vpack.c.bf16 %v388, %v386
      %v910 = vpack.c.bf16 %v389, %v387
      %v911 = vpack.c.bf16 %v392, %v390
      %v912 = vpack.c.bf16 %v393, %v391
      %v913 = vpack.c.bf16 %v396, %v394
      %v914 = vpack.c.bf16 %v397, %v395
      %v915 = vpack.c.bf16 %v400, %v398
      %v916 = vpack.c.bf16 %v401, %v399
      %s917 = scalar_lea.vmem %s1, 256
      %v918 = vld [vmem:[%s917] sm:$0xff]
      %v919 = vld [vmem:[%s917 + $0x8] sm:$0xff]
      %v920 = vld [vmem:[%s917 + $0x10] sm:$0xff]
      %v921 = vld [vmem:[%s917 + $0x18] sm:$0xff]
      %v922 = vld [vmem:[%s917 + $0x20] sm:$0xff]
      %v923 = vld [vmem:[%s917 + $0x28] sm:$0xff]
      %v924 = vld [vmem:[%s917 + $0x30] sm:$0xff]
      %v925 = vld [vmem:[%s917 + $0x38] sm:$0xff]
      %v926 = vld [vmem:[%s917 + $0x40] sm:$0xff]
      %v927 = vld [vmem:[%s917 + $0x48] sm:$0xff]
      %v928 = vld [vmem:[%s917 + $0x50] sm:$0xff]
      %v929 = vld [vmem:[%s917 + $0x58] sm:$0xff]
      %v930 = vld [vmem:[%s917 + $0x60] sm:$0xff]
      %v931 = vld [vmem:[%s917 + $0x68] sm:$0xff]
      %v932 = vld [vmem:[%s917 + $0x70] sm:$0xff]
      %v933 = vld [vmem:[%s917 + $0x78] sm:$0xff]
      %v934 = vld [vmem:[%s917 + $0x80] sm:$0xff]
      %v935 = vld [vmem:[%s917 + $0x88] sm:$0xff]
      %v936 = vld [vmem:[%s917 + $0x90] sm:$0xff]
      %v937 = vld [vmem:[%s917 + $0x98] sm:$0xff]
      %v938 = vld [vmem:[%s917 + $0xa0] sm:$0xff]
      %v939 = vld [vmem:[%s917 + $0xa8] sm:$0xff]
      %v940 = vld [vmem:[%s917 + $0xb0] sm:$0xff]
      %v941 = vld [vmem:[%s917 + $0xb8] sm:$0xff]
      %v942 = vld [vmem:[%s917 + $0xc0] sm:$0xff]
      %v943 = vld [vmem:[%s917 + $0xc8] sm:$0xff]
      %v944 = vld [vmem:[%s917 + $0xd0] sm:$0xff]
      %v945 = vld [vmem:[%s917 + $0xd8] sm:$0xff]
      %v946 = vld [vmem:[%s917 + $0xe0] sm:$0xff]
      %v947 = vld [vmem:[%s917 + $0xe8] sm:$0xff]
      %v948 = vld [vmem:[%s917 + $0xf0] sm:$0xff]
      %v949 = vld [vmem:[%s917 + $0xf8] sm:$0xff]
      %v950 = vpack.c.bf16 %v726, %v724
      %v951 = vpack.c.bf16 %v727, %v725
      %v952 = vpack.c.bf16 %v730, %v728
      %v953 = vpack.c.bf16 %v731, %v729
      %v954 = vpack.c.bf16 %v734, %v732
      %v955 = vpack.c.bf16 %v735, %v733
      %v956 = vpack.c.bf16 %v738, %v736
      %v957 = vpack.c.bf16 %v739, %v737
      %v958 = vpack.c.bf16 %v742, %v740
      %v959 = vpack.c.bf16 %v743, %v741
      %v960 = vpack.c.bf16 %v746, %v744
      %v961 = vpack.c.bf16 %v747, %v745
      %v962 = vpack.c.bf16 %v750, %v748
      %v963 = vpack.c.bf16 %v751, %v749
      %v964 = vpack.c.bf16 %v754, %v752
      %v965 = vpack.c.bf16 %v755, %v753
      %v966 = vld [vmem:[%s1] sm:$0xff]
      %v967 = vld [vmem:[%s1 + $0x8] sm:$0xff]
      %v968 = vld [vmem:[%s1 + $0x10] sm:$0xff]
      %v969 = vld [vmem:[%s1 + $0x18] sm:$0xff]
      %v970 = vld [vmem:[%s1 + $0x20] sm:$0xff]
      %v971 = vld [vmem:[%s1 + $0x28] sm:$0xff]
      %v972 = vld [vmem:[%s1 + $0x30] sm:$0xff]
      %v973 = vld [vmem:[%s1 + $0x38] sm:$0xff]
      %v974 = vld [vmem:[%s1 + $0x40] sm:$0xff]
      %v975 = vld [vmem:[%s1 + $0x48] sm:$0xff]
      %v976 = vld [vmem:[%s1 + $0x50] sm:$0xff]
      %v977 = vld [vmem:[%s1 + $0x58] sm:$0xff]
      %v978 = vld [vmem:[%s1 + $0x60] sm:$0xff]
      %v979 = vld [vmem:[%s1 + $0x68] sm:$0xff]
      %v980 = vld [vmem:[%s1 + $0x70] sm:$0xff]
      %v981 = vld [vmem:[%s1 + $0x78] sm:$0xff]
      %v982 = vld [vmem:[%s1 + $0x80] sm:$0xff]
      %v983 = vld [vmem:[%s1 + $0x88] sm:$0xff]
      %v984 = vld [vmem:[%s1 + $0x90] sm:$0xff]
      %v985 = vld [vmem:[%s1 + $0x98] sm:$0xff]
      %v986 = vld [vmem:[%s1 + $0xa0] sm:$0xff]
      %v987 = vld [vmem:[%s1 + $0xa8] sm:$0xff]
      %v988 = vld [vmem:[%s1 + $0xb0] sm:$0xff]
      %v989 = vld [vmem:[%s1 + $0xb8] sm:$0xff]
      %v990 = vld [vmem:[%s1 + $0xc0] sm:$0xff]
      %v991 = vld [vmem:[%s1 + $0xc8] sm:$0xff]
      %v992 = vld [vmem:[%s1 + $0xd0] sm:$0xff]
      %v993 = vld [vmem:[%s1 + $0xd8] sm:$0xff]
      %v994 = vld [vmem:[%s1 + $0xe0] sm:$0xff]
      %v995 = vld [vmem:[%s1 + $0xe8] sm:$0xff]
      %v996 = vld [vmem:[%s1 + $0xf0] sm:$0xff]
      %v997 = vld [vmem:[%s1 + $0xf8] sm:$0xff]
      %v1030 = vunpack.c.l.b16 %v966
      %v1031 = vunpack.c.h.b16 %v966
      %v1032 = vunpack.c.l.b16 %v967
      %v1033 = vunpack.c.h.b16 %v967
      %v1034 = vunpack.c.l.b16 %v968
      %v1035 = vunpack.c.h.b16 %v968
      %v1036 = vunpack.c.l.b16 %v969
      %v1037 = vunpack.c.h.b16 %v969
      %v1038 = vunpack.c.l.b16 %v970
      %v1039 = vunpack.c.h.b16 %v970
      %v1040 = vunpack.c.l.b16 %v971
      %v1041 = vunpack.c.h.b16 %v971
      %v1042 = vunpack.c.l.b16 %v972
      %v1043 = vunpack.c.h.b16 %v972
      %v1044 = vunpack.c.l.b16 %v973
      %v1045 = vunpack.c.h.b16 %v973
      %v1046 = vunpack.c.l.b16 %v974
      %v1047 = vunpack.c.h.b16 %v974
      %v1048 = vunpack.c.l.b16 %v975
      %v1049 = vunpack.c.h.b16 %v975
      %v1050 = vunpack.c.l.b16 %v976
      %v1051 = vunpack.c.h.b16 %v976
      %v1052 = vunpack.c.l.b16 %v977
      %v1053 = vunpack.c.h.b16 %v977
      %v1054 = vunpack.c.l.b16 %v978
      %v1055 = vunpack.c.h.b16 %v978
      %v1056 = vunpack.c.l.b16 %v979
      %v1057 = vunpack.c.h.b16 %v979
      %v1058 = vunpack.c.l.b16 %v980
      %v1059 = vunpack.c.h.b16 %v980
      %v1060 = vunpack.c.l.b16 %v981
      %v1061 = vunpack.c.h.b16 %v981
      %v1062 = vunpack.c.l.b16 %v982
      %v1063 = vunpack.c.h.b16 %v982
      %v1064 = vunpack.c.l.b16 %v983
      %v1065 = vunpack.c.h.b16 %v983
      %v1066 = vunpack.c.l.b16 %v984
      %v1067 = vunpack.c.h.b16 %v984
      %v1068 = vunpack.c.l.b16 %v985
      %v1069 = vunpack.c.h.b16 %v985
      %v1070 = vunpack.c.l.b16 %v986
      %v1071 = vunpack.c.h.b16 %v986
      %v1072 = vunpack.c.l.b16 %v987
      %v1073 = vunpack.c.h.b16 %v987
      %v1074 = vunpack.c.l.b16 %v988
      %v1075 = vunpack.c.h.b16 %v988
      %v1076 = vunpack.c.l.b16 %v989
      %v1077 = vunpack.c.h.b16 %v989
      %v1078 = vunpack.c.l.b16 %v990
      %v1079 = vunpack.c.h.b16 %v990
      %v1080 = vunpack.c.l.b16 %v991
      %v1081 = vunpack.c.h.b16 %v991
      %v1082 = vunpack.c.l.b16 %v992
      %v1083 = vunpack.c.h.b16 %v992
      %v1084 = vunpack.c.l.b16 %v993
      %v1085 = vunpack.c.h.b16 %v993
      %v1086 = vunpack.c.l.b16 %v994
      %v1087 = vunpack.c.h.b16 %v994
      %v1088 = vunpack.c.l.b16 %v995
      %v1089 = vunpack.c.h.b16 %v995
      %v1090 = vunpack.c.l.b16 %v996
      %v1091 = vunpack.c.h.b16 %v996
      %v1092 = vunpack.c.l.b16 %v997
      %v1093 = vunpack.c.h.b16 %v997
      %v1094 = vpack.c.b16 %v1032, %v1030
      %v1095 = vpack.c.b16 %v1033, %v1031
      %v1096 = vpack.c.b16 %v1036, %v1034
      %v1097 = vpack.c.b16 %v1037, %v1035
      %v1098 = vpack.c.b16 %v1040, %v1038
      %v1099 = vpack.c.b16 %v1041, %v1039
      %v1100 = vpack.c.b16 %v1044, %v1042
      %v1101 = vpack.c.b16 %v1045, %v1043
      %v1102 = vpack.c.b16 %v1048, %v1046
      %v1103 = vpack.c.b16 %v1049, %v1047
      %v1104 = vpack.c.b16 %v1052, %v1050
      %v1105 = vpack.c.b16 %v1053, %v1051
      %v1106 = vpack.c.b16 %v1056, %v1054
      %v1107 = vpack.c.b16 %v1057, %v1055
      %v1108 = vpack.c.b16 %v1060, %v1058
      %v1109 = vpack.c.b16 %v1061, %v1059
      %v1110 = vpack.c.b16 %v1064, %v1062
      %v1111 = vpack.c.b16 %v1065, %v1063
      %v1112 = vpack.c.b16 %v1068, %v1066
      %v1113 = vpack.c.b16 %v1069, %v1067
      %v1114 = vpack.c.b16 %v1072, %v1070
      %v1115 = vpack.c.b16 %v1073, %v1071
      %v1116 = vpack.c.b16 %v1076, %v1074
      %v1117 = vpack.c.b16 %v1077, %v1075
      %v1118 = vpack.c.b16 %v1080, %v1078
      %v1119 = vpack.c.b16 %v1081, %v1079
      %v1120 = vpack.c.b16 %v1084, %v1082
      %v1121 = vpack.c.b16 %v1085, %v1083
      %v1122 = vpack.c.b16 %v1088, %v1086
      %v1123 = vpack.c.b16 %v1089, %v1087
      %v1124 = vpack.c.b16 %v1092, %v1090
      %v1125 = vpack.c.b16 %v1093, %v1091
      %1158 = vmatpush.bf16.msra.mxu0 %v1108
      %1159 = vmatpush.bf16.msra.mxu0 %v1106
      %1160 = vmatpush.bf16.msra.mxu0 %v1104
      %1161 = vmatpush.bf16.msra.mxu0 %v1102
      %1162 = vmatpush.bf16.msra.mxu0 %v1100
      %1163 = vmatpush.bf16.msra.mxu0 %v1098
      %1164 = vmatpush.bf16.msra.mxu0 %v1096
      %1165 = vmatpush.bf16.msra.mxu0 %v1094
      %1166 = vmatmul.bf16.gmra.mxu0 %v950
      %v1167 = vpop.f32.mrf.mxu0
      %v1168 = vadd.f32 0.0, %v1167
      %v1169 = vpop.f32.mrf.mxu0
      %v1170 = vadd.f32 0.0, %v1169
      %1171 = vmatmul.bf16.gmra.mxu0 %v952
      %v1172 = vpop.f32.mrf.mxu0
      %v1173 = vadd.f32 0.0, %v1172
      %v1174 = vpop.f32.mrf.mxu0
      %v1175 = vadd.f32 0.0, %v1174
      %1176 = vmatmul.bf16.gmra.mxu0 %v954
      %v1177 = vpop.f32.mrf.mxu0
      %v1178 = vadd.f32 0.0, %v1177
      %v1179 = vpop.f32.mrf.mxu0
      %v1180 = vadd.f32 0.0, %v1179
      %1181 = vmatmul.bf16.gmra.mxu0 %v956
      %v1182 = vpop.f32.mrf.mxu0
      %v1183 = vadd.f32 0.0, %v1182
      %v1184 = vpop.f32.mrf.mxu0
      %v1185 = vadd.f32 0.0, %v1184
      %1186 = vmatmul.bf16.gmra.mxu0 %v958
      %v1187 = vpop.f32.mrf.mxu0
      %v1188 = vadd.f32 0.0, %v1187
      %v1189 = vpop.f32.mrf.mxu0
      %v1190 = vadd.f32 0.0, %v1189
      %1191 = vmatmul.bf16.gmra.mxu0 %v960
      %v1192 = vpop.f32.mrf.mxu0
      %v1193 = vadd.f32 0.0, %v1192
      %v1194 = vpop.f32.mrf.mxu0
      %v1195 = vadd.f32 0.0, %v1194
      %1196 = vmatmul.bf16.gmra.mxu0 %v962
      %v1197 = vpop.f32.mrf.mxu0
      %v1198 = vadd.f32 0.0, %v1197
      %v1199 = vpop.f32.mrf.mxu0
      %v1200 = vadd.f32 0.0, %v1199
      %1201 = vmatmul.bf16.gmra.mxu0 %v964
      %v1202 = vpop.f32.mrf.mxu0
      %v1203 = vadd.f32 0.0, %v1202
      %v1204 = vpop.f32.mrf.mxu0
      %v1205 = vadd.f32 0.0, %v1204
      %1206 = vdwg.mxu0
      %1207 = vmatpush.bf16.msra.mxu0 %v1124
      %1208 = vmatpush.bf16.msra.mxu0 %v1122
      %1209 = vmatpush.bf16.msra.mxu0 %v1120
      %1210 = vmatpush.bf16.msra.mxu0 %v1118
      %1211 = vmatpush.bf16.msra.mxu0 %v1116
      %1212 = vmatpush.bf16.msra.mxu0 %v1114
      %1213 = vmatpush.bf16.msra.mxu0 %v1112
      %1214 = vmatpush.bf16.msra.mxu0 %v1110
      %1215 = vmatmul.bf16.gmra.mxu0 %v951
      %v1216 = vpop.f32.mrf.mxu0
      %v1217 = vadd.f32 %v1168, %v1216
      %v1218 = vpop.f32.mrf.mxu0
      %v1219 = vadd.f32 %v1170, %v1218
      %1220 = vmatmul.bf16.gmra.mxu0 %v953
      %v1221 = vpop.f32.mrf.mxu0
      %v1222 = vadd.f32 %v1173, %v1221
      %v1223 = vpop.f32.mrf.mxu0
      %v1224 = vadd.f32 %v1175, %v1223
      %1225 = vmatmul.bf16.gmra.mxu0 %v955
      %v1226 = vpop.f32.mrf.mxu0
      %v1227 = vadd.f32 %v1178, %v1226
      %v1228 = vpop.f32.mrf.mxu0
      %v1229 = vadd.f32 %v1180, %v1228
      %1230 = vmatmul.bf16.gmra.mxu0 %v957
      %v1231 = vpop.f32.mrf.mxu0
      %v1232 = vadd.f32 %v1183, %v1231
      %v1233 = vpop.f32.mrf.mxu0
      %v1234 = vadd.f32 %v1185, %v1233
      %1235 = vmatmul.bf16.gmra.mxu0 %v959
      %v1236 = vpop.f32.mrf.mxu0
      %v1237 = vadd.f32 %v1188, %v1236
      %v1238 = vpop.f32.mrf.mxu0
      %v1239 = vadd.f32 %v1190, %v1238
      %1240 = vmatmul.bf16.gmra.mxu0 %v961
      %v1241 = vpop.f32.mrf.mxu0
      %v1242 = vadd.f32 %v1193, %v1241
      %v1243 = vpop.f32.mrf.mxu0
      %v1244 = vadd.f32 %v1195, %v1243
      %1245 = vmatmul.bf16.gmra.mxu0 %v963
      %v1246 = vpop.f32.mrf.mxu0
      %v1247 = vadd.f32 %v1198, %v1246
      %v1248 = vpop.f32.mrf.mxu0
      %v1249 = vadd.f32 %v1200, %v1248
      %1250 = vmatmul.bf16.gmra.mxu0 %v965
      %v1251 = vpop.f32.mrf.mxu0
      %v1252 = vadd.f32 %v1203, %v1251
      %v1253 = vpop.f32.mrf.mxu0
      %v1254 = vadd.f32 %v1205, %v1253
      %1255 = vdwg.mxu0
      %1256 = vmatpush.bf16.msra.mxu0 %v1109
      %1257 = vmatpush.bf16.msra.mxu0 %v1107
      %1258 = vmatpush.bf16.msra.mxu0 %v1105
      %1259 = vmatpush.bf16.msra.mxu0 %v1103
      %1260 = vmatpush.bf16.msra.mxu0 %v1101
      %1261 = vmatpush.bf16.msra.mxu0 %v1099
      %1262 = vmatpush.bf16.msra.mxu0 %v1097
      %1263 = vmatpush.bf16.msra.mxu0 %v1095
      %1264 = vmatmul.bf16.gmra.mxu0 %v950
      %v1265 = vpop.f32.mrf.mxu0
      %v1266 = vadd.f32 0.0, %v1265
      %v1267 = vpop.f32.mrf.mxu0
      %v1268 = vadd.f32 0.0, %v1267
      %1269 = vmatmul.bf16.gmra.mxu0 %v952
      %v1270 = vpop.f32.mrf.mxu0
      %v1271 = vadd.f32 0.0, %v1270
      %v1272 = vpop.f32.mrf.mxu0
      %v1273 = vadd.f32 0.0, %v1272
      %1274 = vmatmul.bf16.gmra.mxu0 %v954
      %v1275 = vpop.f32.mrf.mxu0
      %v1276 = vadd.f32 0.0, %v1275
      %v1277 = vpop.f32.mrf.mxu0
      %v1278 = vadd.f32 0.0, %v1277
      %1279 = vmatmul.bf16.gmra.mxu0 %v956
      %v1280 = vpop.f32.mrf.mxu0
      %v1281 = vadd.f32 0.0, %v1280
      %v1282 = vpop.f32.mrf.mxu0
      %v1283 = vadd.f32 0.0, %v1282
      %1284 = vmatmul.bf16.gmra.mxu0 %v958
      %v1285 = vpop.f32.mrf.mxu0
      %v1286 = vadd.f32 0.0, %v1285
      %v1287 = vpop.f32.mrf.mxu0
      %v1288 = vadd.f32 0.0, %v1287
      %1289 = vmatmul.bf16.gmra.mxu0 %v960
      %v1290 = vpop.f32.mrf.mxu0
      %v1291 = vadd.f32 0.0, %v1290
      %v1292 = vpop.f32.mrf.mxu0
      %v1293 = vadd.f32 0.0, %v1292
      %1294 = vmatmul.bf16.gmra.mxu0 %v962
      %v1295 = vpop.f32.mrf.mxu0
      %v1296 = vadd.f32 0.0, %v1295
      %v1297 = vpop.f32.mrf.mxu0
      %v1298 = vadd.f32 0.0, %v1297
      %1299 = vmatmul.bf16.gmra.mxu0 %v964
      %v1300 = vpop.f32.mrf.mxu0
      %v1301 = vadd.f32 0.0, %v1300
      %v1302 = vpop.f32.mrf.mxu0
      %v1303 = vadd.f32 0.0, %v1302
      %1304 = vdwg.mxu0
      %1305 = vmatpush.bf16.msra.mxu0 %v1125
      %1306 = vmatpush.bf16.msra.mxu0 %v1123
      %1307 = vmatpush.bf16.msra.mxu0 %v1121
      %1308 = vmatpush.bf16.msra.mxu0 %v1119
      %1309 = vmatpush.bf16.msra.mxu0 %v1117
      %1310 = vmatpush.bf16.msra.mxu0 %v1115
      %1311 = vmatpush.bf16.msra.mxu0 %v1113
      %1312 = vmatpush.bf16.msra.mxu0 %v1111
      %1313 = vmatmul.bf16.gmra.mxu0 %v951
      %v1314 = vpop.f32.mrf.mxu0
      %v1315 = vadd.f32 %v1266, %v1314
      %v1316 = vpop.f32.mrf.mxu0
      %v1317 = vadd.f32 %v1268, %v1316
      %1318 = vmatmul.bf16.gmra.mxu0 %v953
      %v1319 = vpop.f32.mrf.mxu0
      %v1320 = vadd.f32 %v1271, %v1319
      %v1321 = vpop.f32.mrf.mxu0
      %v1322 = vadd.f32 %v1273, %v1321
      %1323 = vmatmul.bf16.gmra.mxu0 %v955
      %v1324 = vpop.f32.mrf.mxu0
      %v1325 = vadd.f32 %v1276, %v1324
      %v1326 = vpop.f32.mrf.mxu0
      %v1327 = vadd.f32 %v1278, %v1326
      %1328 = vmatmul.bf16.gmra.mxu0 %v957
      %v1329 = vpop.f32.mrf.mxu0
      %v1330 = vadd.f32 %v1281, %v1329
      %v1331 = vpop.f32.mrf.mxu0
      %v1332 = vadd.f32 %v1283, %v1331
      %1333 = vmatmul.bf16.gmra.mxu0 %v959
      %v1334 = vpop.f32.mrf.mxu0
      %v1335 = vadd.f32 %v1286, %v1334
      %v1336 = vpop.f32.mrf.mxu0
      %v1337 = vadd.f32 %v1288, %v1336
      %1338 = vmatmul.bf16.gmra.mxu0 %v961
      %v1339 = vpop.f32.mrf.mxu0
      %v1340 = vadd.f32 %v1291, %v1339
      %v1341 = vpop.f32.mrf.mxu0
      %v1342 = vadd.f32 %v1293, %v1341
      %1343 = vmatmul.bf16.gmra.mxu0 %v963
      %v1344 = vpop.f32.mrf.mxu0
      %v1345 = vadd.f32 %v1296, %v1344
      %v1346 = vpop.f32.mrf.mxu0
      %v1347 = vadd.f32 %v1298, %v1346
      %1348 = vmatmul.bf16.gmra.mxu0 %v965
      %v1349 = vpop.f32.mrf.mxu0
      %v1350 = vadd.f32 %v1301, %v1349
      %v1351 = vpop.f32.mrf.mxu0
      %v1352 = vadd.f32 %v1303, %v1351
      %1353 = vdwg.mxu0
      %v1386 = vunpack.c.l.b16 %v918
      %v1387 = vunpack.c.h.b16 %v918
      %v1388 = vunpack.c.l.b16 %v919
      %v1389 = vunpack.c.h.b16 %v919
      %v1390 = vunpack.c.l.b16 %v920
      %v1391 = vunpack.c.h.b16 %v920
      %v1392 = vunpack.c.l.b16 %v921
      %v1393 = vunpack.c.h.b16 %v921
      %v1394 = vunpack.c.l.b16 %v922
      %v1395 = vunpack.c.h.b16 %v922
      %v1396 = vunpack.c.l.b16 %v923
      %v1397 = vunpack.c.h.b16 %v923
      %v1398 = vunpack.c.l.b16 %v924
      %v1399 = vunpack.c.h.b16 %v924
      %v1400 = vunpack.c.l.b16 %v925
      %v1401 = vunpack.c.h.b16 %v925
      %v1402 = vunpack.c.l.b16 %v926
      %v1403 = vunpack.c.h.b16 %v926
      %v1404 = vunpack.c.l.b16 %v927
      %v1405 = vunpack.c.h.b16 %v927
      %v1406 = vunpack.c.l.b16 %v928
      %v1407 = vunpack.c.h.b16 %v928
      %v1408 = vunpack.c.l.b16 %v929
      %v1409 = vunpack.c.h.b16 %v929
      %v1410 = vunpack.c.l.b16 %v930
      %v1411 = vunpack.c.h.b16 %v930
      %v1412 = vunpack.c.l.b16 %v931
      %v1413 = vunpack.c.h.b16 %v931
      %v1414 = vunpack.c.l.b16 %v932
      %v1415 = vunpack.c.h.b16 %v932
      %v1416 = vunpack.c.l.b16 %v933
      %v1417 = vunpack.c.h.b16 %v933
      %v1418 = vunpack.c.l.b16 %v934
      %v1419 = vunpack.c.h.b16 %v934
      %v1420 = vunpack.c.l.b16 %v935
      %v1421 = vunpack.c.h.b16 %v935
      %v1422 = vunpack.c.l.b16 %v936
      %v1423 = vunpack.c.h.b16 %v936
      %v1424 = vunpack.c.l.b16 %v937
      %v1425 = vunpack.c.h.b16 %v937
      %v1426 = vunpack.c.l.b16 %v938
      %v1427 = vunpack.c.h.b16 %v938
      %v1428 = vunpack.c.l.b16 %v939
      %v1429 = vunpack.c.h.b16 %v939
      %v1430 = vunpack.c.l.b16 %v940
      %v1431 = vunpack.c.h.b16 %v940
      %v1432 = vunpack.c.l.b16 %v941
      %v1433 = vunpack.c.h.b16 %v941
      %v1434 = vunpack.c.l.b16 %v942
      %v1435 = vunpack.c.h.b16 %v942
      %v1436 = vunpack.c.l.b16 %v943
      %v1437 = vunpack.c.h.b16 %v943
      %v1438 = vunpack.c.l.b16 %v944
      %v1439 = vunpack.c.h.b16 %v944
      %v1440 = vunpack.c.l.b16 %v945
      %v1441 = vunpack.c.h.b16 %v945
      %v1442 = vunpack.c.l.b16 %v946
      %v1443 = vunpack.c.h.b16 %v946
      %v1444 = vunpack.c.l.b16 %v947
      %v1445 = vunpack.c.h.b16 %v947
      %v1446 = vunpack.c.l.b16 %v948
      %v1447 = vunpack.c.h.b16 %v948
      %v1448 = vunpack.c.l.b16 %v949
      %v1449 = vunpack.c.h.b16 %v949
      %v1450 = vpack.c.b16 %v1388, %v1386
      %v1451 = vpack.c.b16 %v1389, %v1387
      %v1452 = vpack.c.b16 %v1392, %v1390
      %v1453 = vpack.c.b16 %v1393, %v1391
      %v1454 = vpack.c.b16 %v1396, %v1394
      %v1455 = vpack.c.b16 %v1397, %v1395
      %v1456 = vpack.c.b16 %v1400, %v1398
      %v1457 = vpack.c.b16 %v1401, %v1399
      %v1458 = vpack.c.b16 %v1404, %v1402
      %v1459 = vpack.c.b16 %v1405, %v1403
      %v1460 = vpack.c.b16 %v1408, %v1406
      %v1461 = vpack.c.b16 %v1409, %v1407
      %v1462 = vpack.c.b16 %v1412, %v1410
      %v1463 = vpack.c.b16 %v1413, %v1411
      %v1464 = vpack.c.b16 %v1416, %v1414
      %v1465 = vpack.c.b16 %v1417, %v1415
      %v1466 = vpack.c.b16 %v1420, %v1418
      %v1467 = vpack.c.b16 %v1421, %v1419
      %v1468 = vpack.c.b16 %v1424, %v1422
      %v1469 = vpack.c.b16 %v1425, %v1423
      %v1470 = vpack.c.b16 %v1428, %v1426
      %v1471 = vpack.c.b16 %v1429, %v1427
      %v1472 = vpack.c.b16 %v1432, %v1430
      %v1473 = vpack.c.b16 %v1433, %v1431
      %v1474 = vpack.c.b16 %v1436, %v1434
      %v1475 = vpack.c.b16 %v1437, %v1435
      %v1476 = vpack.c.b16 %v1440, %v1438
      %v1477 = vpack.c.b16 %v1441, %v1439
      %v1478 = vpack.c.b16 %v1444, %v1442
      %v1479 = vpack.c.b16 %v1445, %v1443
      %v1480 = vpack.c.b16 %v1448, %v1446
      %v1481 = vpack.c.b16 %v1449, %v1447
      %1514 = vmatpush.bf16.msra.mxu0 %v1464
      %1515 = vmatpush.bf16.msra.mxu0 %v1462
      %1516 = vmatpush.bf16.msra.mxu0 %v1460
      %1517 = vmatpush.bf16.msra.mxu0 %v1458
      %1518 = vmatpush.bf16.msra.mxu0 %v1456
      %1519 = vmatpush.bf16.msra.mxu0 %v1454
      %1520 = vmatpush.bf16.msra.mxu0 %v1452
      %1521 = vmatpush.bf16.msra.mxu0 %v1450
      %1522 = vmatmul.bf16.gmra.mxu0 %v901
      %v1523 = vpop.f32.mrf.mxu0
      %v1524 = vadd.f32 %v1217, %v1523
      %v1525 = vpop.f32.mrf.mxu0
      %v1526 = vadd.f32 %v1219, %v1525
      %1527 = vmatmul.bf16.gmra.mxu0 %v903
      %v1528 = vpop.f32.mrf.mxu0
      %v1529 = vadd.f32 %v1222, %v1528
      %v1530 = vpop.f32.mrf.mxu0
      %v1531 = vadd.f32 %v1224, %v1530
      %1532 = vmatmul.bf16.gmra.mxu0 %v905
      %v1533 = vpop.f32.mrf.mxu0
      %v1534 = vadd.f32 %v1227, %v1533
      %v1535 = vpop.f32.mrf.mxu0
      %v1536 = vadd.f32 %v1229, %v1535
      %1537 = vmatmul.bf16.gmra.mxu0 %v907
      %v1538 = vpop.f32.mrf.mxu0
      %v1539 = vadd.f32 %v1232, %v1538
      %v1540 = vpop.f32.mrf.mxu0
      %v1541 = vadd.f32 %v1234, %v1540
      %1542 = vmatmul.bf16.gmra.mxu0 %v909
      %v1543 = vpop.f32.mrf.mxu0
      %v1544 = vadd.f32 %v1237, %v1543
      %v1545 = vpop.f32.mrf.mxu0
      %v1546 = vadd.f32 %v1239, %v1545
      %1547 = vmatmul.bf16.gmra.mxu0 %v911
      %v1548 = vpop.f32.mrf.mxu0
      %v1549 = vadd.f32 %v1242, %v1548
      %v1550 = vpop.f32.mrf.mxu0
      %v1551 = vadd.f32 %v1244, %v1550
      %1552 = vmatmul.bf16.gmra.mxu0 %v913
      %v1553 = vpop.f32.mrf.mxu0
      %v1554 = vadd.f32 %v1247, %v1553
      %v1555 = vpop.f32.mrf.mxu0
      %v1556 = vadd.f32 %v1249, %v1555
      %1557 = vmatmul.bf16.gmra.mxu0 %v915
      %v1558 = vpop.f32.mrf.mxu0
      %v1559 = vadd.f32 %v1252, %v1558
      %v1560 = vpop.f32.mrf.mxu0
      %v1561 = vadd.f32 %v1254, %v1560
      %1562 = vdwg.mxu0
      %1563 = vmatpush.bf16.msra.mxu0 %v1480
      %1564 = vmatpush.bf16.msra.mxu0 %v1478
      %1565 = vmatpush.bf16.msra.mxu0 %v1476
      %1566 = vmatpush.bf16.msra.mxu0 %v1474
      %1567 = vmatpush.bf16.msra.mxu0 %v1472
      %1568 = vmatpush.bf16.msra.mxu0 %v1470
      %1569 = vmatpush.bf16.msra.mxu0 %v1468
      %1570 = vmatpush.bf16.msra.mxu0 %v1466
      %1571 = vmatmul.bf16.gmra.mxu0 %v902
      %v1572 = vpop.f32.mrf.mxu0
      %v1573 = vadd.f32 %v1524, %v1572
      %v1574 = vpop.f32.mrf.mxu0
      %v1575 = vadd.f32 %v1526, %v1574
      %1576 = vmatmul.bf16.gmra.mxu0 %v904
      %v1577 = vpop.f32.mrf.mxu0
      %v1578 = vadd.f32 %v1529, %v1577
      %v1579 = vpop.f32.mrf.mxu0
      %v1580 = vadd.f32 %v1531, %v1579
      %1581 = vmatmul.bf16.gmra.mxu0 %v906
      %v1582 = vpop.f32.mrf.mxu0
      %v1583 = vadd.f32 %v1534, %v1582
      %v1584 = vpop.f32.mrf.mxu0
      %v1585 = vadd.f32 %v1536, %v1584
      %1586 = vmatmul.bf16.gmra.mxu0 %v908
      %v1587 = vpop.f32.mrf.mxu0
      %v1588 = vadd.f32 %v1539, %v1587
      %v1589 = vpop.f32.mrf.mxu0
      %v1590 = vadd.f32 %v1541, %v1589
      %1591 = vmatmul.bf16.gmra.mxu0 %v910
      %v1592 = vpop.f32.mrf.mxu0
      %v1593 = vadd.f32 %v1544, %v1592
      %v1594 = vpop.f32.mrf.mxu0
      %v1595 = vadd.f32 %v1546, %v1594
      %1596 = vmatmul.bf16.gmra.mxu0 %v912
      %v1597 = vpop.f32.mrf.mxu0
      %v1598 = vadd.f32 %v1549, %v1597
      %v1599 = vpop.f32.mrf.mxu0
      %v1600 = vadd.f32 %v1551, %v1599
      %1601 = vmatmul.bf16.gmra.mxu0 %v914
      %v1602 = vpop.f32.mrf.mxu0
      %v1603 = vadd.f32 %v1554, %v1602
      %v1604 = vpop.f32.mrf.mxu0
      %v1605 = vadd.f32 %v1556, %v1604
      %1606 = vmatmul.bf16.gmra.mxu0 %v916
      %v1607 = vpop.f32.mrf.mxu0
      %v1608 = vadd.f32 %v1559, %v1607
      %v1609 = vpop.f32.mrf.mxu0
      %v1610 = vadd.f32 %v1561, %v1609
      %1611 = vdwg.mxu0
      %1612 = vmatpush.bf16.msra.mxu0 %v1465
      %1613 = vmatpush.bf16.msra.mxu0 %v1463
      %1614 = vmatpush.bf16.msra.mxu0 %v1461
      %1615 = vmatpush.bf16.msra.mxu0 %v1459
      %1616 = vmatpush.bf16.msra.mxu0 %v1457
      %1617 = vmatpush.bf16.msra.mxu0 %v1455
      %1618 = vmatpush.bf16.msra.mxu0 %v1453
      %1619 = vmatpush.bf16.msra.mxu0 %v1451
      %1620 = vmatmul.bf16.gmra.mxu0 %v901
      %v1621 = vpop.f32.mrf.mxu0
      %v1622 = vadd.f32 %v1315, %v1621
      %v1623 = vpop.f32.mrf.mxu0
      %v1624 = vadd.f32 %v1317, %v1623
      %1625 = vmatmul.bf16.gmra.mxu0 %v903
      %v1626 = vpop.f32.mrf.mxu0
      %v1627 = vadd.f32 %v1320, %v1626
      %v1628 = vpop.f32.mrf.mxu0
      %v1629 = vadd.f32 %v1322, %v1628
      %1630 = vmatmul.bf16.gmra.mxu0 %v905
      %v1631 = vpop.f32.mrf.mxu0
      %v1632 = vadd.f32 %v1325, %v1631
      %v1633 = vpop.f32.mrf.mxu0
      %v1634 = vadd.f32 %v1327, %v1633
      %1635 = vmatmul.bf16.gmra.mxu0 %v907
      %v1636 = vpop.f32.mrf.mxu0
      %v1637 = vadd.f32 %v1330, %v1636
      %v1638 = vpop.f32.mrf.mxu0
      %v1639 = vadd.f32 %v1332, %v1638
      %1640 = vmatmul.bf16.gmra.mxu0 %v909
      %v1641 = vpop.f32.mrf.mxu0
      %v1642 = vadd.f32 %v1335, %v1641
      %v1643 = vpop.f32.mrf.mxu0
      %v1644 = vadd.f32 %v1337, %v1643
      %1645 = vmatmul.bf16.gmra.mxu0 %v911
      %v1646 = vpop.f32.mrf.mxu0
      %v1647 = vadd.f32 %v1340, %v1646
      %v1648 = vpop.f32.mrf.mxu0
      %v1649 = vadd.f32 %v1342, %v1648
      %1650 = vmatmul.bf16.gmra.mxu0 %v913
      %v1651 = vpop.f32.mrf.mxu0
      %v1652 = vadd.f32 %v1345, %v1651
      %v1653 = vpop.f32.mrf.mxu0
      %v1654 = vadd.f32 %v1347, %v1653
      %1655 = vmatmul.bf16.gmra.mxu0 %v915
      %v1656 = vpop.f32.mrf.mxu0
      %v1657 = vadd.f32 %v1350, %v1656
      %v1658 = vpop.f32.mrf.mxu0
      %v1659 = vadd.f32 %v1352, %v1658
      %1660 = vdwg.mxu0
      %1661 = vmatpush.bf16.msra.mxu0 %v1481
      %1662 = vmatpush.bf16.msra.mxu0 %v1479
      %1663 = vmatpush.bf16.msra.mxu0 %v1477
      %1664 = vmatpush.bf16.msra.mxu0 %v1475
      %1665 = vmatpush.bf16.msra.mxu0 %v1473
      %1666 = vmatpush.bf16.msra.mxu0 %v1471
      %1667 = vmatpush.bf16.msra.mxu0 %v1469
      %1668 = vmatpush.bf16.msra.mxu0 %v1467
      %1669 = vmatmul.bf16.gmra.mxu0 %v902
      %v1670 = vpop.f32.mrf.mxu0
      %v1671 = vadd.f32 %v1622, %v1670
      %v1672 = vpop.f32.mrf.mxu0
      %v1673 = vadd.f32 %v1624, %v1672
      %1674 = vmatmul.bf16.gmra.mxu0 %v904
      %v1675 = vpop.f32.mrf.mxu0
      %v1676 = vadd.f32 %v1627, %v1675
      %v1677 = vpop.f32.mrf.mxu0
      %v1678 = vadd.f32 %v1629, %v1677
      %1679 = vmatmul.bf16.gmra.mxu0 %v906
      %v1680 = vpop.f32.mrf.mxu0
      %v1681 = vadd.f32 %v1632, %v1680
      %v1682 = vpop.f32.mrf.mxu0
      %v1683 = vadd.f32 %v1634, %v1682
      %1684 = vmatmul.bf16.gmra.mxu0 %v908
      %v1685 = vpop.f32.mrf.mxu0
      %v1686 = vadd.f32 %v1637, %v1685
      %v1687 = vpop.f32.mrf.mxu0
      %v1688 = vadd.f32 %v1639, %v1687
      %1689 = vmatmul.bf16.gmra.mxu0 %v910
      %v1690 = vpop.f32.mrf.mxu0
      %v1691 = vadd.f32 %v1642, %v1690
      %v1692 = vpop.f32.mrf.mxu0
      %v1693 = vadd.f32 %v1644, %v1692
      %1694 = vmatmul.bf16.gmra.mxu0 %v912
      %v1695 = vpop.f32.mrf.mxu0
      %v1696 = vadd.f32 %v1647, %v1695
      %v1697 = vpop.f32.mrf.mxu0
      %v1698 = vadd.f32 %v1649, %v1697
      %1699 = vmatmul.bf16.gmra.mxu0 %v914
      %v1700 = vpop.f32.mrf.mxu0
      %v1701 = vadd.f32 %v1652, %v1700
      %v1702 = vpop.f32.mrf.mxu0
      %v1703 = vadd.f32 %v1654, %v1702
      %1704 = vmatmul.bf16.gmra.mxu0 %v916
      %v1705 = vpop.f32.mrf.mxu0
      %v1706 = vadd.f32 %v1657, %v1705
      %v1707 = vpop.f32.mrf.mxu0
      %v1708 = vadd.f32 %v1659, %v1707
      %1709 = vdwg.mxu0
      %v1710 = vpack.c.bf16 %v871, %v869
      %v1711 = vpack.c.bf16 %v872, %v870
      %v1712 = vpack.c.bf16 %v875, %v873
      %v1713 = vpack.c.bf16 %v876, %v874
      %v1714 = vpack.c.bf16 %v879, %v877
      %v1715 = vpack.c.bf16 %v880, %v878
      %v1716 = vpack.c.bf16 %v883, %v881
      %v1717 = vpack.c.bf16 %v884, %v882
      %v1718 = vpack.c.bf16 %v887, %v885
      %v1719 = vpack.c.bf16 %v888, %v886
      %v1720 = vpack.c.bf16 %v891, %v889
      %v1721 = vpack.c.bf16 %v892, %v890
      %v1722 = vpack.c.bf16 %v895, %v893
      %v1723 = vpack.c.bf16 %v896, %v894
      %v1724 = vpack.c.bf16 %v899, %v897
      %v1725 = vpack.c.bf16 %v900, %v898
      %s1726 = scalar_lea.vmem %s1, 512
      %v1727 = vld [vmem:[%s1726] sm:$0xff]
      %v1728 = vld [vmem:[%s1726 + $0x8] sm:$0xff]
      %v1729 = vld [vmem:[%s1726 + $0x10] sm:$0xff]
      %v1730 = vld [vmem:[%s1726 + $0x18] sm:$0xff]
      %v1731 = vld [vmem:[%s1726 + $0x20] sm:$0xff]
      %v1732 = vld [vmem:[%s1726 + $0x28] sm:$0xff]
      %v1733 = vld [vmem:[%s1726 + $0x30] sm:$0xff]
      %v1734 = vld [vmem:[%s1726 + $0x38] sm:$0xff]
      %v1735 = vld [vmem:[%s1726 + $0x40] sm:$0xff]
      %v1736 = vld [vmem:[%s1726 + $0x48] sm:$0xff]
      %v1737 = vld [vmem:[%s1726 + $0x50] sm:$0xff]
      %v1738 = vld [vmem:[%s1726 + $0x58] sm:$0xff]
      %v1739 = vld [vmem:[%s1726 + $0x60] sm:$0xff]
      %v1740 = vld [vmem:[%s1726 + $0x68] sm:$0xff]
      %v1741 = vld [vmem:[%s1726 + $0x70] sm:$0xff]
      %v1742 = vld [vmem:[%s1726 + $0x78] sm:$0xff]
      %v1743 = vld [vmem:[%s1726 + $0x80] sm:$0xff]
      %v1744 = vld [vmem:[%s1726 + $0x88] sm:$0xff]
      %v1745 = vld [vmem:[%s1726 + $0x90] sm:$0xff]
      %v1746 = vld [vmem:[%s1726 + $0x98] sm:$0xff]
      %v1747 = vld [vmem:[%s1726 + $0xa0] sm:$0xff]
      %v1748 = vld [vmem:[%s1726 + $0xa8] sm:$0xff]
      %v1749 = vld [vmem:[%s1726 + $0xb0] sm:$0xff]
      %v1750 = vld [vmem:[%s1726 + $0xb8] sm:$0xff]
      %v1751 = vld [vmem:[%s1726 + $0xc0] sm:$0xff]
      %v1752 = vld [vmem:[%s1726 + $0xc8] sm:$0xff]
      %v1753 = vld [vmem:[%s1726 + $0xd0] sm:$0xff]
      %v1754 = vld [vmem:[%s1726 + $0xd8] sm:$0xff]
      %v1755 = vld [vmem:[%s1726 + $0xe0] sm:$0xff]
      %v1756 = vld [vmem:[%s1726 + $0xe8] sm:$0xff]
      %v1757 = vld [vmem:[%s1726 + $0xf0] sm:$0xff]
      %v1758 = vld [vmem:[%s1726 + $0xf8] sm:$0xff]
      %v1791 = vunpack.c.l.b16 %v1727
      %v1792 = vunpack.c.h.b16 %v1727
      %v1793 = vunpack.c.l.b16 %v1728
      %v1794 = vunpack.c.h.b16 %v1728
      %v1795 = vunpack.c.l.b16 %v1729
      %v1796 = vunpack.c.h.b16 %v1729
      %v1797 = vunpack.c.l.b16 %v1730
      %v1798 = vunpack.c.h.b16 %v1730
      %v1799 = vunpack.c.l.b16 %v1731
      %v1800 = vunpack.c.h.b16 %v1731
      %v1801 = vunpack.c.l.b16 %v1732
      %v1802 = vunpack.c.h.b16 %v1732
      %v1803 = vunpack.c.l.b16 %v1733
      %v1804 = vunpack.c.h.b16 %v1733
      %v1805 = vunpack.c.l.b16 %v1734
      %v1806 = vunpack.c.h.b16 %v1734
      %v1807 = vunpack.c.l.b16 %v1735
      %v1808 = vunpack.c.h.b16 %v1735
      %v1809 = vunpack.c.l.b16 %v1736
      %v1810 = vunpack.c.h.b16 %v1736
      %v1811 = vunpack.c.l.b16 %v1737
      %v1812 = vunpack.c.h.b16 %v1737
      %v1813 = vunpack.c.l.b16 %v1738
      %v1814 = vunpack.c.h.b16 %v1738
      %v1815 = vunpack.c.l.b16 %v1739
      %v1816 = vunpack.c.h.b16 %v1739
      %v1817 = vunpack.c.l.b16 %v1740
      %v1818 = vunpack.c.h.b16 %v1740
      %v1819 = vunpack.c.l.b16 %v1741
      %v1820 = vunpack.c.h.b16 %v1741
      %v1821 = vunpack.c.l.b16 %v1742
      %v1822 = vunpack.c.h.b16 %v1742
      %v1823 = vunpack.c.l.b16 %v1743
      %v1824 = vunpack.c.h.b16 %v1743
      %v1825 = vunpack.c.l.b16 %v1744
      %v1826 = vunpack.c.h.b16 %v1744
      %v1827 = vunpack.c.l.b16 %v1745
      %v1828 = vunpack.c.h.b16 %v1745
      %v1829 = vunpack.c.l.b16 %v1746
      %v1830 = vunpack.c.h.b16 %v1746
      %v1831 = vunpack.c.l.b16 %v1747
      %v1832 = vunpack.c.h.b16 %v1747
      %v1833 = vunpack.c.l.b16 %v1748
      %v1834 = vunpack.c.h.b16 %v1748
      %v1835 = vunpack.c.l.b16 %v1749
      %v1836 = vunpack.c.h.b16 %v1749
      %v1837 = vunpack.c.l.b16 %v1750
      %v1838 = vunpack.c.h.b16 %v1750
      %v1839 = vunpack.c.l.b16 %v1751
      %v1840 = vunpack.c.h.b16 %v1751
      %v1841 = vunpack.c.l.b16 %v1752
      %v1842 = vunpack.c.h.b16 %v1752
      %v1843 = vunpack.c.l.b16 %v1753
      %v1844 = vunpack.c.h.b16 %v1753
      %v1845 = vunpack.c.l.b16 %v1754
      %v1846 = vunpack.c.h.b16 %v1754
      %v1847 = vunpack.c.l.b16 %v1755
      %v1848 = vunpack.c.h.b16 %v1755
      %v1849 = vunpack.c.l.b16 %v1756
      %v1850 = vunpack.c.h.b16 %v1756
      %v1851 = vunpack.c.l.b16 %v1757
      %v1852 = vunpack.c.h.b16 %v1757
      %v1853 = vunpack.c.l.b16 %v1758
      %v1854 = vunpack.c.h.b16 %v1758
      %v1855 = vpack.c.b16 %v1793, %v1791
      %v1856 = vpack.c.b16 %v1794, %v1792
      %v1857 = vpack.c.b16 %v1797, %v1795
      %v1858 = vpack.c.b16 %v1798, %v1796
      %v1859 = vpack.c.b16 %v1801, %v1799
      %v1860 = vpack.c.b16 %v1802, %v1800
      %v1861 = vpack.c.b16 %v1805, %v1803
      %v1862 = vpack.c.b16 %v1806, %v1804
      %v1863 = vpack.c.b16 %v1809, %v1807
      %v1864 = vpack.c.b16 %v1810, %v1808
      %v1865 = vpack.c.b16 %v1813, %v1811
      %v1866 = vpack.c.b16 %v1814, %v1812
      %v1867 = vpack.c.b16 %v1817, %v1815
      %v1868 = vpack.c.b16 %v1818, %v1816
      %v1869 = vpack.c.b16 %v1821, %v1819
      %v1870 = vpack.c.b16 %v1822, %v1820
      %v1871 = vpack.c.b16 %v1825, %v1823
      %v1872 = vpack.c.b16 %v1826, %v1824
      %v1873 = vpack.c.b16 %v1829, %v1827
      %v1874 = vpack.c.b16 %v1830, %v1828
      %v1875 = vpack.c.b16 %v1833, %v1831
      %v1876 = vpack.c.b16 %v1834, %v1832
      %v1877 = vpack.c.b16 %v1837, %v1835
      %v1878 = vpack.c.b16 %v1838, %v1836
      %v1879 = vpack.c.b16 %v1841, %v1839
      %v1880 = vpack.c.b16 %v1842, %v1840
      %v1881 = vpack.c.b16 %v1845, %v1843
      %v1882 = vpack.c.b16 %v1846, %v1844
      %v1883 = vpack.c.b16 %v1849, %v1847
      %v1884 = vpack.c.b16 %v1850, %v1848
      %v1885 = vpack.c.b16 %v1853, %v1851
      %v1886 = vpack.c.b16 %v1854, %v1852
      %1919 = vmatpush.bf16.msra.mxu0 %v1869
      %1920 = vmatpush.bf16.msra.mxu0 %v1867
      %1921 = vmatpush.bf16.msra.mxu0 %v1865
      %1922 = vmatpush.bf16.msra.mxu0 %v1863
      %1923 = vmatpush.bf16.msra.mxu0 %v1861
      %1924 = vmatpush.bf16.msra.mxu0 %v1859
      %1925 = vmatpush.bf16.msra.mxu0 %v1857
      %1926 = vmatpush.bf16.msra.mxu0 %v1855
      %1927 = vmatmul.bf16.gmra.mxu0 %v1710
      %v1928 = vpop.f32.mrf.mxu0
      %v1929 = vadd.f32 0.0, %v1928
      %v1930 = vpop.f32.mrf.mxu0
      %v1931 = vadd.f32 0.0, %v1930
      %1932 = vmatmul.bf16.gmra.mxu0 %v1712
      %v1933 = vpop.f32.mrf.mxu0
      %v1934 = vadd.f32 0.0, %v1933
      %v1935 = vpop.f32.mrf.mxu0
      %v1936 = vadd.f32 0.0, %v1935
      %1937 = vmatmul.bf16.gmra.mxu0 %v1714
      %v1938 = vpop.f32.mrf.mxu0
      %v1939 = vadd.f32 0.0, %v1938
      %v1940 = vpop.f32.mrf.mxu0
      %v1941 = vadd.f32 0.0, %v1940
      %1942 = vmatmul.bf16.gmra.mxu0 %v1716
      %v1943 = vpop.f32.mrf.mxu0
      %v1944 = vadd.f32 0.0, %v1943
      %v1945 = vpop.f32.mrf.mxu0
      %v1946 = vadd.f32 0.0, %v1945
      %1947 = vmatmul.bf16.gmra.mxu0 %v1718
      %v1948 = vpop.f32.mrf.mxu0
      %v1949 = vadd.f32 0.0, %v1948
      %v1950 = vpop.f32.mrf.mxu0
      %v1951 = vadd.f32 0.0, %v1950
      %1952 = vmatmul.bf16.gmra.mxu0 %v1720
      %v1953 = vpop.f32.mrf.mxu0
      %v1954 = vadd.f32 0.0, %v1953
      %v1955 = vpop.f32.mrf.mxu0
      %v1956 = vadd.f32 0.0, %v1955
      %1957 = vmatmul.bf16.gmra.mxu0 %v1722
      %v1958 = vpop.f32.mrf.mxu0
      %v1959 = vadd.f32 0.0, %v1958
      %v1960 = vpop.f32.mrf.mxu0
      %v1961 = vadd.f32 0.0, %v1960
      %1962 = vmatmul.bf16.gmra.mxu0 %v1724
      %v1963 = vpop.f32.mrf.mxu0
      %v1964 = vadd.f32 0.0, %v1963
      %v1965 = vpop.f32.mrf.mxu0
      %v1966 = vadd.f32 0.0, %v1965
      %1967 = vdwg.mxu0
      %1968 = vmatpush.bf16.msra.mxu0 %v1885
      %1969 = vmatpush.bf16.msra.mxu0 %v1883
      %1970 = vmatpush.bf16.msra.mxu0 %v1881
      %1971 = vmatpush.bf16.msra.mxu0 %v1879
      %1972 = vmatpush.bf16.msra.mxu0 %v1877
      %1973 = vmatpush.bf16.msra.mxu0 %v1875
      %1974 = vmatpush.bf16.msra.mxu0 %v1873
      %1975 = vmatpush.bf16.msra.mxu0 %v1871
      %1976 = vmatmul.bf16.gmra.mxu0 %v1711
      %v1977 = vpop.f32.mrf.mxu0
      %v1978 = vadd.f32 %v1929, %v1977
      %v1979 = vpop.f32.mrf.mxu0
      %v1980 = vadd.f32 %v1931, %v1979
      %1981 = vmatmul.bf16.gmra.mxu0 %v1713
      %v1982 = vpop.f32.mrf.mxu0
      %v1983 = vadd.f32 %v1934, %v1982
      %v1984 = vpop.f32.mrf.mxu0
      %v1985 = vadd.f32 %v1936, %v1984
      %1986 = vmatmul.bf16.gmra.mxu0 %v1715
      %v1987 = vpop.f32.mrf.mxu0
      %v1988 = vadd.f32 %v1939, %v1987
      %v1989 = vpop.f32.mrf.mxu0
      %v1990 = vadd.f32 %v1941, %v1989
      %1991 = vmatmul.bf16.gmra.mxu0 %v1717
      %v1992 = vpop.f32.mrf.mxu0
      %v1993 = vadd.f32 %v1944, %v1992
      %v1994 = vpop.f32.mrf.mxu0
      %v1995 = vadd.f32 %v1946, %v1994
      %1996 = vmatmul.bf16.gmra.mxu0 %v1719
      %v1997 = vpop.f32.mrf.mxu0
      %v1998 = vadd.f32 %v1949, %v1997
      %v1999 = vpop.f32.mrf.mxu0
      %v2000 = vadd.f32 %v1951, %v1999
      %2001 = vmatmul.bf16.gmra.mxu0 %v1721
      %v2002 = vpop.f32.mrf.mxu0
      %v2003 = vadd.f32 %v1954, %v2002
      %v2004 = vpop.f32.mrf.mxu0
      %v2005 = vadd.f32 %v1956, %v2004
      %2006 = vmatmul.bf16.gmra.mxu0 %v1723
      %v2007 = vpop.f32.mrf.mxu0
      %v2008 = vadd.f32 %v1959, %v2007
      %v2009 = vpop.f32.mrf.mxu0
      %v2010 = vadd.f32 %v1961, %v2009
      %2011 = vmatmul.bf16.gmra.mxu0 %v1725
      %v2012 = vpop.f32.mrf.mxu0
      %v2013 = vadd.f32 %v1964, %v2012
      %v2014 = vpop.f32.mrf.mxu0
      %v2015 = vadd.f32 %v1966, %v2014
      %2016 = vdwg.mxu0
      %2017 = vmatpush.bf16.msra.mxu0 %v1870
      %2018 = vmatpush.bf16.msra.mxu0 %v1868
      %2019 = vmatpush.bf16.msra.mxu0 %v1866
      %2020 = vmatpush.bf16.msra.mxu0 %v1864
      %2021 = vmatpush.bf16.msra.mxu0 %v1862
      %2022 = vmatpush.bf16.msra.mxu0 %v1860
      %2023 = vmatpush.bf16.msra.mxu0 %v1858
      %2024 = vmatpush.bf16.msra.mxu0 %v1856
      %2025 = vmatmul.bf16.gmra.mxu0 %v1710
      %v2026 = vpop.f32.mrf.mxu0
      %v2027 = vadd.f32 0.0, %v2026
      %v2028 = vpop.f32.mrf.mxu0
      %v2029 = vadd.f32 0.0, %v2028
      %2030 = vmatmul.bf16.gmra.mxu0 %v1712
      %v2031 = vpop.f32.mrf.mxu0
      %v2032 = vadd.f32 0.0, %v2031
      %v2033 = vpop.f32.mrf.mxu0
      %v2034 = vadd.f32 0.0, %v2033
      %2035 = vmatmul.bf16.gmra.mxu0 %v1714
      %v2036 = vpop.f32.mrf.mxu0
      %v2037 = vadd.f32 0.0, %v2036
      %v2038 = vpop.f32.mrf.mxu0
      %v2039 = vadd.f32 0.0, %v2038
      %2040 = vmatmul.bf16.gmra.mxu0 %v1716
      %v2041 = vpop.f32.mrf.mxu0
      %v2042 = vadd.f32 0.0, %v2041
      %v2043 = vpop.f32.mrf.mxu0
      %v2044 = vadd.f32 0.0, %v2043
      %2045 = vmatmul.bf16.gmra.mxu0 %v1718
      %v2046 = vpop.f32.mrf.mxu0
      %v2047 = vadd.f32 0.0, %v2046
      %v2048 = vpop.f32.mrf.mxu0
      %v2049 = vadd.f32 0.0, %v2048
      %2050 = vmatmul.bf16.gmra.mxu0 %v1720
      %v2051 = vpop.f32.mrf.mxu0
      %v2052 = vadd.f32 0.0, %v2051
      %v2053 = vpop.f32.mrf.mxu0
      %v2054 = vadd.f32 0.0, %v2053
      %2055 = vmatmul.bf16.gmra.mxu0 %v1722
      %v2056 = vpop.f32.mrf.mxu0
      %v2057 = vadd.f32 0.0, %v2056
      %v2058 = vpop.f32.mrf.mxu0
      %v2059 = vadd.f32 0.0, %v2058
      %2060 = vmatmul.bf16.gmra.mxu0 %v1724
      %v2061 = vpop.f32.mrf.mxu0
      %v2062 = vadd.f32 0.0, %v2061
      %v2063 = vpop.f32.mrf.mxu0
      %v2064 = vadd.f32 0.0, %v2063
      %2065 = vdwg.mxu0
      %2066 = vmatpush.bf16.msra.mxu0 %v1886
      %2067 = vmatpush.bf16.msra.mxu0 %v1884
      %2068 = vmatpush.bf16.msra.mxu0 %v1882
      %2069 = vmatpush.bf16.msra.mxu0 %v1880
      %2070 = vmatpush.bf16.msra.mxu0 %v1878
      %2071 = vmatpush.bf16.msra.mxu0 %v1876
      %2072 = vmatpush.bf16.msra.mxu0 %v1874
      %2073 = vmatpush.bf16.msra.mxu0 %v1872
      %2074 = vmatmul.bf16.gmra.mxu0 %v1711
      %v2075 = vpop.f32.mrf.mxu0
      %v2076 = vadd.f32 %v2027, %v2075
      %v2077 = vpop.f32.mrf.mxu0
      %v2078 = vadd.f32 %v2029, %v2077
      %2079 = vmatmul.bf16.gmra.mxu0 %v1713
      %v2080 = vpop.f32.mrf.mxu0
      %v2081 = vadd.f32 %v2032, %v2080
      %v2082 = vpop.f32.mrf.mxu0
      %v2083 = vadd.f32 %v2034, %v2082
      %2084 = vmatmul.bf16.gmra.mxu0 %v1715
      %v2085 = vpop.f32.mrf.mxu0
      %v2086 = vadd.f32 %v2037, %v2085
      %v2087 = vpop.f32.mrf.mxu0
      %v2088 = vadd.f32 %v2039, %v2087
      %2089 = vmatmul.bf16.gmra.mxu0 %v1717
      %v2090 = vpop.f32.mrf.mxu0
      %v2091 = vadd.f32 %v2042, %v2090
      %v2092 = vpop.f32.mrf.mxu0
      %v2093 = vadd.f32 %v2044, %v2092
      %2094 = vmatmul.bf16.gmra.mxu0 %v1719
      %v2095 = vpop.f32.mrf.mxu0
      %v2096 = vadd.f32 %v2047, %v2095
      %v2097 = vpop.f32.mrf.mxu0
      %v2098 = vadd.f32 %v2049, %v2097
      %2099 = vmatmul.bf16.gmra.mxu0 %v1721
      %v2100 = vpop.f32.mrf.mxu0
      %v2101 = vadd.f32 %v2052, %v2100
      %v2102 = vpop.f32.mrf.mxu0
      %v2103 = vadd.f32 %v2054, %v2102
      %2104 = vmatmul.bf16.gmra.mxu0 %v1723
      %v2105 = vpop.f32.mrf.mxu0
      %v2106 = vadd.f32 %v2057, %v2105
      %v2107 = vpop.f32.mrf.mxu0
      %v2108 = vadd.f32 %v2059, %v2107
      %2109 = vmatmul.bf16.gmra.mxu0 %v1725
      %v2110 = vpop.f32.mrf.mxu0
      %v2111 = vadd.f32 %v2062, %v2110
      %v2112 = vpop.f32.mrf.mxu0
      %v2113 = vadd.f32 %v2064, %v2112
      %2114 = vdwg.mxu0
      %v2115 = vadd.f32 %v1573, %v1978
      %v2116 = vadd.f32 %v1671, %v2076
      %v2117 = vadd.f32 %v1575, %v1980
      %v2118 = vadd.f32 %v1673, %v2078
      %v2119 = vadd.f32 %v1578, %v1983
      %v2120 = vadd.f32 %v1676, %v2081
      %v2121 = vadd.f32 %v1580, %v1985
      %v2122 = vadd.f32 %v1678, %v2083
      %v2123 = vadd.f32 %v1583, %v1988
      %v2124 = vadd.f32 %v1681, %v2086
      %v2125 = vadd.f32 %v1585, %v1990
      %v2126 = vadd.f32 %v1683, %v2088
      %v2127 = vadd.f32 %v1588, %v1993
      %v2128 = vadd.f32 %v1686, %v2091
      %v2129 = vadd.f32 %v1590, %v1995
      %v2130 = vadd.f32 %v1688, %v2093
      %v2131 = vadd.f32 %v1593, %v1998
      %v2132 = vadd.f32 %v1691, %v2096
      %v2133 = vadd.f32 %v1595, %v2000
      %v2134 = vadd.f32 %v1693, %v2098
      %v2135 = vadd.f32 %v1598, %v2003
      %v2136 = vadd.f32 %v1696, %v2101
      %v2137 = vadd.f32 %v1600, %v2005
      %v2138 = vadd.f32 %v1698, %v2103
      %v2139 = vadd.f32 %v1603, %v2008
      %v2140 = vadd.f32 %v1701, %v2106
      %v2141 = vadd.f32 %v1605, %v2010
      %v2142 = vadd.f32 %v1703, %v2108
      %v2143 = vadd.f32 %v1608, %v2013
      %v2144 = vadd.f32 %v1706, %v2111
      %v2145 = vadd.f32 %v1610, %v2015
      %v2146 = vadd.f32 %v1708, %v2113
      %v2147 = vpack.c.bf16 %v2116, %v2115
      %v2148 = vpack.c.bf16 %v2118, %v2117
      %v2149 = vpack.c.bf16 %v2120, %v2119
      %v2150 = vpack.c.bf16 %v2122, %v2121
      %v2151 = vpack.c.bf16 %v2124, %v2123
      %v2152 = vpack.c.bf16 %v2126, %v2125
      %v2153 = vpack.c.bf16 %v2128, %v2127
      %v2154 = vpack.c.bf16 %v2130, %v2129
      %v2155 = vpack.c.bf16 %v2132, %v2131
      %v2156 = vpack.c.bf16 %v2134, %v2133
      %v2157 = vpack.c.bf16 %v2136, %v2135
      %v2158 = vpack.c.bf16 %v2138, %v2137
      %v2159 = vpack.c.bf16 %v2140, %v2139
      %v2160 = vpack.c.bf16 %v2142, %v2141
      %v2161 = vpack.c.bf16 %v2144, %v2143
      %v2162 = vpack.c.bf16 %v2146, %v2145
      %2163 = vst [vmem:[%s239] sm:$0xff] %v2147
      %2164 = vst [vmem:[%s239 + $0x8] sm:$0xff] %v2148
      %2165 = vst [vmem:[%s239 + $0x10] sm:$0xff] %v2149
      %2166 = vst [vmem:[%s239 + $0x18] sm:$0xff] %v2150
      %2167 = vst [vmem:[%s239 + $0x20] sm:$0xff] %v2151
      %2168 = vst [vmem:[%s239 + $0x28] sm:$0xff] %v2152
      %2169 = vst [vmem:[%s239 + $0x30] sm:$0xff] %v2153
      %2170 = vst [vmem:[%s239 + $0x38] sm:$0xff] %v2154
      %2171 = vst [vmem:[%s239 + $0x40] sm:$0xff] %v2155
      %2172 = vst [vmem:[%s239 + $0x48] sm:$0xff] %v2156
      %2173 = vst [vmem:[%s239 + $0x50] sm:$0xff] %v2157
      %2174 = vst [vmem:[%s239 + $0x58] sm:$0xff] %v2158
      %2175 = vst [vmem:[%s239 + $0x60] sm:$0xff] %v2159
      %2176 = vst [vmem:[%s239 + $0x68] sm:$0xff] %v2160
      %2177 = vst [vmem:[%s239 + $0x70] sm:$0xff] %v2161
      %2178 = vst [vmem:[%s239 + $0x78] sm:$0xff] %v2162
      %v2179 = vadd.f32 %v2115, %v2117
      %v2180 = vadd.f32 %v2179, %v2119
      %v2181 = vadd.f32 %v2180, %v2121
      %v2182 = vadd.f32 %v2181, %v2123
      %v2183 = vadd.f32 %v2182, %v2125
      %v2184 = vadd.f32 %v2183, %v2127
      %v2185 = vadd.f32 %v2184, %v2129
      %v2186 = vadd.f32 %v2185, %v2131
      %v2187 = vadd.f32 %v2186, %v2133
      %v2188 = vadd.f32 %v2187, %v2135
      %v2189 = vadd.f32 %v2188, %v2137
      %v2190 = vadd.f32 %v2189, %v2139
      %v2191 = vadd.f32 %v2190, %v2141
      %v2192 = vadd.f32 %v2191, %v2143
      %v2193 = vadd.f32 %v2192, %v2145
      %v2194 = vrot.slane %v2193, 4
      %v2195 = vadd.f32 %v2193, %v2194
      %v2196 = vrot.slane %v2195, 2
      %v2197 = vadd.f32 %v2195, %v2196
      %v2198 = vrot.slane %v2197, 1
      %v2199 = vadd.f32 %v2197, %v2198
      %v2200 = vadd.f32 %v2116, %v2118
      %v2201 = vadd.f32 %v2200, %v2120
      %v2202 = vadd.f32 %v2201, %v2122
      %v2203 = vadd.f32 %v2202, %v2124
      %v2204 = vadd.f32 %v2203, %v2126
      %v2205 = vadd.f32 %v2204, %v2128
      %v2206 = vadd.f32 %v2205, %v2130
      %v2207 = vadd.f32 %v2206, %v2132
      %v2208 = vadd.f32 %v2207, %v2134
      %v2209 = vadd.f32 %v2208, %v2136
      %v2210 = vadd.f32 %v2209, %v2138
      %v2211 = vadd.f32 %v2210, %v2140
      %v2212 = vadd.f32 %v2211, %v2142
      %v2213 = vadd.f32 %v2212, %v2144
      %v2214 = vadd.f32 %v2213, %v2146
      %v2215 = vrot.slane %v2214, 4
      %v2216 = vadd.f32 %v2214, %v2215
      %v2217 = vrot.slane %v2216, 2
      %v2218 = vadd.f32 %v2216, %v2217
      %v2219 = vrot.slane %v2218, 1
      %v2220 = vadd.f32 %v2218, %v2219
      %v2223 = vrot.slane %v2220, 7
      %vm2224 = vcmask 1040384
      %v2225 = vsel %vm2224, %v2199, %v2223
      %v2227 = vlaneseq
      %vm2228 = vcmp.ge.s32.totalorder %v2227, 0
      %vm2229 = vcmp.lt.s32.totalorder %v2227, 256
      %vm2230 = vmand %vm2228, %vm2229
      %2231 = vst.msk [vmem:[%s245] ss:$2 sm:$0x3] %vm2230, %v2225
      %v2232 = vmul.f32 %v2115, %v2115
      %v2233 = vmul.f32 %v2116, %v2116
      %v2234 = vmul.f32 %v2117, %v2117
      %v2235 = vmul.f32 %v2118, %v2118
      %v2236 = vmul.f32 %v2119, %v2119
      %v2237 = vmul.f32 %v2120, %v2120
      %v2238 = vmul.f32 %v2121, %v2121
      %v2239 = vmul.f32 %v2122, %v2122
      %v2240 = vmul.f32 %v2123, %v2123
      %v2241 = vmul.f32 %v2124, %v2124
      %v2242 = vmul.f32 %v2125, %v2125
      %v2243 = vmul.f32 %v2126, %v2126
      %v2244 = vmul.f32 %v2127, %v2127
      %v2245 = vmul.f32 %v2128, %v2128
      %v2246 = vmul.f32 %v2129, %v2129
      %v2247 = vmul.f32 %v2130, %v2130
      %v2248 = vmul.f32 %v2131, %v2131
      %v2249 = vmul.f32 %v2132, %v2132
      %v2250 = vmul.f32 %v2133, %v2133
      %v2251 = vmul.f32 %v2134, %v2134
      %v2252 = vmul.f32 %v2135, %v2135
      %v2253 = vmul.f32 %v2136, %v2136
      %v2254 = vmul.f32 %v2137, %v2137
      %v2255 = vmul.f32 %v2138, %v2138
      %v2256 = vmul.f32 %v2139, %v2139
      %v2257 = vmul.f32 %v2140, %v2140
      %v2258 = vmul.f32 %v2141, %v2141
      %v2259 = vmul.f32 %v2142, %v2142
      %v2260 = vmul.f32 %v2143, %v2143
      %v2261 = vmul.f32 %v2144, %v2144
      %v2262 = vmul.f32 %v2145, %v2145
      %v2263 = vmul.f32 %v2146, %v2146
      %v2264 = vadd.f32 %v2232, %v2234
      %v2265 = vadd.f32 %v2264, %v2236
      %v2266 = vadd.f32 %v2265, %v2238
      %v2267 = vadd.f32 %v2266, %v2240
      %v2268 = vadd.f32 %v2267, %v2242
      %v2269 = vadd.f32 %v2268, %v2244
      %v2270 = vadd.f32 %v2269, %v2246
      %v2271 = vadd.f32 %v2270, %v2248
      %v2272 = vadd.f32 %v2271, %v2250
      %v2273 = vadd.f32 %v2272, %v2252
      %v2274 = vadd.f32 %v2273, %v2254
      %v2275 = vadd.f32 %v2274, %v2256
      %v2276 = vadd.f32 %v2275, %v2258
      %v2277 = vadd.f32 %v2276, %v2260
      %v2278 = vadd.f32 %v2277, %v2262
      %v2279 = vrot.slane %v2278, 4
      %v2280 = vadd.f32 %v2278, %v2279
      %v2281 = vrot.slane %v2280, 2
      %v2282 = vadd.f32 %v2280, %v2281
      %v2283 = vrot.slane %v2282, 1
      %v2284 = vadd.f32 %v2282, %v2283
      %v2285 = vadd.f32 %v2233, %v2235
      %v2286 = vadd.f32 %v2285, %v2237
      %v2287 = vadd.f32 %v2286, %v2239
      %v2288 = vadd.f32 %v2287, %v2241
      %v2289 = vadd.f32 %v2288, %v2243
      %v2290 = vadd.f32 %v2289, %v2245
      %v2291 = vadd.f32 %v2290, %v2247
      %v2292 = vadd.f32 %v2291, %v2249
      %v2293 = vadd.f32 %v2292, %v2251
      %v2294 = vadd.f32 %v2293, %v2253
      %v2295 = vadd.f32 %v2294, %v2255
      %v2296 = vadd.f32 %v2295, %v2257
      %v2297 = vadd.f32 %v2296, %v2259
      %v2298 = vadd.f32 %v2297, %v2261
      %v2299 = vadd.f32 %v2298, %v2263
      %v2300 = vrot.slane %v2299, 4
      %v2301 = vadd.f32 %v2299, %v2300
      %v2302 = vrot.slane %v2301, 2
      %v2303 = vadd.f32 %v2301, %v2302
      %v2304 = vrot.slane %v2303, 1
      %v2305 = vadd.f32 %v2303, %v2304
      %v2308 = vrot.slane %v2305, 7
      %v2309 = vsel %vm2224, %v2284, %v2308
      %s2311 = scalar_lea.vmem %s245, 1
      %2312 = vst.msk [vmem:[%s2311] ss:$2 sm:$0x3] %vm2230, %v2309
      %s2313 = smul.u32 8, %s17
      %p2314 = scmp.lt.s32.totalorder %s2313, 31
      %s2315 = scalar_select %p2314, %s2313, 31
      %s2316 = smul.addr %s2315, 4
      %s2317 = smul.addr %s2316, 4
      %s2318 = scalar_lea.vmem %s4, %s2317
      %p2319 = scmp.lt.s32.totalorder %s17, 3
      %s2320 = scalar_select %p2319, %s17, 3
      %s2321 = smul.addr %s2320, 2
      %s2322 = smul.addr %s2321, 2
      %s2323 = scalar_lea.vmem %s5, %s2322
      // Predicated region
      $region37: #{forward_layer.7} parent=35 // pred_check
        %p2324 = pneg %p124
      $region38: #{forward_layer.7} parent=35 // pred_check_branch
        %2326 = sbr.rel (%p2324) target = $region40
      $region39: #{forward_layer.7} parent=35 // pred_region
        %s2327 = smul.u32 8, %s17
      $region40: #{forward_layer.7} parent=35 // pred_fallthru
        _
      // Predicated region
      $region41: #{forward_layer.7} parent=35 // pred_check
        %p2328 = pneg %p150
      $region42: #{forward_layer.7} parent=35 // pred_check_branch
        %2330 = sbr.rel (%p2328) target = $region44
      $region43: #{forward_layer.7} parent=35 // pred_region
        _
      $region44: #{forward_layer.7} parent=35 // pred_fallthru
        _
    $region36: #{forward_layer.7} parent=5 // pred_fallthru
      _
    %p2331 = scmp.le.s32.totalorder 2, %s12
    // Predicated region
    $region45: #{forward_layer.7} parent=5 // pred_check
      %p2332 = pneg %p2331
    $region46: #{forward_layer.7} parent=5 // pred_check_branch
      %2334 = sbr.rel (%p2332) target = $region48
    $region47: #{forward_layer.7} parent=5 // pred_region
      %s2335 = ssub.s32 %s12, 2
      // Predicated region
      $region49: #{forward_layer.7} parent=47 // pred_check
        %p2336 = pneg %p130
      $region50: #{forward_layer.7} parent=47 // pred_check_branch
        %2338 = sbr.rel (%p2336) target = $region52
      $region51: #{forward_layer.7} parent=47 // pred_region
        %s2339 = smul.u32 8, %s18
        %p2340 = scmp.lt.s32.totalorder %s2339, 31
        %s2341 = scalar_select %p2340, %s2339, 31
        %s2342 = smul.addr %s2341, 4
        %s2343 = smul.addr %s2342, 4
        %s2344 = scalar_lea.vmem %s4, %s2343
      $region52: #{forward_layer.7} parent=47 // pred_fallthru
        _
      // Predicated region
      $region53: #{forward_layer.7} parent=47 // pred_check
        %p2345 = pneg %p156
      $region54: #{forward_layer.7} parent=47 // pred_check_branch
        %2347 = sbr.rel (%p2345) target = $region56
      $region55: #{forward_layer.7} parent=47 // pred_region
        %p2348 = scmp.lt.s32.totalorder %s18, 3
        %s2349 = scalar_select %p2348, %s18, 3
        %s2350 = smul.addr %s2349, 2
        %s2351 = smul.addr %s2350, 2
        %s2352 = scalar_lea.vmem %s5, %s2351
      $region56: #{forward_layer.7} parent=47 // pred_fallthru
        _
    $region48: #{forward_layer.7} parent=5 // pred_fallthru
      _
  $region6: #{forward_layer.7} parent=0 // loop_footer
    %s16 = sadd.s32 1, %s12
  $region7: #{forward_layer.7} parent=0 // loop_footer_branch
    %11 = sbr.rel target = $region3
  $region8: #{forward_layer.7} parent=0 // loop_exit
    _

// kernel: forward_layer.8
$region0: #{forward_layer.8}
  #allocation0 [shape = 'u32[]', space=smem, size = 0x4, offset = 0x4, fixed_abs, tag = 'smem constant byte address 0x4 - core index']
  #allocation1 [shape = 'u32[72,128]{1,0:T(1,128)}', space=vmem, size = 0x9000, scoped, tag = 'internal scratch']
  %s0 = inlined_call_operand.vmem [shape: bf16[32,16,256], index: 0, kind: input, shape index: {}]
  %s1 = inlined_call_operand.vmem [shape: f32[32,16,256], index: 1, kind: input, shape index: {}]
  %s2 = inlined_call_operand.vmem [shape: f32[1,256], index: 2, kind: input, shape index: {}]
  %s3 = inlined_call_operand.vmem [shape: f32[1,256], index: 3, kind: input, shape index: {}]
  %s4 = inlined_call_operand.vmem [shape: f32[32,16,256], index: 4, kind: output, shape index: {}]
  %s5 = sld [smem:[#allocation0]]
  $region49: #{forward_layer.8} parent=0
    _
  %s7 = ssub.s32 1, %s5
  %s8 = scalar_select 0, %s7, %s5
  loop: start=0, step=1, limit=6
  $region2: #{forward_layer.8} parent=0 // loop_pre_header
    _
  $region3: #{forward_layer.8} parent=0 // loop_header
    %s10 = sphi 0, %s14
    %p11 = scmp.ge.s32.totalorder %s10, 6
    %s20 = sphi 0, %s22
    %s23 = sphi 0, %s20
    %s24 = sphi 0, %s23
    %s40 = sphi 0, %s24
    %s46 = sphi 0, %s48
    %s49 = sphi 0, %s46
    %s50 = sphi 0, %s49
    %s66 = sphi 0, %s50
    %s70 = sphi 0, %s70
    %s72 = sphi 0, %s70
    %s73 = sphi 0, %s72
    %s87 = sphi 0, %s73
    %s91 = sphi 0, %s91
    %s93 = sphi 0, %s91
    %s94 = sphi 0, %s93
    %s108 = sphi 0, %s94
    %s114 = sphi 0, %s116
    %s117 = sphi 0, %s114
    %s118 = sphi 0, %s117
    %s134 = sphi 0, %s118
  $region4: #{forward_layer.8} parent=0 // loop_header_branch
    %13 = sbr.rel (%p11) target = $region8
  $region5: #{forward_layer.8} parent=0 // loop_body
    %s15 = ssub.s32 %s10, 1
    %s16 = ssub.s32 %s10, 2
    %s17 = sadd.s32 %s10, 1
    %s18 = ssub.s32 %s10, %s17
    %p19 = scmp.eq.s32.totalorder %s18, 0
    %s21 = sadd.s32 %s20, 1
    %s22 = scalar_select %p19, %s20, %s21
    %p25 = pneg %p19
    %p26 = scmp.eq.s32.totalorder %s10, 3
    %p27 = por %p25, %p26
    %p28 = scmp.ne.s32.totalorder %s20, %s23
    %p29 = scmp.eq.s32.totalorder %s10, 0
    %p30 = por %p28, %p29
    %p31 = scmp.ne.s32.totalorder %s20, %s23
    %p32 = scmp.eq.s32.totalorder %s15, 3
    %p33 = por %p31, %p32
    %p34 = scmp.ne.s32.totalorder %s23, %s24
    %p35 = scmp.eq.s32.totalorder %s15, 0
    %p36 = por %p34, %p35
    %p37 = scmp.ne.s32.totalorder %s23, %s24
    %p38 = scmp.eq.s32.totalorder %s16, 3
    %p39 = por %p37, %p38
    %p41 = scmp.ne.s32.totalorder %s24, %s40
    %p42 = scmp.eq.s32.totalorder %s16, 0
    %p43 = por %p41, %p42
    %s44 = ssub.s32 %s10, %s17
    %p45 = scmp.eq.s32.totalorder %s44, 0
    %s47 = sadd.s32 %s46, 1
    %s48 = scalar_select %p45, %s46, %s47
    %p51 = pneg %p45
    %p52 = scmp.eq.s32.totalorder %s10, 3
    %p53 = por %p51, %p52
    %p54 = scmp.ne.s32.totalorder %s46, %s49
    %p55 = scmp.eq.s32.totalorder %s10, 0
    %p56 = por %p54, %p55
    %p57 = scmp.ne.s32.totalorder %s46, %s49
    %p58 = scmp.eq.s32.totalorder %s15, 3
    %p59 = por %p57, %p58
    %p60 = scmp.ne.s32.totalorder %s49, %s50
    %p61 = scmp.eq.s32.totalorder %s15, 0
    %p62 = por %p60, %p61
    %p63 = scmp.ne.s32.totalorder %s49, %s50
    %p64 = scmp.eq.s32.totalorder %s16, 3
    %p65 = por %p63, %p64
    %p67 = scmp.ne.s32.totalorder %s50, %s66
    %p68 = scmp.eq.s32.totalorder %s16, 0
    %p69 = por %p67, %p68
    %s71 = sadd.s32 %s70, 1
    %p74 = scmp.eq.s32.totalorder %s10, 3
    %p75 = scmp.ne.s32.totalorder %s70, %s72
    %p76 = scmp.eq.s32.totalorder %s10, 0
    %p77 = por %p75, %p76
    %p78 = scmp.ne.s32.totalorder %s70, %s72
    %p79 = scmp.eq.s32.totalorder %s15, 3
    %p80 = por %p78, %p79
    %p81 = scmp.ne.s32.totalorder %s72, %s73
    %p82 = scmp.eq.s32.totalorder %s15, 0
    %p83 = por %p81, %p82
    %p84 = scmp.ne.s32.totalorder %s72, %s73
    %p85 = scmp.eq.s32.totalorder %s16, 3
    %p86 = por %p84, %p85
    %p88 = scmp.ne.s32.totalorder %s73, %s87
    %p89 = scmp.eq.s32.totalorder %s16, 0
    %p90 = por %p88, %p89
    %s92 = sadd.s32 %s91, 1
    %p95 = scmp.eq.s32.totalorder %s10, 3
    %p96 = scmp.ne.s32.totalorder %s91, %s93
    %p97 = scmp.eq.s32.totalorder %s10, 0
    %p98 = por %p96, %p97
    %p99 = scmp.ne.s32.totalorder %s91, %s93
    %p100 = scmp.eq.s32.totalorder %s15, 3
    %p101 = por %p99, %p100
    %p102 = scmp.ne.s32.totalorder %s93, %s94
    %p103 = scmp.eq.s32.totalorder %s15, 0
    %p104 = por %p102, %p103
    %p105 = scmp.ne.s32.totalorder %s93, %s94
    %p106 = scmp.eq.s32.totalorder %s16, 3
    %p107 = por %p105, %p106
    %p109 = scmp.ne.s32.totalorder %s94, %s108
    %p110 = scmp.eq.s32.totalorder %s16, 0
    %p111 = por %p109, %p110
    %s112 = ssub.s32 %s10, %s17
    %p113 = scmp.eq.s32.totalorder %s112, 0
    %s115 = sadd.s32 %s114, 1
    %s116 = scalar_select %p113, %s114, %s115
    %p119 = pneg %p113
    %p120 = scmp.eq.s32.totalorder %s10, 3
    %p121 = por %p119, %p120
    %p122 = scmp.ne.s32.totalorder %s114, %s117
    %p123 = scmp.eq.s32.totalorder %s10, 0
    %p124 = por %p122, %p123
    %p125 = scmp.ne.s32.totalorder %s114, %s117
    %p126 = scmp.eq.s32.totalorder %s15, 3
    %p127 = por %p125, %p126
    %p128 = scmp.ne.s32.totalorder %s117, %s118
    %p129 = scmp.eq.s32.totalorder %s15, 0
    %p130 = por %p128, %p129
    %p131 = scmp.ne.s32.totalorder %s117, %s118
    %p132 = scmp.eq.s32.totalorder %s16, 3
    %p133 = por %p131, %p132
    %p135 = scmp.ne.s32.totalorder %s118, %s134
    %p136 = scmp.eq.s32.totalorder %s16, 0
    %p137 = por %p135, %p136
    %p138 = scmp.le.s32.totalorder 1, %s10
    %p139 = scmp.lt.s32.totalorder %s10, 5
    %p140 = pnand %p138, %p139
    %p141 = pneg %p140
    // Predicated region
    $region9: #{forward_layer.8} parent=5 // pred_check
      _
    $region10: #{forward_layer.8} parent=5 // pred_check_branch
      %143 = sbr.rel (%p140) target = $region12
    $region11: #{forward_layer.8} parent=5 // pred_region
      %s144 = ssub.s32 %s10, 1
      // Predicated region
      $region13: #{forward_layer.8} parent=11 // pred_check
        %p145 = pneg %p83
      $region14: #{forward_layer.8} parent=11 // pred_check_branch
        %147 = sbr.rel (%p145) target = $region16
      $region15: #{forward_layer.8} parent=11 // pred_region
        _
      $region16: #{forward_layer.8} parent=11 // pred_fallthru
        _
      // Predicated region
      $region17: #{forward_layer.8} parent=11 // pred_check
        %p148 = pneg %p104
      $region18: #{forward_layer.8} parent=11 // pred_check_branch
        %150 = sbr.rel (%p148) target = $region20
      $region19: #{forward_layer.8} parent=11 // pred_region
        _
      $region20: #{forward_layer.8} parent=11 // pred_fallthru
        _
    $region12: #{forward_layer.8} parent=5 // pred_fallthru
      _
    %p151 = scmp.lt.s32.totalorder %s10, 4
    // Predicated region
    $region21: #{forward_layer.8} parent=5 // pred_check
      %p152 = pneg %p151
    $region22: #{forward_layer.8} parent=5 // pred_check_branch
      %154 = sbr.rel (%p152) target = $region24
    $region23: #{forward_layer.8} parent=5 // pred_region
      // Predicated region
      $region25: #{forward_layer.8} parent=23 // pred_check
        %p155 = pneg %p30
      $region26: #{forward_layer.8} parent=23 // pred_check_branch
        %157 = sbr.rel (%p155) target = $region28
      $region27: #{forward_layer.8} parent=23 // pred_region
        %s158 = smul.u32 8, %s10
        %p159 = scmp.lt.s32.totalorder %s158, 31
        %s160 = scalar_select %p159, %s158, 31
        %s161 = smul.addr %s160, 4
        %s162 = smul.addr %s161, 4
        %s163 = scalar_lea.vmem %s0, %s162
        %s164 = smul.u32 8, %s10
      $region28: #{forward_layer.8} parent=23 // pred_fallthru
        _
      // Predicated region
      $region29: #{forward_layer.8} parent=23 // pred_check
        %p165 = pneg %p56
      $region30: #{forward_layer.8} parent=23 // pred_check_branch
        %167 = sbr.rel (%p165) target = $region32
      $region31: #{forward_layer.8} parent=23 // pred_region
        %s168 = smul.u32 8, %s10
        %p169 = scmp.lt.s32.totalorder %s168, 31
        %s170 = scalar_select %p169, %s168, 31
        %s171 = smul.addr %s170, 4
        %s172 = smul.addr %s171, 8
        %s173 = scalar_lea.vmem %s1, %s172
        %s174 = smul.u32 8, %s10
      $region32: #{forward_layer.8} parent=23 // pred_fallthru
        _
    $region24: #{forward_layer.8} parent=5 // pred_fallthru
      _
    %p175 = scmp.le.s32.totalorder 1, %s10
    %p176 = scmp.lt.s32.totalorder %s10, 5
    %p177 = pnand %p175, %p176
    %p178 = pneg %p177
    // Predicated region
    $region33: #{forward_layer.8} parent=5 // pred_check
      _
    $region34: #{forward_layer.8} parent=5 // pred_check_branch
      %180 = sbr.rel (%p177) target = $region36
    $region35: #{forward_layer.8} parent=5 // pred_region
      %s181 = ssub.s32 %s10, 1
      %s182 = smul.u32 8, %s15
      %p183 = scmp.lt.s32.totalorder %s182, 31
      %s184 = scalar_select %p183, %s182, 31
      %s185 = smul.addr %s184, 4
      %s186 = smul.addr %s185, 4
      %s187 = scalar_lea.vmem %s0, %s186
      %p188 = pneg %p36
      %p189 = pneg %p33
      %s190 = smul.u32 8, %s15
      %p191 = scmp.lt.s32.totalorder %s190, 31
      %s192 = scalar_select %p191, %s190, 31
      %s193 = smul.addr %s192, 4
      %s194 = smul.addr %s193, 8
      %s195 = scalar_lea.vmem %s1, %s194
      %p196 = pneg %p62
      %p197 = pneg %p59
      %p198 = pneg %p83
      %p199 = pneg %p80
      %p200 = pneg %p104
      %p201 = pneg %p101
      %p202 = pneg %p130
      %p203 = pneg %p127
      %s204 = smul.u32 8, %s15
      %p205 = scmp.lt.s32.totalorder %s204, 31
      %s206 = scalar_select %p205, %s204, 31
      %s207 = smul.addr %s206, 4
      %s208 = smul.addr %s207, 8
      %s209 = scalar_lea.vmem %s4, %s208
      %s210 = smul.u32 8, %s15
      %p211 = scmp.lt.s32.totalorder %s210, 31
      %s212 = scalar_select %p211, %s210, 31
      %s213 = smul.addr %s212, 4
      %s214 = smul.addr %s213, 4
      %s215 = scalar_lea.vmem %s0, %s214
      %s216 = smul.u32 8, %s15
      %s217 = smul.u32 8, %s15
      %p218 = scmp.lt.s32.totalorder %s217, 31
      %s219 = scalar_select %p218, %s217, 31
      %s220 = smul.addr %s219, 4
      %s221 = smul.addr %s220, 8
      %s222 = scalar_lea.vmem %s1, %s221
      %s223 = smul.u32 8, %s15
      %s224 = smul.u32 8, %s15
      %p225 = scmp.lt.s32.totalorder %s224, 31
      %s226 = scalar_select %p225, %s224, 31
      %s227 = smul.addr %s226, 4
      %s228 = smul.addr %s227, 8
      %s229 = scalar_lea.vmem %s4, %s228
      %s230 = smul.u32 8, %s15
      %v231 = vld [vmem:[%s215] sm:$0xff]
      %v232 = vld [vmem:[%s215 + $0x8] sm:$0xff]
      %v233 = vld [vmem:[%s215 + $0x10] sm:$0xff]
      %v234 = vld [vmem:[%s215 + $0x18] sm:$0xff]
      %v235 = vld [vmem:[%s215 + $0x20] sm:$0xff]
      %v236 = vld [vmem:[%s215 + $0x28] sm:$0xff]
      %v237 = vld [vmem:[%s215 + $0x30] sm:$0xff]
      %v238 = vld [vmem:[%s215 + $0x38] sm:$0xff]
      %v239 = vld [vmem:[%s215 + $0x40] sm:$0xff]
      %v240 = vld [vmem:[%s215 + $0x48] sm:$0xff]
      %v241 = vld [vmem:[%s215 + $0x50] sm:$0xff]
      %v242 = vld [vmem:[%s215 + $0x58] sm:$0xff]
      %v243 = vld [vmem:[%s215 + $0x60] sm:$0xff]
      %v244 = vld [vmem:[%s215 + $0x68] sm:$0xff]
      %v245 = vld [vmem:[%s215 + $0x70] sm:$0xff]
      %v246 = vld [vmem:[%s215 + $0x78] sm:$0xff]
      %v247 = vunpack.c.l.bf16 %v231
      %v248 = vunpack.c.h.bf16 %v231
      %v249 = vunpack.c.l.bf16 %v232
      %v250 = vunpack.c.h.bf16 %v232
      %v251 = vunpack.c.l.bf16 %v233
      %v252 = vunpack.c.h.bf16 %v233
      %v253 = vunpack.c.l.bf16 %v234
      %v254 = vunpack.c.h.bf16 %v234
      %v255 = vunpack.c.l.bf16 %v235
      %v256 = vunpack.c.h.bf16 %v235
      %v257 = vunpack.c.l.bf16 %v236
      %v258 = vunpack.c.h.bf16 %v236
      %v259 = vunpack.c.l.bf16 %v237
      %v260 = vunpack.c.h.bf16 %v237
      %v261 = vunpack.c.l.bf16 %v238
      %v262 = vunpack.c.h.bf16 %v238
      %v263 = vunpack.c.l.bf16 %v239
      %v264 = vunpack.c.h.bf16 %v239
      %v265 = vunpack.c.l.bf16 %v240
      %v266 = vunpack.c.h.bf16 %v240
      %v267 = vunpack.c.l.bf16 %v241
      %v268 = vunpack.c.h.bf16 %v241
      %v269 = vunpack.c.l.bf16 %v242
      %v270 = vunpack.c.h.bf16 %v242
      %v271 = vunpack.c.l.bf16 %v243
      %v272 = vunpack.c.h.bf16 %v243
      %v273 = vunpack.c.l.bf16 %v244
      %v274 = vunpack.c.h.bf16 %v244
      %v275 = vunpack.c.l.bf16 %v245
      %v276 = vunpack.c.h.bf16 %v245
      %v277 = vunpack.c.l.bf16 %v246
      %v278 = vunpack.c.h.bf16 %v246
      %v279 = vld [vmem:[%s2] sm:$0x3]
      %v281 = vperm.slane %v279, 0
      %v282 = vperm.slane %v279, 1
      %v285 = vmul.f32 %v247, %v281
      %v286 = vmul.f32 %v248, %v282
      %v287 = vmul.f32 %v249, %v281
      %v288 = vmul.f32 %v250, %v282
      %v289 = vmul.f32 %v251, %v281
      %v290 = vmul.f32 %v252, %v282
      %v291 = vmul.f32 %v253, %v281
      %v292 = vmul.f32 %v254, %v282
      %v293 = vmul.f32 %v255, %v281
      %v294 = vmul.f32 %v256, %v282
      %v295 = vmul.f32 %v257, %v281
      %v296 = vmul.f32 %v258, %v282
      %v297 = vmul.f32 %v259, %v281
      %v298 = vmul.f32 %v260, %v282
      %v299 = vmul.f32 %v261, %v281
      %v300 = vmul.f32 %v262, %v282
      %v301 = vmul.f32 %v263, %v281
      %v302 = vmul.f32 %v264, %v282
      %v303 = vmul.f32 %v265, %v281
      %v304 = vmul.f32 %v266, %v282
      %v305 = vmul.f32 %v267, %v281
      %v306 = vmul.f32 %v268, %v282
      %v307 = vmul.f32 %v269, %v281
      %v308 = vmul.f32 %v270, %v282
      %v309 = vmul.f32 %v271, %v281
      %v310 = vmul.f32 %v272, %v282
      %v311 = vmul.f32 %v273, %v281
      %v312 = vmul.f32 %v274, %v282
      %v313 = vmul.f32 %v275, %v281
      %v314 = vmul.f32 %v276, %v282
      %v315 = vmul.f32 %v277, %v281
      %v316 = vmul.f32 %v278, %v282
      %v317 = vld [vmem:[%s3] sm:$0x3]
      %v319 = vperm.slane %v317, 0
      %v320 = vperm.slane %v317, 1
      %v323 = vadd.f32 %v285, %v319
      %v324 = vadd.f32 %v286, %v320
      %v325 = vadd.f32 %v287, %v319
      %v326 = vadd.f32 %v288, %v320
      %v327 = vadd.f32 %v289, %v319
      %v328 = vadd.f32 %v290, %v320
      %v329 = vadd.f32 %v291, %v319
      %v330 = vadd.f32 %v292, %v320
      %v331 = vadd.f32 %v293, %v319
      %v332 = vadd.f32 %v294, %v320
      %v333 = vadd.f32 %v295, %v319
      %v334 = vadd.f32 %v296, %v320
      %v335 = vadd.f32 %v297, %v319
      %v336 = vadd.f32 %v298, %v320
      %v337 = vadd.f32 %v299, %v319
      %v338 = vadd.f32 %v300, %v320
      %v339 = vadd.f32 %v301, %v319
      %v340 = vadd.f32 %v302, %v320
      %v341 = vadd.f32 %v303, %v319
      %v342 = vadd.f32 %v304, %v320
      %v343 = vadd.f32 %v305, %v319
      %v344 = vadd.f32 %v306, %v320
      %v345 = vadd.f32 %v307, %v319
      %v346 = vadd.f32 %v308, %v320
      %v347 = vadd.f32 %v309, %v319
      %v348 = vadd.f32 %v310, %v320
      %v349 = vadd.f32 %v311, %v319
      %v350 = vadd.f32 %v312, %v320
      %v351 = vadd.f32 %v313, %v319
      %v352 = vadd.f32 %v314, %v320
      %v353 = vadd.f32 %v315, %v319
      %v354 = vadd.f32 %v316, %v320
      %v355 = vld [vmem:[%s222] sm:$0xff]
      %v356 = vld [vmem:[%s222 + $0x8] sm:$0xff]
      %v357 = vld [vmem:[%s222 + $0x10] sm:$0xff]
      %v358 = vld [vmem:[%s222 + $0x18] sm:$0xff]
      %v359 = vld [vmem:[%s222 + $0x20] sm:$0xff]
      %v360 = vld [vmem:[%s222 + $0x28] sm:$0xff]
      %v361 = vld [vmem:[%s222 + $0x30] sm:$0xff]
      %v362 = vld [vmem:[%s222 + $0x38] sm:$0xff]
      %v363 = vld [vmem:[%s222 + $0x40] sm:$0xff]
      %v364 = vld [vmem:[%s222 + $0x48] sm:$0xff]
      %v365 = vld [vmem:[%s222 + $0x50] sm:$0xff]
      %v366 = vld [vmem:[%s222 + $0x58] sm:$0xff]
      %v367 = vld [vmem:[%s222 + $0x60] sm:$0xff]
      %v368 = vld [vmem:[%s222 + $0x68] sm:$0xff]
      %v369 = vld [vmem:[%s222 + $0x70] sm:$0xff]
      %v370 = vld [vmem:[%s222 + $0x78] sm:$0xff]
      %v371 = vld [vmem:[%s222 + $0x80] sm:$0xff]
      %v372 = vld [vmem:[%s222 + $0x88] sm:$0xff]
      %v373 = vld [vmem:[%s222 + $0x90] sm:$0xff]
      %v374 = vld [vmem:[%s222 + $0x98] sm:$0xff]
      %v375 = vld [vmem:[%s222 + $0xa0] sm:$0xff]
      %v376 = vld [vmem:[%s222 + $0xa8] sm:$0xff]
      %v377 = vld [vmem:[%s222 + $0xb0] sm:$0xff]
      %v378 = vld [vmem:[%s222 + $0xb8] sm:$0xff]
      %v379 = vld [vmem:[%s222 + $0xc0] sm:$0xff]
      %v380 = vld [vmem:[%s222 + $0xc8] sm:$0xff]
      %v381 = vld [vmem:[%s222 + $0xd0] sm:$0xff]
      %v382 = vld [vmem:[%s222 + $0xd8] sm:$0xff]
      %v383 = vld [vmem:[%s222 + $0xe0] sm:$0xff]
      %v384 = vld [vmem:[%s222 + $0xe8] sm:$0xff]
      %v385 = vld [vmem:[%s222 + $0xf0] sm:$0xff]
      %v386 = vld [vmem:[%s222 + $0xf8] sm:$0xff]
      %v387 = vadd.f32 %v323, %v355
      %v388 = vadd.f32 %v324, %v356
      %v389 = vadd.f32 %v325, %v357
      %v390 = vadd.f32 %v326, %v358
      %v391 = vadd.f32 %v327, %v359
      %v392 = vadd.f32 %v328, %v360
      %v393 = vadd.f32 %v329, %v361
      %v394 = vadd.f32 %v330, %v362
      %v395 = vadd.f32 %v331, %v363
      %v396 = vadd.f32 %v332, %v364
      %v397 = vadd.f32 %v333, %v365
      %v398 = vadd.f32 %v334, %v366
      %v399 = vadd.f32 %v335, %v367
      %v400 = vadd.f32 %v336, %v368
      %v401 = vadd.f32 %v337, %v369
      %v402 = vadd.f32 %v338, %v370
      %v403 = vadd.f32 %v339, %v371
      %v404 = vadd.f32 %v340, %v372
      %v405 = vadd.f32 %v341, %v373
      %v406 = vadd.f32 %v342, %v374
      %v407 = vadd.f32 %v343, %v375
      %v408 = vadd.f32 %v344, %v376
      %v409 = vadd.f32 %v345, %v377
      %v410 = vadd.f32 %v346, %v378
      %v411 = vadd.f32 %v347, %v379
      %v412 = vadd.f32 %v348, %v380
      %v413 = vadd.f32 %v349, %v381
      %v414 = vadd.f32 %v350, %v382
      %v415 = vadd.f32 %v351, %v383
      %v416 = vadd.f32 %v352, %v384
      %v417 = vadd.f32 %v353, %v385
      %v418 = vadd.f32 %v354, %v386
      %v419 = vmax.f32 %v387, 0.0
      %v420 = vmax.f32 %v388, 0.0
      %v421 = vmax.f32 %v389, 0.0
      %v422 = vmax.f32 %v390, 0.0
      %v423 = vmax.f32 %v391, 0.0
      %v424 = vmax.f32 %v392, 0.0
      %v425 = vmax.f32 %v393, 0.0
      %v426 = vmax.f32 %v394, 0.0
      %v427 = vmax.f32 %v395, 0.0
      %v428 = vmax.f32 %v396, 0.0
      %v429 = vmax.f32 %v397, 0.0
      %v430 = vmax.f32 %v398, 0.0
      %v431 = vmax.f32 %v399, 0.0
      %v432 = vmax.f32 %v400, 0.0
      %v433 = vmax.f32 %v401, 0.0
      %v434 = vmax.f32 %v402, 0.0
      %v435 = vmax.f32 %v403, 0.0
      %v436 = vmax.f32 %v404, 0.0
      %v437 = vmax.f32 %v405, 0.0
      %v438 = vmax.f32 %v406, 0.0
      %v439 = vmax.f32 %v407, 0.0
      %v440 = vmax.f32 %v408, 0.0
      %v441 = vmax.f32 %v409, 0.0
      %v442 = vmax.f32 %v410, 0.0
      %v443 = vmax.f32 %v411, 0.0
      %v444 = vmax.f32 %v412, 0.0
      %v445 = vmax.f32 %v413, 0.0
      %v446 = vmax.f32 %v414, 0.0
      %v447 = vmax.f32 %v415, 0.0
      %v448 = vmax.f32 %v416, 0.0
      %v449 = vmax.f32 %v417, 0.0
      %v450 = vmax.f32 %v418, 0.0
      %451 = vst [vmem:[%s229] sm:$0xff] %v419
      %452 = vst [vmem:[%s229 + $0x8] sm:$0xff] %v420
      %453 = vst [vmem:[%s229 + $0x10] sm:$0xff] %v421
      %454 = vst [vmem:[%s229 + $0x18] sm:$0xff] %v422
      %455 = vst [vmem:[%s229 + $0x20] sm:$0xff] %v423
      %456 = vst [vmem:[%s229 + $0x28] sm:$0xff] %v424
      %457 = vst [vmem:[%s229 + $0x30] sm:$0xff] %v425
      %458 = vst [vmem:[%s229 + $0x38] sm:$0xff] %v426
      %459 = vst [vmem:[%s229 + $0x40] sm:$0xff] %v427
      %460 = vst [vmem:[%s229 + $0x48] sm:$0xff] %v428
      %461 = vst [vmem:[%s229 + $0x50] sm:$0xff] %v429
      %462 = vst [vmem:[%s229 + $0x58] sm:$0xff] %v430
      %463 = vst [vmem:[%s229 + $0x60] sm:$0xff] %v431
      %464 = vst [vmem:[%s229 + $0x68] sm:$0xff] %v432
      %465 = vst [vmem:[%s229 + $0x70] sm:$0xff] %v433
      %466 = vst [vmem:[%s229 + $0x78] sm:$0xff] %v434
      %467 = vst [vmem:[%s229 + $0x80] sm:$0xff] %v435
      %468 = vst [vmem:[%s229 + $0x88] sm:$0xff] %v436
      %469 = vst [vmem:[%s229 + $0x90] sm:$0xff] %v437
      %470 = vst [vmem:[%s229 + $0x98] sm:$0xff] %v438
      %471 = vst [vmem:[%s229 + $0xa0] sm:$0xff] %v439
      %472 = vst [vmem:[%s229 + $0xa8] sm:$0xff] %v440
      %473 = vst [vmem:[%s229 + $0xb0] sm:$0xff] %v441
      %474 = vst [vmem:[%s229 + $0xb8] sm:$0xff] %v442
      %475 = vst [vmem:[%s229 + $0xc0] sm:$0xff] %v443
      %476 = vst [vmem:[%s229 + $0xc8] sm:$0xff] %v444
      %477 = vst [vmem:[%s229 + $0xd0] sm:$0xff] %v445
      %478 = vst [vmem:[%s229 + $0xd8] sm:$0xff] %v446
      %479 = vst [vmem:[%s229 + $0xe0] sm:$0xff] %v447
      %480 = vst [vmem:[%s229 + $0xe8] sm:$0xff] %v448
      %481 = vst [vmem:[%s229 + $0xf0] sm:$0xff] %v449
      %482 = vst [vmem:[%s229 + $0xf8] sm:$0xff] %v450
      %s483 = smul.u32 8, %s15
      %p484 = scmp.lt.s32.totalorder %s483, 31
      %s485 = scalar_select %p484, %s483, 31
      %s486 = smul.addr %s485, 4
      %s487 = smul.addr %s486, 8
      %s488 = scalar_lea.vmem %s4, %s487
      // Predicated region
      $region37: #{forward_layer.8} parent=35 // pred_check
        %p489 = pneg %p127
      $region38: #{forward_layer.8} parent=35 // pred_check_branch
        %491 = sbr.rel (%p489) target = $region40
      $region39: #{forward_layer.8} parent=35 // pred_region
        %s492 = smul.u32 8, %s15
      $region40: #{forward_layer.8} parent=35 // pred_fallthru
        _
    $region36: #{forward_layer.8} parent=5 // pred_fallthru
      _
    %p493 = scmp.le.s32.totalorder 2, %s10
    // Predicated region
    $region41: #{forward_layer.8} parent=5 // pred_check
      %p494 = pneg %p493
    $region42: #{forward_layer.8} parent=5 // pred_check_branch
      %496 = sbr.rel (%p494) target = $region44
    $region43: #{forward_layer.8} parent=5 // pred_region
      %s497 = ssub.s32 %s10, 2
      // Predicated region
      $region45: #{forward_layer.8} parent=43 // pred_check
        %p498 = pneg %p133
      $region46: #{forward_layer.8} parent=43 // pred_check_branch
        %500 = sbr.rel (%p498) target = $region48
      $region47: #{forward_layer.8} parent=43 // pred_region
        %s501 = smul.u32 8, %s16
        %p502 = scmp.lt.s32.totalorder %s501, 31
        %s503 = scalar_select %p502, %s501, 31
        %s504 = smul.addr %s503, 4
        %s505 = smul.addr %s504, 8
        %s506 = scalar_lea.vmem %s4, %s505
      $region48: #{forward_layer.8} parent=43 // pred_fallthru
        _
    $region44: #{forward_layer.8} parent=5 // pred_fallthru
      _
  $region6: #{forward_layer.8} parent=0 // loop_footer
    %s14 = sadd.s32 1, %s10
  $region7: #{forward_layer.8} parent=0 // loop_footer_branch
    %9 = sbr.rel target = $region3
  $region8: #{forward_layer.8} parent=0 // loop_exit
    _

</llo_original>
